<compile_context>
chip_gen: v5e
topology: v5e:2x2
jax: 0.10.0
libtpu: 0.0.40
codegen_flags: <defaults>
</compile_context>

<pallas_src>
import functools

import jax
import jax.numpy as jnp
from jax.experimental import pallas as pl
from jax.experimental.pallas import tpu as pltpu

LANE = 128


def _mlp_kernel(x_ref,
                w1_ref, b1_ref,
                w2_ref, b2_ref,
                w3_ref, b3_ref,
                w4_ref, b4_ref,
                w5_ref, b5_ref,
                o_ref):
    # One (tile_m, fold*in_f) activation tile per grid step; weights/biases use
    # constant index_maps so they stay VMEM-resident across all steps.
    # f32 accumulation + f32 elementwise; bf16 (or f32) MXU operands.
    w_dtype = w1_ref.dtype
    x = x_ref[...].astype(w_dtype)  # cast in-kernel, not as a separate HBM pass
    h = jnp.dot(x, w1_ref[...], preferred_element_type=jnp.float32)
    h = jnp.sin(h + b1_ref[...])
    h = jnp.dot(h.astype(w_dtype), w2_ref[...], preferred_element_type=jnp.float32)
    h = jnp.sin(h + b2_ref[...])
    h = jnp.dot(h.astype(w_dtype), w3_ref[...], preferred_element_type=jnp.float32)
    h = jnp.sin(h + b3_ref[...])
    h = jnp.dot(h.astype(w_dtype), w4_ref[...], preferred_element_type=jnp.float32)
    h = jnp.sin(h + b4_ref[...])
    h = jnp.dot(h.astype(w_dtype), w5_ref[...], preferred_element_type=jnp.float32)
    o_ref[...] = (h + b5_ref[...]).astype(o_ref.dtype)


def _round_up(a, m):
    return ((a + m - 1) // m) * m


@functools.partial(jax.jit, static_argnames=("tile_m", "use_bf16"))
def ann_forward(x, params, *, tile_m=512, use_bf16=True):
    """params: list of (W, b) with W (in, out), b (1, out).

    tile_m is measured in *folded* rows (each folded row = `fold` input rows).
    """
    batch, in_f = x.shape
    hid = params[0][0].shape[1]
    out_f = params[-1][0].shape[1]

    # --- Batch folding factor: pack `fold` rows into the lane dimension so the
    # hidden activations are fold*hid lanes wide (lane-dense sin + matmul). ---
    fold = 1
    if 0 < hid < LANE and LANE % hid == 0 and LANE % (LANE // hid) == 0:
        fold = LANE // hid
    lane_per_fold = LANE // fold
    out_pad_fold = _round_up(max(out_f, 1), lane_per_fold)   # per-fold output pad
    out_cols = fold * out_pad_fold                           # lane-dense (x128) store

    # --- Tile / padding choices (tile_m in folded rows, multiple of 16). ---
    folded_rows = -(-batch // fold)
    max_tile = _round_up(folded_rows, 16)
    if folded_rows >= 32:
        # Keep >= 2 grid steps when the batch allows it (v7x: both TensorCores;
        # all chips: output-writeback / input-DMA pipelining).
        max_tile = min(max_tile, _round_up(-(-folded_rows // 2), 16))
    tile_m = max(16, min(_round_up(int(tile_m), 16), max_tile))
    padded_folded = _round_up(folded_rows, tile_m)
    padded_batch = padded_folded * fold

    # --- Fold inputs. x stays in its native dtype (cast happens in-kernel). ---
    xp = x
    if padded_batch != batch:
        xp = jnp.zeros((padded_batch, in_f), x.dtype).at[:batch].set(x)
    xp = xp.reshape(padded_folded, fold * in_f)

    # --- Fold weights: block-diagonal kron(I_fold, W); biases tiled per fold. ---
    op_dtype = jnp.bfloat16 if use_bf16 else jnp.float32
    op_bytes = jnp.dtype(op_dtype).itemsize
    eye = jnp.eye(fold, dtype=jnp.float32)

    folded_params = []
    for li, (w, b) in enumerate(params):
        if li == len(params) - 1 and out_pad_fold != out_f:
            w = jnp.zeros((w.shape[0], out_pad_fold), w.dtype).at[:, :out_f].set(w)
            b = jnp.zeros((1, out_pad_fold), b.dtype).at[:, :out_f].set(b)
        wf = jnp.kron(eye, w.astype(jnp.float32)).astype(op_dtype)
        bf = jnp.tile(b.astype(jnp.float32), (1, fold))
        folded_params.append((wf, bf))

    flat_args = [xp]
    in_specs = [pl.BlockSpec((tile_m, fold * in_f), lambda i: (i, 0))]
    for wf, bf in folded_params:
        flat_args.append(wf)
        in_specs.append(pl.BlockSpec(tuple(wf.shape), lambda i: (0, 0)))
        flat_args.append(bf)                                  # bias add stays f32
        in_specs.append(pl.BlockSpec(tuple(bf.shape), lambda i: (0, 0)))

    grid = (padded_folded // tile_m,)

    fh = fold * hid
    flops = 2 * padded_folded * (fold * in_f * fh + 3 * fh * fh + fh * out_cols)
    transcendentals = 4 * padded_folded * fh
    bytes_accessed = (
        padded_folded * fold * in_f * jnp.dtype(x.dtype).itemsize   # x in
        + padded_folded * out_cols * 4                              # out (f32)
        + sum(int(wf.size) * op_bytes + int(bf.size) * 4            # resident W/b
              for wf, bf in folded_params))

    out = pl.pallas_call(
        _mlp_kernel,
        out_shape=jax.ShapeDtypeStruct((padded_folded, out_cols), jnp.float32),
        grid=grid,
        in_specs=in_specs,
        out_specs=pl.BlockSpec((tile_m, out_cols), lambda i: (i, 0)),
        compiler_params=pltpu.CompilerParams(
            # Rows independent -> both TensorCores on v7x, harmless elsewhere.
            # TODO(synk): try pltpu.CORE_PARALLEL / core_map split on v7x.
            dimension_semantics=("parallel",),
            vmem_limit_bytes=32 * 1024 * 1024,   # footprint ~few MiB even at tile_m=2048
        ),
        cost_estimate=pl.CostEstimate(
            flops=flops,
            transcendentals=transcendentals,
            bytes_accessed=bytes_accessed),
    )(*flat_args)

    # Un-fold: (padded_folded, fold*out_pad_fold) -> (padded_batch, out_pad_fold)
    out = out.reshape(padded_batch, out_pad_fold)
    return out[:batch, :out_f]


def init_linear(key, fan_in, fan_out):
    # PyTorch nn.Linear default init: U(-1/sqrt(fan_in), 1/sqrt(fan_in))
    kw, kb = jax.random.split(key)
    bound = 1.0 / jnp.sqrt(jnp.float32(fan_in))
    w = jax.random.uniform(kw, (fan_in, fan_out), jnp.float32, -bound, bound)
    b = jax.random.uniform(kb, (1, fan_out), jnp.float32, -bound, bound)
    return w, b


def reference_forward(x, params):
    h = x
    for i, (w, b) in enumerate(params):
        h = h @ w + b
        if i < len(params) - 1:
            h = jnp.sin(h)
    return h


if __name__ == "__main__":
    batch = 512                      # 128 folded rows -> 2 grid steps of 64
    in_neuron, hidden_neuron, out_neuron = 16, 32, 4

    key = jax.random.PRNGKey(0)
    keys = jax.random.split(key, 6)

    x = jax.random.normal(keys[0], (batch, in_neuron), jnp.float32)

    dims = [(in_neuron, hidden_neuron),
            (hidden_neuron, hidden_neuron),
            (hidden_neuron, hidden_neuron),
            (hidden_neuron, hidden_neuron),
            (hidden_neuron, out_neuron)]
    params = [init_linear(keys[i + 1], fi, fo) for i, (fi, fo) in enumerate(dims)]

    out = ann_forward(x, params, tile_m=512, use_bf16=True)
    out = jax.block_until_ready(out)

    ref = reference_forward(x, params)
    assert out.shape == (batch, out_neuron)
    # bf16 MXU operands (f32 accumulation) -> loosened tolerance vs f32 reference.
    assert jnp.allclose(out, ref, atol=2e-2, rtol=2e-2), \
        float(jnp.max(jnp.abs(out - ref)))

    print("KERNEL_OK")
</pallas_src>

<mosaic_0001>
module attributes {stable_mosaic.version = 11 : i64} {
  func.func @_mlp_kernel(%arg0: i32, %arg1: memref<64x64xf32, #tpu.memory_space<vmem>>, %arg2: memref<64x128xbf16, #tpu.memory_space<vmem>>, %arg3: memref<1x128xf32, #tpu.memory_space<vmem>>, %arg4: memref<128x128xbf16, #tpu.memory_space<vmem>>, %arg5: memref<1x128xf32, #tpu.memory_space<vmem>>, %arg6: memref<128x128xbf16, #tpu.memory_space<vmem>>, %arg7: memref<1x128xf32, #tpu.memory_space<vmem>>, %arg8: memref<128x128xbf16, #tpu.memory_space<vmem>>, %arg9: memref<1x128xf32, #tpu.memory_space<vmem>>, %arg10: memref<128x128xbf16, #tpu.memory_space<vmem>>, %arg11: memref<1x128xf32, #tpu.memory_space<vmem>>, %arg12: memref<64x128xf32, #tpu.memory_space<vmem>>) attributes {dimension_semantics = [#tpu.dimension_semantics<parallel>], iteration_bounds = array<i64: 2>, scalar_prefetch = 0 : i64, scratch_operands = 0 : i64, tpu.core_type = #tpu.core_type<tc>, window_params = [{transform_indices = @transform_0, window_bounds = array<i64: 64, 64>}, {pipeline_mode = #tpu.pipeline_mode<synchronous>, transform_indices = @transform_1, window_bounds = array<i64: 64, 128>}, {pipeline_mode = #tpu.pipeline_mode<synchronous>, transform_indices = @transform_2, window_bounds = array<i64: 1, 128>}, {pipeline_mode = #tpu.pipeline_mode<synchronous>, transform_indices = @transform_3, window_bounds = array<i64: 128, 128>}, {pipeline_mode = #tpu.pipeline_mode<synchronous>, transform_indices = @transform_4, window_bounds = array<i64: 1, 128>}, {pipeline_mode = #tpu.pipeline_mode<synchronous>, transform_indices = @transform_5, window_bounds = array<i64: 128, 128>}, {pipeline_mode = #tpu.pipeline_mode<synchronous>, transform_indices = @transform_6, window_bounds = array<i64: 1, 128>}, {pipeline_mode = #tpu.pipeline_mode<synchronous>, transform_indices = @transform_7, window_bounds = array<i64: 128, 128>}, {pipeline_mode = #tpu.pipeline_mode<synchronous>, transform_indices = @transform_8, window_bounds = array<i64: 1, 128>}, {pipeline_mode = #tpu.pipeline_mode<synchronous>, transform_indices = @transform_9, window_bounds = array<i64: 128, 128>}, {pipeline_mode = #tpu.pipeline_mode<synchronous>, transform_indices = @transform_10, window_bounds = array<i64: 1, 128>}, {transform_indices = @transform_11, window_bounds = array<i64: 64, 128>}]} {
    %c0 = arith.constant 0 : index
    %c0_0 = arith.constant 0 : index
    %0 = vector.load %arg1[%c0, %c0_0] : memref<64x64xf32, #tpu.memory_space<vmem>>, vector<64x64xf32>
    %1 = arith.truncf %0 : vector<64x64xf32> to vector<64x64xbf16>
    %c0_1 = arith.constant 0 : index
    %c0_2 = arith.constant 0 : index
    %2 = vector.load %arg2[%c0_1, %c0_2] : memref<64x128xbf16, #tpu.memory_space<vmem>>, vector<64x128xbf16>
    %cst = arith.constant dense<0.000000e+00> : vector<64x128xf32>
    %3 = tpu.matmul %1, %2, %cst {dimension_numbers = #tpu.dot_dimension_numbers<[1], [0], [0], [1], [0, 0, 1, 1], [], []>} : vector<64x64xbf16>, vector<64x128xbf16>, vector<64x128xf32> -> vector<64x128xf32>
    %c0_3 = arith.constant 0 : index
    %c0_4 = arith.constant 0 : index
    %4 = vector.load %arg3[%c0_3, %c0_4] : memref<1x128xf32, #tpu.memory_space<vmem>>, vector<1x128xf32>
    %5 = vector.broadcast %4 : vector<1x128xf32> to vector<64x128xf32>
    %6 = arith.addf %3, %5 : vector<64x128xf32>
    %7 = math.sin %6 : vector<64x128xf32>
    %8 = arith.truncf %7 : vector<64x128xf32> to vector<64x128xbf16>
    %c0_5 = arith.constant 0 : index
    %c0_6 = arith.constant 0 : index
    %9 = vector.load %arg4[%c0_5, %c0_6] : memref<128x128xbf16, #tpu.memory_space<vmem>>, vector<128x128xbf16>
    %cst_7 = arith.constant dense<0.000000e+00> : vector<64x128xf32>
    %10 = tpu.matmul %8, %9, %cst_7 {dimension_numbers = #tpu.dot_dimension_numbers<[1], [0], [0], [1], [0, 0, 1, 1], [], []>} : vector<64x128xbf16>, vector<128x128xbf16>, vector<64x128xf32> -> vector<64x128xf32>
    %c0_8 = arith.constant 0 : index
    %c0_9 = arith.constant 0 : index
    %11 = vector.load %arg5[%c0_8, %c0_9] : memref<1x128xf32, #tpu.memory_space<vmem>>, vector<1x128xf32>
    %12 = vector.broadcast %11 : vector<1x128xf32> to vector<64x128xf32>
    %13 = arith.addf %10, %12 : vector<64x128xf32>
    %14 = math.sin %13 : vector<64x128xf32>
    %15 = arith.truncf %14 : vector<64x128xf32> to vector<64x128xbf16>
    %c0_10 = arith.constant 0 : index
    %c0_11 = arith.constant 0 : index
    %16 = vector.load %arg6[%c0_10, %c0_11] : memref<128x128xbf16, #tpu.memory_space<vmem>>, vector<128x128xbf16>
    %cst_12 = arith.constant dense<0.000000e+00> : vector<64x128xf32>
    %17 = tpu.matmul %15, %16, %cst_12 {dimension_numbers = #tpu.dot_dimension_numbers<[1], [0], [0], [1], [0, 0, 1, 1], [], []>} : vector<64x128xbf16>, vector<128x128xbf16>, vector<64x128xf32> -> vector<64x128xf32>
    %c0_13 = arith.constant 0 : index
    %c0_14 = arith.constant 0 : index
    %18 = vector.load %arg7[%c0_13, %c0_14] : memref<1x128xf32, #tpu.memory_space<vmem>>, vector<1x128xf32>
    %19 = vector.broadcast %18 : vector<1x128xf32> to vector<64x128xf32>
    %20 = arith.addf %17, %19 : vector<64x128xf32>
    %21 = math.sin %20 : vector<64x128xf32>
    %22 = arith.truncf %21 : vector<64x128xf32> to vector<64x128xbf16>
    %c0_15 = arith.constant 0 : index
    %c0_16 = arith.constant 0 : index
    %23 = vector.load %arg8[%c0_15, %c0_16] : memref<128x128xbf16, #tpu.memory_space<vmem>>, vector<128x128xbf16>
    %cst_17 = arith.constant dense<0.000000e+00> : vector<64x128xf32>
    %24 = tpu.matmul %22, %23, %cst_17 {dimension_numbers = #tpu.dot_dimension_numbers<[1], [0], [0], [1], [0, 0, 1, 1], [], []>} : vector<64x128xbf16>, vector<128x128xbf16>, vector<64x128xf32> -> vector<64x128xf32>
    %c0_18 = arith.constant 0 : index
    %c0_19 = arith.constant 0 : index
    %25 = vector.load %arg9[%c0_18, %c0_19] : memref<1x128xf32, #tpu.memory_space<vmem>>, vector<1x128xf32>
    %26 = vector.broadcast %25 : vector<1x128xf32> to vector<64x128xf32>
    %27 = arith.addf %24, %26 : vector<64x128xf32>
    %28 = math.sin %27 : vector<64x128xf32>
    %29 = arith.truncf %28 : vector<64x128xf32> to vector<64x128xbf16>
    %c0_20 = arith.constant 0 : index
    %c0_21 = arith.constant 0 : index
    %30 = vector.load %arg10[%c0_20, %c0_21] : memref<128x128xbf16, #tpu.memory_space<vmem>>, vector<128x128xbf16>
    %cst_22 = arith.constant dense<0.000000e+00> : vector<64x128xf32>
    %31 = tpu.matmul %29, %30, %cst_22 {dimension_numbers = #tpu.dot_dimension_numbers<[1], [0], [0], [1], [0, 0, 1, 1], [], []>} : vector<64x128xbf16>, vector<128x128xbf16>, vector<64x128xf32> -> vector<64x128xf32>
    %c0_23 = arith.constant 0 : index
    %c0_24 = arith.constant 0 : index
    %32 = vector.load %arg11[%c0_23, %c0_24] : memref<1x128xf32, #tpu.memory_space<vmem>>, vector<1x128xf32>
    %33 = vector.broadcast %32 : vector<1x128xf32> to vector<64x128xf32>
    %34 = arith.addf %31, %33 : vector<64x128xf32>
    %c0_25 = arith.constant 0 : index
    %c0_26 = arith.constant 0 : index
    %35 = vector.load %arg12[%c0_25, %c0_26] : memref<64x128xf32, #tpu.memory_space<vmem>>, vector<64x128xf32>
    tpu.vector_store %arg12[%c0_25, %c0_26], %34 {strides = array<i32>} : memref<64x128xf32, #tpu.memory_space<vmem>>, vector<64x128xf32>,
    return
  }
  func.func @transform_0(%arg0: i32) -> (i32, i32) {
    %c0_i32 = arith.constant 0 : i32
    %c0_i32_0 = arith.constant 0 : i32
    return %arg0, %c0_i32 : i32, i32
  }
  func.func @transform_1(%arg0: i32) -> (i32, i32) {
    %c0_i32 = arith.constant 0 : i32
    %c0_i32_0 = arith.constant 0 : i32
    %c0_i32_1 = arith.constant 0 : i32
    return %c0_i32, %c0_i32_0 : i32, i32
  }
  func.func @transform_2(%arg0: i32) -> (i32, i32) {
    %c0_i32 = arith.constant 0 : i32
    %c0_i32_0 = arith.constant 0 : i32
    %c0_i32_1 = arith.constant 0 : i32
    return %c0_i32, %c0_i32_0 : i32, i32
  }
  func.func @transform_3(%arg0: i32) -> (i32, i32) {
    %c0_i32 = arith.constant 0 : i32
    %c0_i32_0 = arith.constant 0 : i32
    %c0_i32_1 = arith.constant 0 : i32
    return %c0_i32, %c0_i32_0 : i32, i32
  }
  func.func @transform_4(%arg0: i32) -> (i32, i32) {
    %c0_i32 = arith.constant 0 : i32
    %c0_i32_0 = arith.constant 0 : i32
    %c0_i32_1 = arith.constant 0 : i32
    return %c0_i32, %c0_i32_0 : i32, i32
  }
  func.func @transform_5(%arg0: i32) -> (i32, i32) {
    %c0_i32 = arith.constant 0 : i32
    %c0_i32_0 = arith.constant 0 : i32
    %c0_i32_1 = arith.constant 0 : i32
    return %c0_i32, %c0_i32_0 : i32, i32
  }
  func.func @transform_6(%arg0: i32) -> (i32, i32) {
    %c0_i32 = arith.constant 0 : i32
    %c0_i32_0 = arith.constant 0 : i32
    %c0_i32_1 = arith.constant 0 : i32
    return %c0_i32, %c0_i32_0 : i32, i32
  }
  func.func @transform_7(%arg0: i32) -> (i32, i32) {
    %c0_i32 = arith.constant 0 : i32
    %c0_i32_0 = arith.constant 0 : i32
    %c0_i32_1 = arith.constant 0 : i32
    return %c0_i32, %c0_i32_0 : i32, i32
  }
  func.func @transform_8(%arg0: i32) -> (i32, i32) {
    %c0_i32 = arith.constant 0 : i32
    %c0_i32_0 = arith.constant 0 : i32
    %c0_i32_1 = arith.constant 0 : i32
    return %c0_i32, %c0_i32_0 : i32, i32
  }
  func.func @transform_9(%arg0: i32) -> (i32, i32) {
    %c0_i32 = arith.constant 0 : i32
    %c0_i32_0 = arith.constant 0 : i32
    %c0_i32_1 = arith.constant 0 : i32
    return %c0_i32, %c0_i32_0 : i32, i32
  }
  func.func @transform_10(%arg0: i32) -> (i32, i32) {
    %c0_i32 = arith.constant 0 : i32
    %c0_i32_0 = arith.constant 0 : i32
    %c0_i32_1 = arith.constant 0 : i32
    return %c0_i32, %c0_i32_0 : i32, i32
  }
  func.func @transform_11(%arg0: i32) -> (i32, i32) {
    %c0_i32 = arith.constant 0 : i32
    %c0_i32_0 = arith.constant 0 : i32
    return %arg0, %c0_i32 : i32, i32
  }
}

</mosaic_0001>

<llo_original>
// kernel: ann_forward.1
$region0: #{ann_forward.1}
  #allocation0 [shape = 'u32[]', space=smem, size = 0x4, offset = 0x4, fixed_abs, tag = 'smem constant byte address 0x4 - core index']
  #allocation1 [shape = 'u32[72,128]{1,0:T(1,128)}', space=vmem, size = 0x9000, scoped, tag = 'internal scratch']
  %s0 = inlined_call_operand.vmem [shape: f32[128,64], index: 0, kind: input, shape index: {}]
  %s1 = inlined_call_operand.vmem [shape: bf16[64,128], index: 1, kind: input, shape index: {}]
  %s2 = inlined_call_operand.vmem [shape: f32[1,128], index: 2, kind: input, shape index: {}]
  %s3 = inlined_call_operand.vmem [shape: bf16[128,128], index: 3, kind: input, shape index: {}]
  %s4 = inlined_call_operand.vmem [shape: f32[1,128], index: 4, kind: input, shape index: {}]
  %s5 = inlined_call_operand.vmem [shape: bf16[128,128], index: 5, kind: input, shape index: {}]
  %s6 = inlined_call_operand.vmem [shape: f32[1,128], index: 6, kind: input, shape index: {}]
  %s7 = inlined_call_operand.vmem [shape: bf16[128,128], index: 7, kind: input, shape index: {}]
  %s8 = inlined_call_operand.vmem [shape: f32[1,128], index: 8, kind: input, shape index: {}]
  %s9 = inlined_call_operand.vmem [shape: bf16[128,128], index: 9, kind: input, shape index: {}]
  %s10 = inlined_call_operand.vmem [shape: f32[1,128], index: 10, kind: input, shape index: {}]
  %s11 = inlined_call_operand.vmem [shape: f32[128,128], index: 11, kind: output, shape index: {}]
  %s12 = sld [smem:[#allocation0]]
  $region77: #{ann_forward.1} parent=0
    _
  %s14 = ssub.s32 1, %s12
  %s15 = scalar_select 0, %s14, %s12
  loop: start=0, step=1, limit=4
  $region2: #{ann_forward.1} parent=0 // loop_pre_header
    _
  $region3: #{ann_forward.1} parent=0 // loop_header
    %s17 = sphi 0, %s21
    %p18 = scmp.ge.s32.totalorder %s17, 4
    %s27 = sphi 0, %s29
    %s30 = sphi 0, %s27
    %s31 = sphi 0, %s30
    %s47 = sphi 0, %s31
    %s51 = sphi 0, %s51
    %s53 = sphi 0, %s51
    %s54 = sphi 0, %s53
    %s68 = sphi 0, %s54
    %s72 = sphi 0, %s72
    %s74 = sphi 0, %s72
    %s75 = sphi 0, %s74
    %s89 = sphi 0, %s75
    %s93 = sphi 0, %s93
    %s95 = sphi 0, %s93
    %s96 = sphi 0, %s95
    %s110 = sphi 0, %s96
    %s114 = sphi 0, %s114
    %s116 = sphi 0, %s114
    %s117 = sphi 0, %s116
    %s131 = sphi 0, %s117
    %s135 = sphi 0, %s135
    %s137 = sphi 0, %s135
    %s138 = sphi 0, %s137
    %s152 = sphi 0, %s138
    %s156 = sphi 0, %s156
    %s158 = sphi 0, %s156
    %s159 = sphi 0, %s158
    %s173 = sphi 0, %s159
    %s177 = sphi 0, %s177
    %s179 = sphi 0, %s177
    %s180 = sphi 0, %s179
    %s194 = sphi 0, %s180
    %s198 = sphi 0, %s198
    %s200 = sphi 0, %s198
    %s201 = sphi 0, %s200
    %s215 = sphi 0, %s201
    %s219 = sphi 0, %s219
    %s221 = sphi 0, %s219
    %s222 = sphi 0, %s221
    %s236 = sphi 0, %s222
    %s240 = sphi 0, %s240
    %s242 = sphi 0, %s240
    %s243 = sphi 0, %s242
    %s257 = sphi 0, %s243
    %s263 = sphi 0, %s265
    %s266 = sphi 0, %s263
    %s267 = sphi 0, %s266
    %s283 = sphi 0, %s267
  $region4: #{ann_forward.1} parent=0 // loop_header_branch
    %20 = sbr.rel (%p18) target = $region8
  $region5: #{ann_forward.1} parent=0 // loop_body
    %s22 = ssub.s32 %s17, 1
    %s23 = ssub.s32 %s17, 2
    %s24 = sadd.s32 %s17, 1
    %s25 = ssub.s32 %s17, %s24
    %p26 = scmp.eq.s32.totalorder %s25, 0
    %s28 = sadd.s32 %s27, 1
    %s29 = scalar_select %p26, %s27, %s28
    %p32 = pneg %p26
    %p33 = scmp.eq.s32.totalorder %s17, 1
    %p34 = por %p32, %p33
    %p35 = scmp.ne.s32.totalorder %s27, %s30
    %p36 = scmp.eq.s32.totalorder %s17, 0
    %p37 = por %p35, %p36
    %p38 = scmp.ne.s32.totalorder %s27, %s30
    %p39 = scmp.eq.s32.totalorder %s22, 1
    %p40 = por %p38, %p39
    %p41 = scmp.ne.s32.totalorder %s30, %s31
    %p42 = scmp.eq.s32.totalorder %s22, 0
    %p43 = por %p41, %p42
    %p44 = scmp.ne.s32.totalorder %s30, %s31
    %p45 = scmp.eq.s32.totalorder %s23, 1
    %p46 = por %p44, %p45
    %p48 = scmp.ne.s32.totalorder %s31, %s47
    %p49 = scmp.eq.s32.totalorder %s23, 0
    %p50 = por %p48, %p49
    %s52 = sadd.s32 %s51, 1
    %p55 = scmp.eq.s32.totalorder %s17, 1
    %p56 = scmp.ne.s32.totalorder %s51, %s53
    %p57 = scmp.eq.s32.totalorder %s17, 0
    %p58 = por %p56, %p57
    %p59 = scmp.ne.s32.totalorder %s51, %s53
    %p60 = scmp.eq.s32.totalorder %s22, 1
    %p61 = por %p59, %p60
    %p62 = scmp.ne.s32.totalorder %s53, %s54
    %p63 = scmp.eq.s32.totalorder %s22, 0
    %p64 = por %p62, %p63
    %p65 = scmp.ne.s32.totalorder %s53, %s54
    %p66 = scmp.eq.s32.totalorder %s23, 1
    %p67 = por %p65, %p66
    %p69 = scmp.ne.s32.totalorder %s54, %s68
    %p70 = scmp.eq.s32.totalorder %s23, 0
    %p71 = por %p69, %p70
    %s73 = sadd.s32 %s72, 1
    %p76 = scmp.eq.s32.totalorder %s17, 1
    %p77 = scmp.ne.s32.totalorder %s72, %s74
    %p78 = scmp.eq.s32.totalorder %s17, 0
    %p79 = por %p77, %p78
    %p80 = scmp.ne.s32.totalorder %s72, %s74
    %p81 = scmp.eq.s32.totalorder %s22, 1
    %p82 = por %p80, %p81
    %p83 = scmp.ne.s32.totalorder %s74, %s75
    %p84 = scmp.eq.s32.totalorder %s22, 0
    %p85 = por %p83, %p84
    %p86 = scmp.ne.s32.totalorder %s74, %s75
    %p87 = scmp.eq.s32.totalorder %s23, 1
    %p88 = por %p86, %p87
    %p90 = scmp.ne.s32.totalorder %s75, %s89
    %p91 = scmp.eq.s32.totalorder %s23, 0
    %p92 = por %p90, %p91
    %s94 = sadd.s32 %s93, 1
    %p97 = scmp.eq.s32.totalorder %s17, 1
    %p98 = scmp.ne.s32.totalorder %s93, %s95
    %p99 = scmp.eq.s32.totalorder %s17, 0
    %p100 = por %p98, %p99
    %p101 = scmp.ne.s32.totalorder %s93, %s95
    %p102 = scmp.eq.s32.totalorder %s22, 1
    %p103 = por %p101, %p102
    %p104 = scmp.ne.s32.totalorder %s95, %s96
    %p105 = scmp.eq.s32.totalorder %s22, 0
    %p106 = por %p104, %p105
    %p107 = scmp.ne.s32.totalorder %s95, %s96
    %p108 = scmp.eq.s32.totalorder %s23, 1
    %p109 = por %p107, %p108
    %p111 = scmp.ne.s32.totalorder %s96, %s110
    %p112 = scmp.eq.s32.totalorder %s23, 0
    %p113 = por %p111, %p112
    %s115 = sadd.s32 %s114, 1
    %p118 = scmp.eq.s32.totalorder %s17, 1
    %p119 = scmp.ne.s32.totalorder %s114, %s116
    %p120 = scmp.eq.s32.totalorder %s17, 0
    %p121 = por %p119, %p120
    %p122 = scmp.ne.s32.totalorder %s114, %s116
    %p123 = scmp.eq.s32.totalorder %s22, 1
    %p124 = por %p122, %p123
    %p125 = scmp.ne.s32.totalorder %s116, %s117
    %p126 = scmp.eq.s32.totalorder %s22, 0
    %p127 = por %p125, %p126
    %p128 = scmp.ne.s32.totalorder %s116, %s117
    %p129 = scmp.eq.s32.totalorder %s23, 1
    %p130 = por %p128, %p129
    %p132 = scmp.ne.s32.totalorder %s117, %s131
    %p133 = scmp.eq.s32.totalorder %s23, 0
    %p134 = por %p132, %p133
    %s136 = sadd.s32 %s135, 1
    %p139 = scmp.eq.s32.totalorder %s17, 1
    %p140 = scmp.ne.s32.totalorder %s135, %s137
    %p141 = scmp.eq.s32.totalorder %s17, 0
    %p142 = por %p140, %p141
    %p143 = scmp.ne.s32.totalorder %s135, %s137
    %p144 = scmp.eq.s32.totalorder %s22, 1
    %p145 = por %p143, %p144
    %p146 = scmp.ne.s32.totalorder %s137, %s138
    %p147 = scmp.eq.s32.totalorder %s22, 0
    %p148 = por %p146, %p147
    %p149 = scmp.ne.s32.totalorder %s137, %s138
    %p150 = scmp.eq.s32.totalorder %s23, 1
    %p151 = por %p149, %p150
    %p153 = scmp.ne.s32.totalorder %s138, %s152
    %p154 = scmp.eq.s32.totalorder %s23, 0
    %p155 = por %p153, %p154
    %s157 = sadd.s32 %s156, 1
    %p160 = scmp.eq.s32.totalorder %s17, 1
    %p161 = scmp.ne.s32.totalorder %s156, %s158
    %p162 = scmp.eq.s32.totalorder %s17, 0
    %p163 = por %p161, %p162
    %p164 = scmp.ne.s32.totalorder %s156, %s158
    %p165 = scmp.eq.s32.totalorder %s22, 1
    %p166 = por %p164, %p165
    %p167 = scmp.ne.s32.totalorder %s158, %s159
    %p168 = scmp.eq.s32.totalorder %s22, 0
    %p169 = por %p167, %p168
    %p170 = scmp.ne.s32.totalorder %s158, %s159
    %p171 = scmp.eq.s32.totalorder %s23, 1
    %p172 = por %p170, %p171
    %p174 = scmp.ne.s32.totalorder %s159, %s173
    %p175 = scmp.eq.s32.totalorder %s23, 0
    %p176 = por %p174, %p175
    %s178 = sadd.s32 %s177, 1
    %p181 = scmp.eq.s32.totalorder %s17, 1
    %p182 = scmp.ne.s32.totalorder %s177, %s179
    %p183 = scmp.eq.s32.totalorder %s17, 0
    %p184 = por %p182, %p183
    %p185 = scmp.ne.s32.totalorder %s177, %s179
    %p186 = scmp.eq.s32.totalorder %s22, 1
    %p187 = por %p185, %p186
    %p188 = scmp.ne.s32.totalorder %s179, %s180
    %p189 = scmp.eq.s32.totalorder %s22, 0
    %p190 = por %p188, %p189
    %p191 = scmp.ne.s32.totalorder %s179, %s180
    %p192 = scmp.eq.s32.totalorder %s23, 1
    %p193 = por %p191, %p192
    %p195 = scmp.ne.s32.totalorder %s180, %s194
    %p196 = scmp.eq.s32.totalorder %s23, 0
    %p197 = por %p195, %p196
    %s199 = sadd.s32 %s198, 1
    %p202 = scmp.eq.s32.totalorder %s17, 1
    %p203 = scmp.ne.s32.totalorder %s198, %s200
    %p204 = scmp.eq.s32.totalorder %s17, 0
    %p205 = por %p203, %p204
    %p206 = scmp.ne.s32.totalorder %s198, %s200
    %p207 = scmp.eq.s32.totalorder %s22, 1
    %p208 = por %p206, %p207
    %p209 = scmp.ne.s32.totalorder %s200, %s201
    %p210 = scmp.eq.s32.totalorder %s22, 0
    %p211 = por %p209, %p210
    %p212 = scmp.ne.s32.totalorder %s200, %s201
    %p213 = scmp.eq.s32.totalorder %s23, 1
    %p214 = por %p212, %p213
    %p216 = scmp.ne.s32.totalorder %s201, %s215
    %p217 = scmp.eq.s32.totalorder %s23, 0
    %p218 = por %p216, %p217
    %s220 = sadd.s32 %s219, 1
    %p223 = scmp.eq.s32.totalorder %s17, 1
    %p224 = scmp.ne.s32.totalorder %s219, %s221
    %p225 = scmp.eq.s32.totalorder %s17, 0
    %p226 = por %p224, %p225
    %p227 = scmp.ne.s32.totalorder %s219, %s221
    %p228 = scmp.eq.s32.totalorder %s22, 1
    %p229 = por %p227, %p228
    %p230 = scmp.ne.s32.totalorder %s221, %s222
    %p231 = scmp.eq.s32.totalorder %s22, 0
    %p232 = por %p230, %p231
    %p233 = scmp.ne.s32.totalorder %s221, %s222
    %p234 = scmp.eq.s32.totalorder %s23, 1
    %p235 = por %p233, %p234
    %p237 = scmp.ne.s32.totalorder %s222, %s236
    %p238 = scmp.eq.s32.totalorder %s23, 0
    %p239 = por %p237, %p238
    %s241 = sadd.s32 %s240, 1
    %p244 = scmp.eq.s32.totalorder %s17, 1
    %p245 = scmp.ne.s32.totalorder %s240, %s242
    %p246 = scmp.eq.s32.totalorder %s17, 0
    %p247 = por %p245, %p246
    %p248 = scmp.ne.s32.totalorder %s240, %s242
    %p249 = scmp.eq.s32.totalorder %s22, 1
    %p250 = por %p248, %p249
    %p251 = scmp.ne.s32.totalorder %s242, %s243
    %p252 = scmp.eq.s32.totalorder %s22, 0
    %p253 = por %p251, %p252
    %p254 = scmp.ne.s32.totalorder %s242, %s243
    %p255 = scmp.eq.s32.totalorder %s23, 1
    %p256 = por %p254, %p255
    %p258 = scmp.ne.s32.totalorder %s243, %s257
    %p259 = scmp.eq.s32.totalorder %s23, 0
    %p260 = por %p258, %p259
    %s261 = ssub.s32 %s17, %s24
    %p262 = scmp.eq.s32.totalorder %s261, 0
    %s264 = sadd.s32 %s263, 1
    %s265 = scalar_select %p262, %s263, %s264
    %p268 = pneg %p262
    %p269 = scmp.eq.s32.totalorder %s17, 1
    %p270 = por %p268, %p269
    %p271 = scmp.ne.s32.totalorder %s263, %s266
    %p272 = scmp.eq.s32.totalorder %s17, 0
    %p273 = por %p271, %p272
    %p274 = scmp.ne.s32.totalorder %s263, %s266
    %p275 = scmp.eq.s32.totalorder %s22, 1
    %p276 = por %p274, %p275
    %p277 = scmp.ne.s32.totalorder %s266, %s267
    %p278 = scmp.eq.s32.totalorder %s22, 0
    %p279 = por %p277, %p278
    %p280 = scmp.ne.s32.totalorder %s266, %s267
    %p281 = scmp.eq.s32.totalorder %s23, 1
    %p282 = por %p280, %p281
    %p284 = scmp.ne.s32.totalorder %s267, %s283
    %p285 = scmp.eq.s32.totalorder %s23, 0
    %p286 = por %p284, %p285
    %p287 = scmp.le.s32.totalorder 1, %s17
    %p288 = scmp.lt.s32.totalorder %s17, 3
    %p289 = pnand %p287, %p288
    %p290 = pneg %p289
    // Predicated region
    $region9: #{ann_forward.1} parent=5 // pred_check
      _
    $region10: #{ann_forward.1} parent=5 // pred_check_branch
      %292 = sbr.rel (%p289) target = $region12
    $region11: #{ann_forward.1} parent=5 // pred_region
      %s293 = ssub.s32 %s17, 1
      // Predicated region
      $region13: #{ann_forward.1} parent=11 // pred_check
        %p294 = pneg %p64
      $region14: #{ann_forward.1} parent=11 // pred_check_branch
        %296 = sbr.rel (%p294) target = $region16
      $region15: #{ann_forward.1} parent=11 // pred_region
        _
      $region16: #{ann_forward.1} parent=11 // pred_fallthru
        _
      // Predicated region
      $region17: #{ann_forward.1} parent=11 // pred_check
        %p297 = pneg %p85
      $region18: #{ann_forward.1} parent=11 // pred_check_branch
        %299 = sbr.rel (%p297) target = $region20
      $region19: #{ann_forward.1} parent=11 // pred_region
        _
      $region20: #{ann_forward.1} parent=11 // pred_fallthru
        _
      // Predicated region
      $region21: #{ann_forward.1} parent=11 // pred_check
        %p300 = pneg %p106
      $region22: #{ann_forward.1} parent=11 // pred_check_branch
        %302 = sbr.rel (%p300) target = $region24
      $region23: #{ann_forward.1} parent=11 // pred_region
        _
      $region24: #{ann_forward.1} parent=11 // pred_fallthru
        _
      // Predicated region
      $region25: #{ann_forward.1} parent=11 // pred_check
        %p303 = pneg %p127
      $region26: #{ann_forward.1} parent=11 // pred_check_branch
        %305 = sbr.rel (%p303) target = $region28
      $region27: #{ann_forward.1} parent=11 // pred_region
        _
      $region28: #{ann_forward.1} parent=11 // pred_fallthru
        _
      // Predicated region
      $region29: #{ann_forward.1} parent=11 // pred_check
        %p306 = pneg %p148
      $region30: #{ann_forward.1} parent=11 // pred_check_branch
        %308 = sbr.rel (%p306) target = $region32
      $region31: #{ann_forward.1} parent=11 // pred_region
        _
      $region32: #{ann_forward.1} parent=11 // pred_fallthru
        _
      // Predicated region
      $region33: #{ann_forward.1} parent=11 // pred_check
        %p309 = pneg %p169
      $region34: #{ann_forward.1} parent=11 // pred_check_branch
        %311 = sbr.rel (%p309) target = $region36
      $region35: #{ann_forward.1} parent=11 // pred_region
        _
      $region36: #{ann_forward.1} parent=11 // pred_fallthru
        _
      // Predicated region
      $region37: #{ann_forward.1} parent=11 // pred_check
        %p312 = pneg %p190
      $region38: #{ann_forward.1} parent=11 // pred_check_branch
        %314 = sbr.rel (%p312) target = $region40
      $region39: #{ann_forward.1} parent=11 // pred_region
        _
      $region40: #{ann_forward.1} parent=11 // pred_fallthru
        _
      // Predicated region
      $region41: #{ann_forward.1} parent=11 // pred_check
        %p315 = pneg %p211
      $region42: #{ann_forward.1} parent=11 // pred_check_branch
        %317 = sbr.rel (%p315) target = $region44
      $region43: #{ann_forward.1} parent=11 // pred_region
        _
      $region44: #{ann_forward.1} parent=11 // pred_fallthru
        _
      // Predicated region
      $region45: #{ann_forward.1} parent=11 // pred_check
        %p318 = pneg %p232
      $region46: #{ann_forward.1} parent=11 // pred_check_branch
        %320 = sbr.rel (%p318) target = $region48
      $region47: #{ann_forward.1} parent=11 // pred_region
        _
      $region48: #{ann_forward.1} parent=11 // pred_fallthru
        _
      // Predicated region
      $region49: #{ann_forward.1} parent=11 // pred_check
        %p321 = pneg %p253
      $region50: #{ann_forward.1} parent=11 // pred_check_branch
        %323 = sbr.rel (%p321) target = $region52
      $region51: #{ann_forward.1} parent=11 // pred_region
        _
      $region52: #{ann_forward.1} parent=11 // pred_fallthru
        _
    $region12: #{ann_forward.1} parent=5 // pred_fallthru
      _
    %p324 = scmp.lt.s32.totalorder %s17, 2
    // Predicated region
    $region53: #{ann_forward.1} parent=5 // pred_check
      %p325 = pneg %p324
    $region54: #{ann_forward.1} parent=5 // pred_check_branch
      %327 = sbr.rel (%p325) target = $region56
    $region55: #{ann_forward.1} parent=5 // pred_region
      // Predicated region
      $region57: #{ann_forward.1} parent=55 // pred_check
        %p328 = pneg %p37
      $region58: #{ann_forward.1} parent=55 // pred_check_branch
        %330 = sbr.rel (%p328) target = $region60
      $region59: #{ann_forward.1} parent=55 // pred_region
        %s331 = smul.u32 8, %s17
        %p332 = scmp.lt.s32.totalorder %s331, 15
        %s333 = scalar_select %p332, %s331, 15
        %s334 = smul.addr %s333, 8
        %s335 = scalar_lea.vmem %s0, %s334
        %s336 = smul.u32 8, %s17
      $region60: #{ann_forward.1} parent=55 // pred_fallthru
        _
    $region56: #{ann_forward.1} parent=5 // pred_fallthru
      _
    %p337 = scmp.le.s32.totalorder 1, %s17
    %p338 = scmp.lt.s32.totalorder %s17, 3
    %p339 = pnand %p337, %p338
    %p340 = pneg %p339
    // Predicated region
    $region61: #{ann_forward.1} parent=5 // pred_check
      _
    $region62: #{ann_forward.1} parent=5 // pred_check_branch
      %342 = sbr.rel (%p339) target = $region64
    $region63: #{ann_forward.1} parent=5 // pred_region
      %s343 = ssub.s32 %s17, 1
      %s344 = smul.u32 8, %s22
      %p345 = scmp.lt.s32.totalorder %s344, 15
      %s346 = scalar_select %p345, %s344, 15
      %s347 = smul.addr %s346, 8
      %s348 = scalar_lea.vmem %s0, %s347
      %p349 = pneg %p43
      %p350 = pneg %p40
      %p351 = pneg %p64
      %p352 = pneg %p61
      %p353 = pneg %p85
      %p354 = pneg %p82
      %p355 = pneg %p106
      %p356 = pneg %p103
      %p357 = pneg %p127
      %p358 = pneg %p124
      %p359 = pneg %p148
      %p360 = pneg %p145
      %p361 = pneg %p169
      %p362 = pneg %p166
      %p363 = pneg %p190
      %p364 = pneg %p187
      %p365 = pneg %p211
      %p366 = pneg %p208
      %p367 = pneg %p232
      %p368 = pneg %p229
      %p369 = pneg %p253
      %p370 = pneg %p250
      %p371 = pneg %p279
      %p372 = pneg %p276
      %s373 = smul.u32 8, %s22
      %p374 = scmp.lt.s32.totalorder %s373, 15
      %s375 = scalar_select %p374, %s373, 15
      %s376 = smul.addr %s375, 8
      %s377 = scalar_lea.vmem %s11, %s376
      %s378 = smul.u32 8, %s22
      %p379 = scmp.lt.s32.totalorder %s378, 15
      %s380 = scalar_select %p379, %s378, 15
      %s381 = smul.addr %s380, 8
      %s382 = scalar_lea.vmem %s0, %s381
      %s383 = smul.u32 8, %s22
      %s384 = smul.u32 8, %s22
      %p385 = scmp.lt.s32.totalorder %s384, 15
      %s386 = scalar_select %p385, %s384, 15
      %s387 = smul.addr %s386, 8
      %s388 = scalar_lea.vmem %s11, %s387
      %s389 = smul.u32 8, %s22
      %v391 = vld [vmem:[%s382] sm:$0xff]
      %v392 = vld [vmem:[%s382 + $0x8] sm:$0xff]
      %v393 = vld [vmem:[%s382 + $0x10] sm:$0xff]
      %v394 = vld [vmem:[%s382 + $0x18] sm:$0xff]
      %v395 = vld [vmem:[%s382 + $0x20] sm:$0xff]
      %v396 = vld [vmem:[%s382 + $0x28] sm:$0xff]
      %v397 = vld [vmem:[%s382 + $0x30] sm:$0xff]
      %v398 = vld [vmem:[%s382 + $0x38] sm:$0xff]
      %v399 = vpack.c.bf16 %v392, %v391
      %v400 = vpack.c.bf16 %v394, %v393
      %v401 = vpack.c.bf16 %v396, %v395
      %v402 = vpack.c.bf16 %v398, %v397
      %v403 = vld [vmem:[%s1] sm:$0xf]
      %v404 = vld [vmem:[%s1 + $0x4] sm:$0xf]
      %v405 = vld [vmem:[%s1 + $0x8] sm:$0xf]
      %v406 = vld [vmem:[%s1 + $0xc] sm:$0xf]
      %v407 = vld [vmem:[%s1 + $0x10] sm:$0xf]
      %v408 = vld [vmem:[%s1 + $0x14] sm:$0xf]
      %v409 = vld [vmem:[%s1 + $0x18] sm:$0xf]
      %v410 = vld [vmem:[%s1 + $0x1c] sm:$0xf]
      %v411 = vld [vmem:[%s2] sm:$0x1]
      %v413 = vperm.slane %v411, 0
      %v423 = vunpack.c.l.b16 %v403
      %v424 = vunpack.c.l.b16 %v404
      %v425 = vunpack.c.l.b16 %v405
      %v426 = vunpack.c.l.b16 %v406
      %v427 = vunpack.c.l.b16 %v407
      %v428 = vunpack.c.l.b16 %v408
      %v429 = vunpack.c.l.b16 %v409
      %v430 = vunpack.c.l.b16 %v410
      %v431 = vpack.c.b16 %v424, %v423
      %v432 = vpack.c.b16 %v426, %v425
      %v433 = vpack.c.b16 %v428, %v427
      %v434 = vpack.c.b16 %v430, %v429
      %vm439 = vcmask 523264
      %v441 = vsel %vm439, %v399, 0
      %v444 = vsel %vm439, %v400, 0
      %v447 = vsel %vm439, %v401, 0
      %v450 = vsel %vm439, %v402, 0
      %452 = vmatpush.bf16.msra.mxu0 0
      %453 = vmatpush.bf16.msra.mxu0 0
      %454 = vmatpush.bf16.msra.mxu0 0
      %455 = vmatpush.bf16.msra.mxu0 0
      %456 = vmatpush.bf16.msra.mxu0 %v434
      %457 = vmatpush.bf16.msra.mxu0 %v433
      %458 = vmatpush.bf16.msra.mxu0 %v432
      %459 = vmatpush.bf16.msra.mxu0 %v431
      %460 = vmatmul.bf16.gmra.mxu0 %v441
      %v461 = vpop.f32.mrf.mxu0
      %v462 = vadd.f32 %v413, %v461
      %v463 = vpop.f32.mrf.mxu0
      %v464 = vadd.f32 %v413, %v463
      %465 = vmatmul.bf16.gmra.mxu0 %v444
      %v466 = vpop.f32.mrf.mxu0
      %v467 = vadd.f32 %v413, %v466
      %v468 = vpop.f32.mrf.mxu0
      %v469 = vadd.f32 %v413, %v468
      %470 = vmatmul.bf16.gmra.mxu0 %v447
      %v471 = vpop.f32.mrf.mxu0
      %v472 = vadd.f32 %v413, %v471
      %v473 = vpop.f32.mrf.mxu0
      %v474 = vadd.f32 %v413, %v473
      %475 = vmatmul.bf16.gmra.mxu0 %v450
      %v476 = vpop.f32.mrf.mxu0
      %v477 = vadd.f32 %v413, %v476
      %v478 = vpop.f32.mrf.mxu0
      %v479 = vadd.f32 %v413, %v478
      %480 = vdwg.mxu0
      %v481 = vand.u32 2147483647, %v462
      %vm482 = vcmp.le.f32.partialorder %v481, 0.7853982
      %vm483 = vcmp.lt.s32.totalorder %v462, 0
      %v484 = vand.u32 %v462, 2139095040
      %v485 = vshrl.u32 %v484, 23
      %v486 = vsub.s32 %v485, 127
      %v487 = vand.u32 2147483647, %v462
      %v488 = vand.u32 %v487, 8388607
      %v489 = vor.u32 %v488, 8388608
      %v490 = vsub.s32 0, %v489
      %v491 = vadd.s32 %v486, 1
      %vm492 = vcmp.gt.s32.totalorder %v491, 0
      %v493 = vsel %vm492, %v491, 0
      %v494 = vshrl.u32 %v493, 5
      %v495 = vand.u32 %v493, 31
      %v496 = vsub.s32 32, %v495
      %v497 = vshrl.u32 683565275, %v496
      %v498 = vshll.u32 683565275, %v495
      %v499 = vshrl.u32 2475754826, %v496
      %v500 = vor.u32 %v498, %v499
      %v501 = vshll.u32 2475754826, %v495
      %v502 = vshrl.u32 2131351028, %v496
      %v503 = vor.u32 %v501, %v502
      %v504 = vshll.u32 2131351028, %v495
      %v505 = vshrl.u32 2102212464, %v496
      %v506 = vor.u32 %v504, %v505
      %v507 = vshll.u32 2102212464, %v495
      %v508 = vshrl.u32 920167782, %v496
      %v509 = vor.u32 %v507, %v508
      %v510 = vshll.u32 920167782, %v495
      %v511 = vshrl.u32 1326507024, %v496
      %v512 = vor.u32 %v510, %v511
      %vm513 = vcmp.lt.s32.totalorder %v494, 1
      %vm514 = vcmp.lt.s32.totalorder %v494, 2
      %vm515 = vcmp.lt.s32.totalorder %v494, 3
      %vm516 = vcmp.lt.s32.totalorder %v494, 4
      %v517 = vsel %vm513, %v497, %v500
      %v518 = vsel %vm516, %v506, 2102212464
      %v519 = vsel %vm515, %v503, %v518
      %v520 = vsel %vm514, %v517, %v519
      %v521 = vsel %vm513, %v500, %v503
      %v522 = vsel %vm516, %v509, 920167782
      %v523 = vsel %vm515, %v506, %v522
      %v524 = vsel %vm514, %v521, %v523
      %v525 = vsel %vm513, %v503, %v506
      %v526 = vsel %vm516, %v512, 1326507024
      %v527 = vsel %vm515, %v509, %v526
      %v528 = vsel %vm514, %v525, %v527
      %v529 = vshll.u32 %v489, 8
      %v530 = vand.u32 %v529, 65535
      %v531 = vshrl.u32 %v529, 16
      %v532 = vand.u32 %v528, 65535
      %v533 = vshrl.u32 %v528, 16
      %v534 = vmul.u32 %v530, %v532
      %v535 = vmul.u32 %v530, %v533
      %v536 = vmul.u32 %v531, %v532
      %v537 = vmul.u32 %v531, %v533
      %v538 = vshll.u32 %v535, 16
      %v539 = vshrl.u32 %v535, 16
      %v540 = vshll.u32 %v536, 16
      %v541 = vshrl.u32 %v536, 16
      %vm542 = vc.u32 %v534, %v538
      %v543 = vsel %vm542, 1, 0
      %v544 = vadd.s32 %v534, %v538
      %v545 = vadd.s32 %v537, %v543
      %vm546 = vc.u32 %v544, %v540
      %v547 = vsel %vm546, 1, 0
      %v548 = vadd.s32 %v544, %v540
      %v549 = vadd.s32 %v545, %v547
      %v550 = vadd.s32 %v549, %v539
      %v551 = vadd.s32 %v550, %v541
      %v552 = vand.u32 %v529, 65535
      %v553 = vshrl.u32 %v529, 16
      %v554 = vand.u32 %v524, 65535
      %v555 = vshrl.u32 %v524, 16
      %v556 = vmul.u32 %v552, %v554
      %v557 = vmul.u32 %v552, %v555
      %v558 = vmul.u32 %v553, %v554
      %v559 = vmul.u32 %v553, %v555
      %v560 = vshll.u32 %v557, 16
      %v561 = vshrl.u32 %v557, 16
      %v562 = vshll.u32 %v558, 16
      %v563 = vshrl.u32 %v558, 16
      %vm564 = vc.u32 %v556, %v560
      %v565 = vsel %vm564, 1, 0
      %v566 = vadd.s32 %v556, %v560
      %v567 = vadd.s32 %v559, %v565
      %vm568 = vc.u32 %v566, %v562
      %v569 = vsel %vm568, 1, 0
      %v570 = vadd.s32 %v566, %v562
      %v571 = vadd.s32 %v567, %v569
      %v572 = vadd.s32 %v571, %v561
      %v573 = vadd.s32 %v572, %v563
      %v574 = vmul.u32 %v529, %v520
      %v575 = vadd.s32 %v551, %v570
      %vm576 = vc.u32 %v551, %v570
      %v577 = vadd.s32 %v573, 1
      %v578 = vsel %vm576, %v577, %v573
      %v579 = vadd.s32 %v574, %v578
      %v580 = vadd.s32 %v579, 536870912
      %v581 = vshrl.u32 %v580, 30
      %v582 = vshll.u32 %v581, 30
      %v583 = vsub.s32 %v579, %v582
      %vm584 = vcmp.lt.s32.totalorder %v583, 0
      %v585 = vsub.s32 0, %v583
      %v586 = vsel %vm584, %v585, %v583
      %v587 = vclz %v586
      %v588 = vsub.s32 %v587, 2
      %vm589 = vcmp.gt.s32.totalorder 0, %v588
      %v590 = vsel %vm589, 0, %v588
      %v591 = vsub.s32 32, %v590
      %v592 = vshll.u32 %v583, %v590
      %v593 = vshrl.u32 %v575, %v591
      %v594 = vor.u32 %v592, %v593
      %v595 = vsub.s32 4294967266, %v590
      %v596 = vadd.s32 %v595, 127
      %v597 = vshll.u32 %v596, 23
      %v598 = vor.u32 4788187, %v597
      %v599 = vand.u32 2147483647, %v598
      %v601 = vcvt.s32.f32 %v594
      %v602 = vmul.f32 %v601, %v599
      %v603 = vxor.u32 %v602, 2147483648
      %v604 = vsel %vm483, %v603, %v602
      %v605 = vsub.s32 4, %v581
      %v606 = vsel %vm483, %v605, %v581
      %v607 = vsel %vm482, %v462, %v604
      %v608 = vsel %vm482, 0, %v606
      %v609 = vmul.f32 %v607, %v607
      %v610 = vmul.f32 %v609, -0.001358992
      %v611 = vadd.f32 %v610, 0.041655596
      %v612 = vmul.f32 %v609, %v611
      %v613 = vadd.f32 %v612, -0.4999988
      %v614 = vmul.f32 %v609, %v613
      %v615 = vadd.f32 1.0, %v614
      %v616 = vmul.f32 %v607, %v607
      %v617 = vmul.f32 %v616, -0.00019511016
      %v618 = vadd.f32 %v617, 0.008332121
      %v619 = vmul.f32 %v616, %v618
      %v620 = vadd.f32 %v619, -0.16666654
      %v621 = vmul.f32 %v616, %v620
      %v622 = vadd.f32 %v621, 1.0
      %v623 = vmul.f32 %v622, %v607
      %vm624 = vweird.f32 %v462
      %v625 = vadd.s32 %v608, 3
      %v626 = vand.u32 %v625, 3
      %vm627 = vcmp.lt.s32.totalorder %v626, 2
      %vm628 = vcmp.eq.s32.totalorder %v626, 0
      %v629 = vxor.u32 %v623, 2147483648
      %v630 = vsel %vm628, %v615, %v629
      %vm631 = vcmp.eq.s32.totalorder %v626, 2
      %v632 = vxor.u32 %v615, 2147483648
      %v633 = vsel %vm631, %v632, %v623
      %v634 = vsel %vm627, %v630, %v633
      %v635 = vsel %vm624, nan, %v634
      %v636 = vand.u32 2147483647, %v464
      %vm637 = vcmp.le.f32.partialorder %v636, 0.7853982
      %vm638 = vcmp.lt.s32.totalorder %v464, 0
      %v639 = vand.u32 %v464, 2139095040
      %v640 = vshrl.u32 %v639, 23
      %v641 = vsub.s32 %v640, 127
      %v642 = vand.u32 2147483647, %v464
      %v643 = vand.u32 %v642, 8388607
      %v644 = vor.u32 %v643, 8388608
      %v645 = vsub.s32 0, %v644
      %v646 = vadd.s32 %v641, 1
      %vm647 = vcmp.gt.s32.totalorder %v646, 0
      %v648 = vsel %vm647, %v646, 0
      %v649 = vshrl.u32 %v648, 5
      %v650 = vand.u32 %v648, 31
      %v651 = vsub.s32 32, %v650
      %v652 = vshrl.u32 683565275, %v651
      %v653 = vshll.u32 683565275, %v650
      %v654 = vshrl.u32 2475754826, %v651
      %v655 = vor.u32 %v653, %v654
      %v656 = vshll.u32 2475754826, %v650
      %v657 = vshrl.u32 2131351028, %v651
      %v658 = vor.u32 %v656, %v657
      %v659 = vshll.u32 2131351028, %v650
      %v660 = vshrl.u32 2102212464, %v651
      %v661 = vor.u32 %v659, %v660
      %v662 = vshll.u32 2102212464, %v650
      %v663 = vshrl.u32 920167782, %v651
      %v664 = vor.u32 %v662, %v663
      %v665 = vshll.u32 920167782, %v650
      %v666 = vshrl.u32 1326507024, %v651
      %v667 = vor.u32 %v665, %v666
      %vm668 = vcmp.lt.s32.totalorder %v649, 1
      %vm669 = vcmp.lt.s32.totalorder %v649, 2
      %vm670 = vcmp.lt.s32.totalorder %v649, 3
      %vm671 = vcmp.lt.s32.totalorder %v649, 4
      %v672 = vsel %vm668, %v652, %v655
      %v673 = vsel %vm671, %v661, 2102212464
      %v674 = vsel %vm670, %v658, %v673
      %v675 = vsel %vm669, %v672, %v674
      %v676 = vsel %vm668, %v655, %v658
      %v677 = vsel %vm671, %v664, 920167782
      %v678 = vsel %vm670, %v661, %v677
      %v679 = vsel %vm669, %v676, %v678
      %v680 = vsel %vm668, %v658, %v661
      %v681 = vsel %vm671, %v667, 1326507024
      %v682 = vsel %vm670, %v664, %v681
      %v683 = vsel %vm669, %v680, %v682
      %v684 = vshll.u32 %v644, 8
      %v685 = vand.u32 %v684, 65535
      %v686 = vshrl.u32 %v684, 16
      %v687 = vand.u32 %v683, 65535
      %v688 = vshrl.u32 %v683, 16
      %v689 = vmul.u32 %v685, %v687
      %v690 = vmul.u32 %v685, %v688
      %v691 = vmul.u32 %v686, %v687
      %v692 = vmul.u32 %v686, %v688
      %v693 = vshll.u32 %v690, 16
      %v694 = vshrl.u32 %v690, 16
      %v695 = vshll.u32 %v691, 16
      %v696 = vshrl.u32 %v691, 16
      %vm697 = vc.u32 %v689, %v693
      %v698 = vsel %vm697, 1, 0
      %v699 = vadd.s32 %v689, %v693
      %v700 = vadd.s32 %v692, %v698
      %vm701 = vc.u32 %v699, %v695
      %v702 = vsel %vm701, 1, 0
      %v703 = vadd.s32 %v699, %v695
      %v704 = vadd.s32 %v700, %v702
      %v705 = vadd.s32 %v704, %v694
      %v706 = vadd.s32 %v705, %v696
      %v707 = vand.u32 %v684, 65535
      %v708 = vshrl.u32 %v684, 16
      %v709 = vand.u32 %v679, 65535
      %v710 = vshrl.u32 %v679, 16
      %v711 = vmul.u32 %v707, %v709
      %v712 = vmul.u32 %v707, %v710
      %v713 = vmul.u32 %v708, %v709
      %v714 = vmul.u32 %v708, %v710
      %v715 = vshll.u32 %v712, 16
      %v716 = vshrl.u32 %v712, 16
      %v717 = vshll.u32 %v713, 16
      %v718 = vshrl.u32 %v713, 16
      %vm719 = vc.u32 %v711, %v715
      %v720 = vsel %vm719, 1, 0
      %v721 = vadd.s32 %v711, %v715
      %v722 = vadd.s32 %v714, %v720
      %vm723 = vc.u32 %v721, %v717
      %v724 = vsel %vm723, 1, 0
      %v725 = vadd.s32 %v721, %v717
      %v726 = vadd.s32 %v722, %v724
      %v727 = vadd.s32 %v726, %v716
      %v728 = vadd.s32 %v727, %v718
      %v729 = vmul.u32 %v684, %v675
      %v730 = vadd.s32 %v706, %v725
      %vm731 = vc.u32 %v706, %v725
      %v732 = vadd.s32 %v728, 1
      %v733 = vsel %vm731, %v732, %v728
      %v734 = vadd.s32 %v729, %v733
      %v735 = vadd.s32 %v734, 536870912
      %v736 = vshrl.u32 %v735, 30
      %v737 = vshll.u32 %v736, 30
      %v738 = vsub.s32 %v734, %v737
      %vm739 = vcmp.lt.s32.totalorder %v738, 0
      %v740 = vsub.s32 0, %v738
      %v741 = vsel %vm739, %v740, %v738
      %v742 = vclz %v741
      %v743 = vsub.s32 %v742, 2
      %vm744 = vcmp.gt.s32.totalorder 0, %v743
      %v745 = vsel %vm744, 0, %v743
      %v746 = vsub.s32 32, %v745
      %v747 = vshll.u32 %v738, %v745
      %v748 = vshrl.u32 %v730, %v746
      %v749 = vor.u32 %v747, %v748
      %v750 = vsub.s32 4294967266, %v745
      %v751 = vadd.s32 %v750, 127
      %v752 = vshll.u32 %v751, 23
      %v753 = vor.u32 4788187, %v752
      %v754 = vand.u32 2147483647, %v753
      %v756 = vcvt.s32.f32 %v749
      %v757 = vmul.f32 %v756, %v754
      %v758 = vxor.u32 %v757, 2147483648
      %v759 = vsel %vm638, %v758, %v757
      %v760 = vsub.s32 4, %v736
      %v761 = vsel %vm638, %v760, %v736
      %v762 = vsel %vm637, %v464, %v759
      %v763 = vsel %vm637, 0, %v761
      %v764 = vmul.f32 %v762, %v762
      %v765 = vmul.f32 %v764, -0.001358992
      %v766 = vadd.f32 %v765, 0.041655596
      %v767 = vmul.f32 %v764, %v766
      %v768 = vadd.f32 %v767, -0.4999988
      %v769 = vmul.f32 %v764, %v768
      %v770 = vadd.f32 1.0, %v769
      %v771 = vmul.f32 %v762, %v762
      %v772 = vmul.f32 %v771, -0.00019511016
      %v773 = vadd.f32 %v772, 0.008332121
      %v774 = vmul.f32 %v771, %v773
      %v775 = vadd.f32 %v774, -0.16666654
      %v776 = vmul.f32 %v771, %v775
      %v777 = vadd.f32 %v776, 1.0
      %v778 = vmul.f32 %v777, %v762
      %vm779 = vweird.f32 %v464
      %v780 = vadd.s32 %v763, 3
      %v781 = vand.u32 %v780, 3
      %vm782 = vcmp.lt.s32.totalorder %v781, 2
      %vm783 = vcmp.eq.s32.totalorder %v781, 0
      %v784 = vxor.u32 %v778, 2147483648
      %v785 = vsel %vm783, %v770, %v784
      %vm786 = vcmp.eq.s32.totalorder %v781, 2
      %v787 = vxor.u32 %v770, 2147483648
      %v788 = vsel %vm786, %v787, %v778
      %v789 = vsel %vm782, %v785, %v788
      %v790 = vsel %vm779, nan, %v789
      %v791 = vand.u32 2147483647, %v467
      %vm792 = vcmp.le.f32.partialorder %v791, 0.7853982
      %vm793 = vcmp.lt.s32.totalorder %v467, 0
      %v794 = vand.u32 %v467, 2139095040
      %v795 = vshrl.u32 %v794, 23
      %v796 = vsub.s32 %v795, 127
      %v797 = vand.u32 2147483647, %v467
      %v798 = vand.u32 %v797, 8388607
      %v799 = vor.u32 %v798, 8388608
      %v800 = vsub.s32 0, %v799
      %v801 = vadd.s32 %v796, 1
      %vm802 = vcmp.gt.s32.totalorder %v801, 0
      %v803 = vsel %vm802, %v801, 0
      %v804 = vshrl.u32 %v803, 5
      %v805 = vand.u32 %v803, 31
      %v806 = vsub.s32 32, %v805
      %v807 = vshrl.u32 683565275, %v806
      %v808 = vshll.u32 683565275, %v805
      %v809 = vshrl.u32 2475754826, %v806
      %v810 = vor.u32 %v808, %v809
      %v811 = vshll.u32 2475754826, %v805
      %v812 = vshrl.u32 2131351028, %v806
      %v813 = vor.u32 %v811, %v812
      %v814 = vshll.u32 2131351028, %v805
      %v815 = vshrl.u32 2102212464, %v806
      %v816 = vor.u32 %v814, %v815
      %v817 = vshll.u32 2102212464, %v805
      %v818 = vshrl.u32 920167782, %v806
      %v819 = vor.u32 %v817, %v818
      %v820 = vshll.u32 920167782, %v805
      %v821 = vshrl.u32 1326507024, %v806
      %v822 = vor.u32 %v820, %v821
      %vm823 = vcmp.lt.s32.totalorder %v804, 1
      %vm824 = vcmp.lt.s32.totalorder %v804, 2
      %vm825 = vcmp.lt.s32.totalorder %v804, 3
      %vm826 = vcmp.lt.s32.totalorder %v804, 4
      %v827 = vsel %vm823, %v807, %v810
      %v828 = vsel %vm826, %v816, 2102212464
      %v829 = vsel %vm825, %v813, %v828
      %v830 = vsel %vm824, %v827, %v829
      %v831 = vsel %vm823, %v810, %v813
      %v832 = vsel %vm826, %v819, 920167782
      %v833 = vsel %vm825, %v816, %v832
      %v834 = vsel %vm824, %v831, %v833
      %v835 = vsel %vm823, %v813, %v816
      %v836 = vsel %vm826, %v822, 1326507024
      %v837 = vsel %vm825, %v819, %v836
      %v838 = vsel %vm824, %v835, %v837
      %v839 = vshll.u32 %v799, 8
      %v840 = vand.u32 %v839, 65535
      %v841 = vshrl.u32 %v839, 16
      %v842 = vand.u32 %v838, 65535
      %v843 = vshrl.u32 %v838, 16
      %v844 = vmul.u32 %v840, %v842
      %v845 = vmul.u32 %v840, %v843
      %v846 = vmul.u32 %v841, %v842
      %v847 = vmul.u32 %v841, %v843
      %v848 = vshll.u32 %v845, 16
      %v849 = vshrl.u32 %v845, 16
      %v850 = vshll.u32 %v846, 16
      %v851 = vshrl.u32 %v846, 16
      %vm852 = vc.u32 %v844, %v848
      %v853 = vsel %vm852, 1, 0
      %v854 = vadd.s32 %v844, %v848
      %v855 = vadd.s32 %v847, %v853
      %vm856 = vc.u32 %v854, %v850
      %v857 = vsel %vm856, 1, 0
      %v858 = vadd.s32 %v854, %v850
      %v859 = vadd.s32 %v855, %v857
      %v860 = vadd.s32 %v859, %v849
      %v861 = vadd.s32 %v860, %v851
      %v862 = vand.u32 %v839, 65535
      %v863 = vshrl.u32 %v839, 16
      %v864 = vand.u32 %v834, 65535
      %v865 = vshrl.u32 %v834, 16
      %v866 = vmul.u32 %v862, %v864
      %v867 = vmul.u32 %v862, %v865
      %v868 = vmul.u32 %v863, %v864
      %v869 = vmul.u32 %v863, %v865
      %v870 = vshll.u32 %v867, 16
      %v871 = vshrl.u32 %v867, 16
      %v872 = vshll.u32 %v868, 16
      %v873 = vshrl.u32 %v868, 16
      %vm874 = vc.u32 %v866, %v870
      %v875 = vsel %vm874, 1, 0
      %v876 = vadd.s32 %v866, %v870
      %v877 = vadd.s32 %v869, %v875
      %vm878 = vc.u32 %v876, %v872
      %v879 = vsel %vm878, 1, 0
      %v880 = vadd.s32 %v876, %v872
      %v881 = vadd.s32 %v877, %v879
      %v882 = vadd.s32 %v881, %v871
      %v883 = vadd.s32 %v882, %v873
      %v884 = vmul.u32 %v839, %v830
      %v885 = vadd.s32 %v861, %v880
      %vm886 = vc.u32 %v861, %v880
      %v887 = vadd.s32 %v883, 1
      %v888 = vsel %vm886, %v887, %v883
      %v889 = vadd.s32 %v884, %v888
      %v890 = vadd.s32 %v889, 536870912
      %v891 = vshrl.u32 %v890, 30
      %v892 = vshll.u32 %v891, 30
      %v893 = vsub.s32 %v889, %v892
      %vm894 = vcmp.lt.s32.totalorder %v893, 0
      %v895 = vsub.s32 0, %v893
      %v896 = vsel %vm894, %v895, %v893
      %v897 = vclz %v896
      %v898 = vsub.s32 %v897, 2
      %vm899 = vcmp.gt.s32.totalorder 0, %v898
      %v900 = vsel %vm899, 0, %v898
      %v901 = vsub.s32 32, %v900
      %v902 = vshll.u32 %v893, %v900
      %v903 = vshrl.u32 %v885, %v901
      %v904 = vor.u32 %v902, %v903
      %v905 = vsub.s32 4294967266, %v900
      %v906 = vadd.s32 %v905, 127
      %v907 = vshll.u32 %v906, 23
      %v908 = vor.u32 4788187, %v907
      %v909 = vand.u32 2147483647, %v908
      %v911 = vcvt.s32.f32 %v904
      %v912 = vmul.f32 %v911, %v909
      %v913 = vxor.u32 %v912, 2147483648
      %v914 = vsel %vm793, %v913, %v912
      %v915 = vsub.s32 4, %v891
      %v916 = vsel %vm793, %v915, %v891
      %v917 = vsel %vm792, %v467, %v914
      %v918 = vsel %vm792, 0, %v916
      %v919 = vmul.f32 %v917, %v917
      %v920 = vmul.f32 %v919, -0.001358992
      %v921 = vadd.f32 %v920, 0.041655596
      %v922 = vmul.f32 %v919, %v921
      %v923 = vadd.f32 %v922, -0.4999988
      %v924 = vmul.f32 %v919, %v923
      %v925 = vadd.f32 1.0, %v924
      %v926 = vmul.f32 %v917, %v917
      %v927 = vmul.f32 %v926, -0.00019511016
      %v928 = vadd.f32 %v927, 0.008332121
      %v929 = vmul.f32 %v926, %v928
      %v930 = vadd.f32 %v929, -0.16666654
      %v931 = vmul.f32 %v926, %v930
      %v932 = vadd.f32 %v931, 1.0
      %v933 = vmul.f32 %v932, %v917
      %vm934 = vweird.f32 %v467
      %v935 = vadd.s32 %v918, 3
      %v936 = vand.u32 %v935, 3
      %vm937 = vcmp.lt.s32.totalorder %v936, 2
      %vm938 = vcmp.eq.s32.totalorder %v936, 0
      %v939 = vxor.u32 %v933, 2147483648
      %v940 = vsel %vm938, %v925, %v939
      %vm941 = vcmp.eq.s32.totalorder %v936, 2
      %v942 = vxor.u32 %v925, 2147483648
      %v943 = vsel %vm941, %v942, %v933
      %v944 = vsel %vm937, %v940, %v943
      %v945 = vsel %vm934, nan, %v944
      %v946 = vand.u32 2147483647, %v469
      %vm947 = vcmp.le.f32.partialorder %v946, 0.7853982
      %vm948 = vcmp.lt.s32.totalorder %v469, 0
      %v949 = vand.u32 %v469, 2139095040
      %v950 = vshrl.u32 %v949, 23
      %v951 = vsub.s32 %v950, 127
      %v952 = vand.u32 2147483647, %v469
      %v953 = vand.u32 %v952, 8388607
      %v954 = vor.u32 %v953, 8388608
      %v955 = vsub.s32 0, %v954
      %v956 = vadd.s32 %v951, 1
      %vm957 = vcmp.gt.s32.totalorder %v956, 0
      %v958 = vsel %vm957, %v956, 0
      %v959 = vshrl.u32 %v958, 5
      %v960 = vand.u32 %v958, 31
      %v961 = vsub.s32 32, %v960
      %v962 = vshrl.u32 683565275, %v961
      %v963 = vshll.u32 683565275, %v960
      %v964 = vshrl.u32 2475754826, %v961
      %v965 = vor.u32 %v963, %v964
      %v966 = vshll.u32 2475754826, %v960
      %v967 = vshrl.u32 2131351028, %v961
      %v968 = vor.u32 %v966, %v967
      %v969 = vshll.u32 2131351028, %v960
      %v970 = vshrl.u32 2102212464, %v961
      %v971 = vor.u32 %v969, %v970
      %v972 = vshll.u32 2102212464, %v960
      %v973 = vshrl.u32 920167782, %v961
      %v974 = vor.u32 %v972, %v973
      %v975 = vshll.u32 920167782, %v960
      %v976 = vshrl.u32 1326507024, %v961
      %v977 = vor.u32 %v975, %v976
      %vm978 = vcmp.lt.s32.totalorder %v959, 1
      %vm979 = vcmp.lt.s32.totalorder %v959, 2
      %vm980 = vcmp.lt.s32.totalorder %v959, 3
      %vm981 = vcmp.lt.s32.totalorder %v959, 4
      %v982 = vsel %vm978, %v962, %v965
      %v983 = vsel %vm981, %v971, 2102212464
      %v984 = vsel %vm980, %v968, %v983
      %v985 = vsel %vm979, %v982, %v984
      %v986 = vsel %vm978, %v965, %v968
      %v987 = vsel %vm981, %v974, 920167782
      %v988 = vsel %vm980, %v971, %v987
      %v989 = vsel %vm979, %v986, %v988
      %v990 = vsel %vm978, %v968, %v971
      %v991 = vsel %vm981, %v977, 1326507024
      %v992 = vsel %vm980, %v974, %v991
      %v993 = vsel %vm979, %v990, %v992
      %v994 = vshll.u32 %v954, 8
      %v995 = vand.u32 %v994, 65535
      %v996 = vshrl.u32 %v994, 16
      %v997 = vand.u32 %v993, 65535
      %v998 = vshrl.u32 %v993, 16
      %v999 = vmul.u32 %v995, %v997
      %v1000 = vmul.u32 %v995, %v998
      %v1001 = vmul.u32 %v996, %v997
      %v1002 = vmul.u32 %v996, %v998
      %v1003 = vshll.u32 %v1000, 16
      %v1004 = vshrl.u32 %v1000, 16
      %v1005 = vshll.u32 %v1001, 16
      %v1006 = vshrl.u32 %v1001, 16
      %vm1007 = vc.u32 %v999, %v1003
      %v1008 = vsel %vm1007, 1, 0
      %v1009 = vadd.s32 %v999, %v1003
      %v1010 = vadd.s32 %v1002, %v1008
      %vm1011 = vc.u32 %v1009, %v1005
      %v1012 = vsel %vm1011, 1, 0
      %v1013 = vadd.s32 %v1009, %v1005
      %v1014 = vadd.s32 %v1010, %v1012
      %v1015 = vadd.s32 %v1014, %v1004
      %v1016 = vadd.s32 %v1015, %v1006
      %v1017 = vand.u32 %v994, 65535
      %v1018 = vshrl.u32 %v994, 16
      %v1019 = vand.u32 %v989, 65535
      %v1020 = vshrl.u32 %v989, 16
      %v1021 = vmul.u32 %v1017, %v1019
      %v1022 = vmul.u32 %v1017, %v1020
      %v1023 = vmul.u32 %v1018, %v1019
      %v1024 = vmul.u32 %v1018, %v1020
      %v1025 = vshll.u32 %v1022, 16
      %v1026 = vshrl.u32 %v1022, 16
      %v1027 = vshll.u32 %v1023, 16
      %v1028 = vshrl.u32 %v1023, 16
      %vm1029 = vc.u32 %v1021, %v1025
      %v1030 = vsel %vm1029, 1, 0
      %v1031 = vadd.s32 %v1021, %v1025
      %v1032 = vadd.s32 %v1024, %v1030
      %vm1033 = vc.u32 %v1031, %v1027
      %v1034 = vsel %vm1033, 1, 0
      %v1035 = vadd.s32 %v1031, %v1027
      %v1036 = vadd.s32 %v1032, %v1034
      %v1037 = vadd.s32 %v1036, %v1026
      %v1038 = vadd.s32 %v1037, %v1028
      %v1039 = vmul.u32 %v994, %v985
      %v1040 = vadd.s32 %v1016, %v1035
      %vm1041 = vc.u32 %v1016, %v1035
      %v1042 = vadd.s32 %v1038, 1
      %v1043 = vsel %vm1041, %v1042, %v1038
      %v1044 = vadd.s32 %v1039, %v1043
      %v1045 = vadd.s32 %v1044, 536870912
      %v1046 = vshrl.u32 %v1045, 30
      %v1047 = vshll.u32 %v1046, 30
      %v1048 = vsub.s32 %v1044, %v1047
      %vm1049 = vcmp.lt.s32.totalorder %v1048, 0
      %v1050 = vsub.s32 0, %v1048
      %v1051 = vsel %vm1049, %v1050, %v1048
      %v1052 = vclz %v1051
      %v1053 = vsub.s32 %v1052, 2
      %vm1054 = vcmp.gt.s32.totalorder 0, %v1053
      %v1055 = vsel %vm1054, 0, %v1053
      %v1056 = vsub.s32 32, %v1055
      %v1057 = vshll.u32 %v1048, %v1055
      %v1058 = vshrl.u32 %v1040, %v1056
      %v1059 = vor.u32 %v1057, %v1058
      %v1060 = vsub.s32 4294967266, %v1055
      %v1061 = vadd.s32 %v1060, 127
      %v1062 = vshll.u32 %v1061, 23
      %v1063 = vor.u32 4788187, %v1062
      %v1064 = vand.u32 2147483647, %v1063
      %v1066 = vcvt.s32.f32 %v1059
      %v1067 = vmul.f32 %v1066, %v1064
      %v1068 = vxor.u32 %v1067, 2147483648
      %v1069 = vsel %vm948, %v1068, %v1067
      %v1070 = vsub.s32 4, %v1046
      %v1071 = vsel %vm948, %v1070, %v1046
      %v1072 = vsel %vm947, %v469, %v1069
      %v1073 = vsel %vm947, 0, %v1071
      %v1074 = vmul.f32 %v1072, %v1072
      %v1075 = vmul.f32 %v1074, -0.001358992
      %v1076 = vadd.f32 %v1075, 0.041655596
      %v1077 = vmul.f32 %v1074, %v1076
      %v1078 = vadd.f32 %v1077, -0.4999988
      %v1079 = vmul.f32 %v1074, %v1078
      %v1080 = vadd.f32 1.0, %v1079
      %v1081 = vmul.f32 %v1072, %v1072
      %v1082 = vmul.f32 %v1081, -0.00019511016
      %v1083 = vadd.f32 %v1082, 0.008332121
      %v1084 = vmul.f32 %v1081, %v1083
      %v1085 = vadd.f32 %v1084, -0.16666654
      %v1086 = vmul.f32 %v1081, %v1085
      %v1087 = vadd.f32 %v1086, 1.0
      %v1088 = vmul.f32 %v1087, %v1072
      %vm1089 = vweird.f32 %v469
      %v1090 = vadd.s32 %v1073, 3
      %v1091 = vand.u32 %v1090, 3
      %vm1092 = vcmp.lt.s32.totalorder %v1091, 2
      %vm1093 = vcmp.eq.s32.totalorder %v1091, 0
      %v1094 = vxor.u32 %v1088, 2147483648
      %v1095 = vsel %vm1093, %v1080, %v1094
      %vm1096 = vcmp.eq.s32.totalorder %v1091, 2
      %v1097 = vxor.u32 %v1080, 2147483648
      %v1098 = vsel %vm1096, %v1097, %v1088
      %v1099 = vsel %vm1092, %v1095, %v1098
      %v1100 = vsel %vm1089, nan, %v1099
      %v1101 = vand.u32 2147483647, %v472
      %vm1102 = vcmp.le.f32.partialorder %v1101, 0.7853982
      %vm1103 = vcmp.lt.s32.totalorder %v472, 0
      %v1104 = vand.u32 %v472, 2139095040
      %v1105 = vshrl.u32 %v1104, 23
      %v1106 = vsub.s32 %v1105, 127
      %v1107 = vand.u32 2147483647, %v472
      %v1108 = vand.u32 %v1107, 8388607
      %v1109 = vor.u32 %v1108, 8388608
      %v1110 = vsub.s32 0, %v1109
      %v1111 = vadd.s32 %v1106, 1
      %vm1112 = vcmp.gt.s32.totalorder %v1111, 0
      %v1113 = vsel %vm1112, %v1111, 0
      %v1114 = vshrl.u32 %v1113, 5
      %v1115 = vand.u32 %v1113, 31
      %v1116 = vsub.s32 32, %v1115
      %v1117 = vshrl.u32 683565275, %v1116
      %v1118 = vshll.u32 683565275, %v1115
      %v1119 = vshrl.u32 2475754826, %v1116
      %v1120 = vor.u32 %v1118, %v1119
      %v1121 = vshll.u32 2475754826, %v1115
      %v1122 = vshrl.u32 2131351028, %v1116
      %v1123 = vor.u32 %v1121, %v1122
      %v1124 = vshll.u32 2131351028, %v1115
      %v1125 = vshrl.u32 2102212464, %v1116
      %v1126 = vor.u32 %v1124, %v1125
      %v1127 = vshll.u32 2102212464, %v1115
      %v1128 = vshrl.u32 920167782, %v1116
      %v1129 = vor.u32 %v1127, %v1128
      %v1130 = vshll.u32 920167782, %v1115
      %v1131 = vshrl.u32 1326507024, %v1116
      %v1132 = vor.u32 %v1130, %v1131
      %vm1133 = vcmp.lt.s32.totalorder %v1114, 1
      %vm1134 = vcmp.lt.s32.totalorder %v1114, 2
      %vm1135 = vcmp.lt.s32.totalorder %v1114, 3
      %vm1136 = vcmp.lt.s32.totalorder %v1114, 4
      %v1137 = vsel %vm1133, %v1117, %v1120
      %v1138 = vsel %vm1136, %v1126, 2102212464
      %v1139 = vsel %vm1135, %v1123, %v1138
      %v1140 = vsel %vm1134, %v1137, %v1139
      %v1141 = vsel %vm1133, %v1120, %v1123
      %v1142 = vsel %vm1136, %v1129, 920167782
      %v1143 = vsel %vm1135, %v1126, %v1142
      %v1144 = vsel %vm1134, %v1141, %v1143
      %v1145 = vsel %vm1133, %v1123, %v1126
      %v1146 = vsel %vm1136, %v1132, 1326507024
      %v1147 = vsel %vm1135, %v1129, %v1146
      %v1148 = vsel %vm1134, %v1145, %v1147
      %v1149 = vshll.u32 %v1109, 8
      %v1150 = vand.u32 %v1149, 65535
      %v1151 = vshrl.u32 %v1149, 16
      %v1152 = vand.u32 %v1148, 65535
      %v1153 = vshrl.u32 %v1148, 16
      %v1154 = vmul.u32 %v1150, %v1152
      %v1155 = vmul.u32 %v1150, %v1153
      %v1156 = vmul.u32 %v1151, %v1152
      %v1157 = vmul.u32 %v1151, %v1153
      %v1158 = vshll.u32 %v1155, 16
      %v1159 = vshrl.u32 %v1155, 16
      %v1160 = vshll.u32 %v1156, 16
      %v1161 = vshrl.u32 %v1156, 16
      %vm1162 = vc.u32 %v1154, %v1158
      %v1163 = vsel %vm1162, 1, 0
      %v1164 = vadd.s32 %v1154, %v1158
      %v1165 = vadd.s32 %v1157, %v1163
      %vm1166 = vc.u32 %v1164, %v1160
      %v1167 = vsel %vm1166, 1, 0
      %v1168 = vadd.s32 %v1164, %v1160
      %v1169 = vadd.s32 %v1165, %v1167
      %v1170 = vadd.s32 %v1169, %v1159
      %v1171 = vadd.s32 %v1170, %v1161
      %v1172 = vand.u32 %v1149, 65535
      %v1173 = vshrl.u32 %v1149, 16
      %v1174 = vand.u32 %v1144, 65535
      %v1175 = vshrl.u32 %v1144, 16
      %v1176 = vmul.u32 %v1172, %v1174
      %v1177 = vmul.u32 %v1172, %v1175
      %v1178 = vmul.u32 %v1173, %v1174
      %v1179 = vmul.u32 %v1173, %v1175
      %v1180 = vshll.u32 %v1177, 16
      %v1181 = vshrl.u32 %v1177, 16
      %v1182 = vshll.u32 %v1178, 16
      %v1183 = vshrl.u32 %v1178, 16
      %vm1184 = vc.u32 %v1176, %v1180
      %v1185 = vsel %vm1184, 1, 0
      %v1186 = vadd.s32 %v1176, %v1180
      %v1187 = vadd.s32 %v1179, %v1185
      %vm1188 = vc.u32 %v1186, %v1182
      %v1189 = vsel %vm1188, 1, 0
      %v1190 = vadd.s32 %v1186, %v1182
      %v1191 = vadd.s32 %v1187, %v1189
      %v1192 = vadd.s32 %v1191, %v1181
      %v1193 = vadd.s32 %v1192, %v1183
      %v1194 = vmul.u32 %v1149, %v1140
      %v1195 = vadd.s32 %v1171, %v1190
      %vm1196 = vc.u32 %v1171, %v1190
      %v1197 = vadd.s32 %v1193, 1
      %v1198 = vsel %vm1196, %v1197, %v1193
      %v1199 = vadd.s32 %v1194, %v1198
      %v1200 = vadd.s32 %v1199, 536870912
      %v1201 = vshrl.u32 %v1200, 30
      %v1202 = vshll.u32 %v1201, 30
      %v1203 = vsub.s32 %v1199, %v1202
      %vm1204 = vcmp.lt.s32.totalorder %v1203, 0
      %v1205 = vsub.s32 0, %v1203
      %v1206 = vsel %vm1204, %v1205, %v1203
      %v1207 = vclz %v1206
      %v1208 = vsub.s32 %v1207, 2
      %vm1209 = vcmp.gt.s32.totalorder 0, %v1208
      %v1210 = vsel %vm1209, 0, %v1208
      %v1211 = vsub.s32 32, %v1210
      %v1212 = vshll.u32 %v1203, %v1210
      %v1213 = vshrl.u32 %v1195, %v1211
      %v1214 = vor.u32 %v1212, %v1213
      %v1215 = vsub.s32 4294967266, %v1210
      %v1216 = vadd.s32 %v1215, 127
      %v1217 = vshll.u32 %v1216, 23
      %v1218 = vor.u32 4788187, %v1217
      %v1219 = vand.u32 2147483647, %v1218
      %v1221 = vcvt.s32.f32 %v1214
      %v1222 = vmul.f32 %v1221, %v1219
      %v1223 = vxor.u32 %v1222, 2147483648
      %v1224 = vsel %vm1103, %v1223, %v1222
      %v1225 = vsub.s32 4, %v1201
      %v1226 = vsel %vm1103, %v1225, %v1201
      %v1227 = vsel %vm1102, %v472, %v1224
      %v1228 = vsel %vm1102, 0, %v1226
      %v1229 = vmul.f32 %v1227, %v1227
      %v1230 = vmul.f32 %v1229, -0.001358992
      %v1231 = vadd.f32 %v1230, 0.041655596
      %v1232 = vmul.f32 %v1229, %v1231
      %v1233 = vadd.f32 %v1232, -0.4999988
      %v1234 = vmul.f32 %v1229, %v1233
      %v1235 = vadd.f32 1.0, %v1234
      %v1236 = vmul.f32 %v1227, %v1227
      %v1237 = vmul.f32 %v1236, -0.00019511016
      %v1238 = vadd.f32 %v1237, 0.008332121
      %v1239 = vmul.f32 %v1236, %v1238
      %v1240 = vadd.f32 %v1239, -0.16666654
      %v1241 = vmul.f32 %v1236, %v1240
      %v1242 = vadd.f32 %v1241, 1.0
      %v1243 = vmul.f32 %v1242, %v1227
      %vm1244 = vweird.f32 %v472
      %v1245 = vadd.s32 %v1228, 3
      %v1246 = vand.u32 %v1245, 3
      %vm1247 = vcmp.lt.s32.totalorder %v1246, 2
      %vm1248 = vcmp.eq.s32.totalorder %v1246, 0
      %v1249 = vxor.u32 %v1243, 2147483648
      %v1250 = vsel %vm1248, %v1235, %v1249
      %vm1251 = vcmp.eq.s32.totalorder %v1246, 2
      %v1252 = vxor.u32 %v1235, 2147483648
      %v1253 = vsel %vm1251, %v1252, %v1243
      %v1254 = vsel %vm1247, %v1250, %v1253
      %v1255 = vsel %vm1244, nan, %v1254
      %v1256 = vand.u32 2147483647, %v474
      %vm1257 = vcmp.le.f32.partialorder %v1256, 0.7853982
      %vm1258 = vcmp.lt.s32.totalorder %v474, 0
      %v1259 = vand.u32 %v474, 2139095040
      %v1260 = vshrl.u32 %v1259, 23
      %v1261 = vsub.s32 %v1260, 127
      %v1262 = vand.u32 2147483647, %v474
      %v1263 = vand.u32 %v1262, 8388607
      %v1264 = vor.u32 %v1263, 8388608
      %v1265 = vsub.s32 0, %v1264
      %v1266 = vadd.s32 %v1261, 1
      %vm1267 = vcmp.gt.s32.totalorder %v1266, 0
      %v1268 = vsel %vm1267, %v1266, 0
      %v1269 = vshrl.u32 %v1268, 5
      %v1270 = vand.u32 %v1268, 31
      %v1271 = vsub.s32 32, %v1270
      %v1272 = vshrl.u32 683565275, %v1271
      %v1273 = vshll.u32 683565275, %v1270
      %v1274 = vshrl.u32 2475754826, %v1271
      %v1275 = vor.u32 %v1273, %v1274
      %v1276 = vshll.u32 2475754826, %v1270
      %v1277 = vshrl.u32 2131351028, %v1271
      %v1278 = vor.u32 %v1276, %v1277
      %v1279 = vshll.u32 2131351028, %v1270
      %v1280 = vshrl.u32 2102212464, %v1271
      %v1281 = vor.u32 %v1279, %v1280
      %v1282 = vshll.u32 2102212464, %v1270
      %v1283 = vshrl.u32 920167782, %v1271
      %v1284 = vor.u32 %v1282, %v1283
      %v1285 = vshll.u32 920167782, %v1270
      %v1286 = vshrl.u32 1326507024, %v1271
      %v1287 = vor.u32 %v1285, %v1286
      %vm1288 = vcmp.lt.s32.totalorder %v1269, 1
      %vm1289 = vcmp.lt.s32.totalorder %v1269, 2
      %vm1290 = vcmp.lt.s32.totalorder %v1269, 3
      %vm1291 = vcmp.lt.s32.totalorder %v1269, 4
      %v1292 = vsel %vm1288, %v1272, %v1275
      %v1293 = vsel %vm1291, %v1281, 2102212464
      %v1294 = vsel %vm1290, %v1278, %v1293
      %v1295 = vsel %vm1289, %v1292, %v1294
      %v1296 = vsel %vm1288, %v1275, %v1278
      %v1297 = vsel %vm1291, %v1284, 920167782
      %v1298 = vsel %vm1290, %v1281, %v1297
      %v1299 = vsel %vm1289, %v1296, %v1298
      %v1300 = vsel %vm1288, %v1278, %v1281
      %v1301 = vsel %vm1291, %v1287, 1326507024
      %v1302 = vsel %vm1290, %v1284, %v1301
      %v1303 = vsel %vm1289, %v1300, %v1302
      %v1304 = vshll.u32 %v1264, 8
      %v1305 = vand.u32 %v1304, 65535
      %v1306 = vshrl.u32 %v1304, 16
      %v1307 = vand.u32 %v1303, 65535
      %v1308 = vshrl.u32 %v1303, 16
      %v1309 = vmul.u32 %v1305, %v1307
      %v1310 = vmul.u32 %v1305, %v1308
      %v1311 = vmul.u32 %v1306, %v1307
      %v1312 = vmul.u32 %v1306, %v1308
      %v1313 = vshll.u32 %v1310, 16
      %v1314 = vshrl.u32 %v1310, 16
      %v1315 = vshll.u32 %v1311, 16
      %v1316 = vshrl.u32 %v1311, 16
      %vm1317 = vc.u32 %v1309, %v1313
      %v1318 = vsel %vm1317, 1, 0
      %v1319 = vadd.s32 %v1309, %v1313
      %v1320 = vadd.s32 %v1312, %v1318
      %vm1321 = vc.u32 %v1319, %v1315
      %v1322 = vsel %vm1321, 1, 0
      %v1323 = vadd.s32 %v1319, %v1315
      %v1324 = vadd.s32 %v1320, %v1322
      %v1325 = vadd.s32 %v1324, %v1314
      %v1326 = vadd.s32 %v1325, %v1316
      %v1327 = vand.u32 %v1304, 65535
      %v1328 = vshrl.u32 %v1304, 16
      %v1329 = vand.u32 %v1299, 65535
      %v1330 = vshrl.u32 %v1299, 16
      %v1331 = vmul.u32 %v1327, %v1329
      %v1332 = vmul.u32 %v1327, %v1330
      %v1333 = vmul.u32 %v1328, %v1329
      %v1334 = vmul.u32 %v1328, %v1330
      %v1335 = vshll.u32 %v1332, 16
      %v1336 = vshrl.u32 %v1332, 16
      %v1337 = vshll.u32 %v1333, 16
      %v1338 = vshrl.u32 %v1333, 16
      %vm1339 = vc.u32 %v1331, %v1335
      %v1340 = vsel %vm1339, 1, 0
      %v1341 = vadd.s32 %v1331, %v1335
      %v1342 = vadd.s32 %v1334, %v1340
      %vm1343 = vc.u32 %v1341, %v1337
      %v1344 = vsel %vm1343, 1, 0
      %v1345 = vadd.s32 %v1341, %v1337
      %v1346 = vadd.s32 %v1342, %v1344
      %v1347 = vadd.s32 %v1346, %v1336
      %v1348 = vadd.s32 %v1347, %v1338
      %v1349 = vmul.u32 %v1304, %v1295
      %v1350 = vadd.s32 %v1326, %v1345
      %vm1351 = vc.u32 %v1326, %v1345
      %v1352 = vadd.s32 %v1348, 1
      %v1353 = vsel %vm1351, %v1352, %v1348
      %v1354 = vadd.s32 %v1349, %v1353
      %v1355 = vadd.s32 %v1354, 536870912
      %v1356 = vshrl.u32 %v1355, 30
      %v1357 = vshll.u32 %v1356, 30
      %v1358 = vsub.s32 %v1354, %v1357
      %vm1359 = vcmp.lt.s32.totalorder %v1358, 0
      %v1360 = vsub.s32 0, %v1358
      %v1361 = vsel %vm1359, %v1360, %v1358
      %v1362 = vclz %v1361
      %v1363 = vsub.s32 %v1362, 2
      %vm1364 = vcmp.gt.s32.totalorder 0, %v1363
      %v1365 = vsel %vm1364, 0, %v1363
      %v1366 = vsub.s32 32, %v1365
      %v1367 = vshll.u32 %v1358, %v1365
      %v1368 = vshrl.u32 %v1350, %v1366
      %v1369 = vor.u32 %v1367, %v1368
      %v1370 = vsub.s32 4294967266, %v1365
      %v1371 = vadd.s32 %v1370, 127
      %v1372 = vshll.u32 %v1371, 23
      %v1373 = vor.u32 4788187, %v1372
      %v1374 = vand.u32 2147483647, %v1373
      %v1376 = vcvt.s32.f32 %v1369
      %v1377 = vmul.f32 %v1376, %v1374
      %v1378 = vxor.u32 %v1377, 2147483648
      %v1379 = vsel %vm1258, %v1378, %v1377
      %v1380 = vsub.s32 4, %v1356
      %v1381 = vsel %vm1258, %v1380, %v1356
      %v1382 = vsel %vm1257, %v474, %v1379
      %v1383 = vsel %vm1257, 0, %v1381
      %v1384 = vmul.f32 %v1382, %v1382
      %v1385 = vmul.f32 %v1384, -0.001358992
      %v1386 = vadd.f32 %v1385, 0.041655596
      %v1387 = vmul.f32 %v1384, %v1386
      %v1388 = vadd.f32 %v1387, -0.4999988
      %v1389 = vmul.f32 %v1384, %v1388
      %v1390 = vadd.f32 1.0, %v1389
      %v1391 = vmul.f32 %v1382, %v1382
      %v1392 = vmul.f32 %v1391, -0.00019511016
      %v1393 = vadd.f32 %v1392, 0.008332121
      %v1394 = vmul.f32 %v1391, %v1393
      %v1395 = vadd.f32 %v1394, -0.16666654
      %v1396 = vmul.f32 %v1391, %v1395
      %v1397 = vadd.f32 %v1396, 1.0
      %v1398 = vmul.f32 %v1397, %v1382
      %vm1399 = vweird.f32 %v474
      %v1400 = vadd.s32 %v1383, 3
      %v1401 = vand.u32 %v1400, 3
      %vm1402 = vcmp.lt.s32.totalorder %v1401, 2
      %vm1403 = vcmp.eq.s32.totalorder %v1401, 0
      %v1404 = vxor.u32 %v1398, 2147483648
      %v1405 = vsel %vm1403, %v1390, %v1404
      %vm1406 = vcmp.eq.s32.totalorder %v1401, 2
      %v1407 = vxor.u32 %v1390, 2147483648
      %v1408 = vsel %vm1406, %v1407, %v1398
      %v1409 = vsel %vm1402, %v1405, %v1408
      %v1410 = vsel %vm1399, nan, %v1409
      %v1411 = vand.u32 2147483647, %v477
      %vm1412 = vcmp.le.f32.partialorder %v1411, 0.7853982
      %vm1413 = vcmp.lt.s32.totalorder %v477, 0
      %v1414 = vand.u32 %v477, 2139095040
      %v1415 = vshrl.u32 %v1414, 23
      %v1416 = vsub.s32 %v1415, 127
      %v1417 = vand.u32 2147483647, %v477
      %v1418 = vand.u32 %v1417, 8388607
      %v1419 = vor.u32 %v1418, 8388608
      %v1420 = vsub.s32 0, %v1419
      %v1421 = vadd.s32 %v1416, 1
      %vm1422 = vcmp.gt.s32.totalorder %v1421, 0
      %v1423 = vsel %vm1422, %v1421, 0
      %v1424 = vshrl.u32 %v1423, 5
      %v1425 = vand.u32 %v1423, 31
      %v1426 = vsub.s32 32, %v1425
      %v1427 = vshrl.u32 683565275, %v1426
      %v1428 = vshll.u32 683565275, %v1425
      %v1429 = vshrl.u32 2475754826, %v1426
      %v1430 = vor.u32 %v1428, %v1429
      %v1431 = vshll.u32 2475754826, %v1425
      %v1432 = vshrl.u32 2131351028, %v1426
      %v1433 = vor.u32 %v1431, %v1432
      %v1434 = vshll.u32 2131351028, %v1425
      %v1435 = vshrl.u32 2102212464, %v1426
      %v1436 = vor.u32 %v1434, %v1435
      %v1437 = vshll.u32 2102212464, %v1425
      %v1438 = vshrl.u32 920167782, %v1426
      %v1439 = vor.u32 %v1437, %v1438
      %v1440 = vshll.u32 920167782, %v1425
      %v1441 = vshrl.u32 1326507024, %v1426
      %v1442 = vor.u32 %v1440, %v1441
      %vm1443 = vcmp.lt.s32.totalorder %v1424, 1
      %vm1444 = vcmp.lt.s32.totalorder %v1424, 2
      %vm1445 = vcmp.lt.s32.totalorder %v1424, 3
      %vm1446 = vcmp.lt.s32.totalorder %v1424, 4
      %v1447 = vsel %vm1443, %v1427, %v1430
      %v1448 = vsel %vm1446, %v1436, 2102212464
      %v1449 = vsel %vm1445, %v1433, %v1448
      %v1450 = vsel %vm1444, %v1447, %v1449
      %v1451 = vsel %vm1443, %v1430, %v1433
      %v1452 = vsel %vm1446, %v1439, 920167782
      %v1453 = vsel %vm1445, %v1436, %v1452
      %v1454 = vsel %vm1444, %v1451, %v1453
      %v1455 = vsel %vm1443, %v1433, %v1436
      %v1456 = vsel %vm1446, %v1442, 1326507024
      %v1457 = vsel %vm1445, %v1439, %v1456
      %v1458 = vsel %vm1444, %v1455, %v1457
      %v1459 = vshll.u32 %v1419, 8
      %v1460 = vand.u32 %v1459, 65535
      %v1461 = vshrl.u32 %v1459, 16
      %v1462 = vand.u32 %v1458, 65535
      %v1463 = vshrl.u32 %v1458, 16
      %v1464 = vmul.u32 %v1460, %v1462
      %v1465 = vmul.u32 %v1460, %v1463
      %v1466 = vmul.u32 %v1461, %v1462
      %v1467 = vmul.u32 %v1461, %v1463
      %v1468 = vshll.u32 %v1465, 16
      %v1469 = vshrl.u32 %v1465, 16
      %v1470 = vshll.u32 %v1466, 16
      %v1471 = vshrl.u32 %v1466, 16
      %vm1472 = vc.u32 %v1464, %v1468
      %v1473 = vsel %vm1472, 1, 0
      %v1474 = vadd.s32 %v1464, %v1468
      %v1475 = vadd.s32 %v1467, %v1473
      %vm1476 = vc.u32 %v1474, %v1470
      %v1477 = vsel %vm1476, 1, 0
      %v1478 = vadd.s32 %v1474, %v1470
      %v1479 = vadd.s32 %v1475, %v1477
      %v1480 = vadd.s32 %v1479, %v1469
      %v1481 = vadd.s32 %v1480, %v1471
      %v1482 = vand.u32 %v1459, 65535
      %v1483 = vshrl.u32 %v1459, 16
      %v1484 = vand.u32 %v1454, 65535
      %v1485 = vshrl.u32 %v1454, 16
      %v1486 = vmul.u32 %v1482, %v1484
      %v1487 = vmul.u32 %v1482, %v1485
      %v1488 = vmul.u32 %v1483, %v1484
      %v1489 = vmul.u32 %v1483, %v1485
      %v1490 = vshll.u32 %v1487, 16
      %v1491 = vshrl.u32 %v1487, 16
      %v1492 = vshll.u32 %v1488, 16
      %v1493 = vshrl.u32 %v1488, 16
      %vm1494 = vc.u32 %v1486, %v1490
      %v1495 = vsel %vm1494, 1, 0
      %v1496 = vadd.s32 %v1486, %v1490
      %v1497 = vadd.s32 %v1489, %v1495
      %vm1498 = vc.u32 %v1496, %v1492
      %v1499 = vsel %vm1498, 1, 0
      %v1500 = vadd.s32 %v1496, %v1492
      %v1501 = vadd.s32 %v1497, %v1499
      %v1502 = vadd.s32 %v1501, %v1491
      %v1503 = vadd.s32 %v1502, %v1493
      %v1504 = vmul.u32 %v1459, %v1450
      %v1505 = vadd.s32 %v1481, %v1500
      %vm1506 = vc.u32 %v1481, %v1500
      %v1507 = vadd.s32 %v1503, 1
      %v1508 = vsel %vm1506, %v1507, %v1503
      %v1509 = vadd.s32 %v1504, %v1508
      %v1510 = vadd.s32 %v1509, 536870912
      %v1511 = vshrl.u32 %v1510, 30
      %v1512 = vshll.u32 %v1511, 30
      %v1513 = vsub.s32 %v1509, %v1512
      %vm1514 = vcmp.lt.s32.totalorder %v1513, 0
      %v1515 = vsub.s32 0, %v1513
      %v1516 = vsel %vm1514, %v1515, %v1513
      %v1517 = vclz %v1516
      %v1518 = vsub.s32 %v1517, 2
      %vm1519 = vcmp.gt.s32.totalorder 0, %v1518
      %v1520 = vsel %vm1519, 0, %v1518
      %v1521 = vsub.s32 32, %v1520
      %v1522 = vshll.u32 %v1513, %v1520
      %v1523 = vshrl.u32 %v1505, %v1521
      %v1524 = vor.u32 %v1522, %v1523
      %v1525 = vsub.s32 4294967266, %v1520
      %v1526 = vadd.s32 %v1525, 127
      %v1527 = vshll.u32 %v1526, 23
      %v1528 = vor.u32 4788187, %v1527
      %v1529 = vand.u32 2147483647, %v1528
      %v1531 = vcvt.s32.f32 %v1524
      %v1532 = vmul.f32 %v1531, %v1529
      %v1533 = vxor.u32 %v1532, 2147483648
      %v1534 = vsel %vm1413, %v1533, %v1532
      %v1535 = vsub.s32 4, %v1511
      %v1536 = vsel %vm1413, %v1535, %v1511
      %v1537 = vsel %vm1412, %v477, %v1534
      %v1538 = vsel %vm1412, 0, %v1536
      %v1539 = vmul.f32 %v1537, %v1537
      %v1540 = vmul.f32 %v1539, -0.001358992
      %v1541 = vadd.f32 %v1540, 0.041655596
      %v1542 = vmul.f32 %v1539, %v1541
      %v1543 = vadd.f32 %v1542, -0.4999988
      %v1544 = vmul.f32 %v1539, %v1543
      %v1545 = vadd.f32 1.0, %v1544
      %v1546 = vmul.f32 %v1537, %v1537
      %v1547 = vmul.f32 %v1546, -0.00019511016
      %v1548 = vadd.f32 %v1547, 0.008332121
      %v1549 = vmul.f32 %v1546, %v1548
      %v1550 = vadd.f32 %v1549, -0.16666654
      %v1551 = vmul.f32 %v1546, %v1550
      %v1552 = vadd.f32 %v1551, 1.0
      %v1553 = vmul.f32 %v1552, %v1537
      %vm1554 = vweird.f32 %v477
      %v1555 = vadd.s32 %v1538, 3
      %v1556 = vand.u32 %v1555, 3
      %vm1557 = vcmp.lt.s32.totalorder %v1556, 2
      %vm1558 = vcmp.eq.s32.totalorder %v1556, 0
      %v1559 = vxor.u32 %v1553, 2147483648
      %v1560 = vsel %vm1558, %v1545, %v1559
      %vm1561 = vcmp.eq.s32.totalorder %v1556, 2
      %v1562 = vxor.u32 %v1545, 2147483648
      %v1563 = vsel %vm1561, %v1562, %v1553
      %v1564 = vsel %vm1557, %v1560, %v1563
      %v1565 = vsel %vm1554, nan, %v1564
      %v1566 = vand.u32 2147483647, %v479
      %vm1567 = vcmp.le.f32.partialorder %v1566, 0.7853982
      %vm1568 = vcmp.lt.s32.totalorder %v479, 0
      %v1569 = vand.u32 %v479, 2139095040
      %v1570 = vshrl.u32 %v1569, 23
      %v1571 = vsub.s32 %v1570, 127
      %v1572 = vand.u32 2147483647, %v479
      %v1573 = vand.u32 %v1572, 8388607
      %v1574 = vor.u32 %v1573, 8388608
      %v1575 = vsub.s32 0, %v1574
      %v1576 = vadd.s32 %v1571, 1
      %vm1577 = vcmp.gt.s32.totalorder %v1576, 0
      %v1578 = vsel %vm1577, %v1576, 0
      %v1579 = vshrl.u32 %v1578, 5
      %v1580 = vand.u32 %v1578, 31
      %v1581 = vsub.s32 32, %v1580
      %v1582 = vshrl.u32 683565275, %v1581
      %v1583 = vshll.u32 683565275, %v1580
      %v1584 = vshrl.u32 2475754826, %v1581
      %v1585 = vor.u32 %v1583, %v1584
      %v1586 = vshll.u32 2475754826, %v1580
      %v1587 = vshrl.u32 2131351028, %v1581
      %v1588 = vor.u32 %v1586, %v1587
      %v1589 = vshll.u32 2131351028, %v1580
      %v1590 = vshrl.u32 2102212464, %v1581
      %v1591 = vor.u32 %v1589, %v1590
      %v1592 = vshll.u32 2102212464, %v1580
      %v1593 = vshrl.u32 920167782, %v1581
      %v1594 = vor.u32 %v1592, %v1593
      %v1595 = vshll.u32 920167782, %v1580
      %v1596 = vshrl.u32 1326507024, %v1581
      %v1597 = vor.u32 %v1595, %v1596
      %vm1598 = vcmp.lt.s32.totalorder %v1579, 1
      %vm1599 = vcmp.lt.s32.totalorder %v1579, 2
      %vm1600 = vcmp.lt.s32.totalorder %v1579, 3
      %vm1601 = vcmp.lt.s32.totalorder %v1579, 4
      %v1602 = vsel %vm1598, %v1582, %v1585
      %v1603 = vsel %vm1601, %v1591, 2102212464
      %v1604 = vsel %vm1600, %v1588, %v1603
      %v1605 = vsel %vm1599, %v1602, %v1604
      %v1606 = vsel %vm1598, %v1585, %v1588
      %v1607 = vsel %vm1601, %v1594, 920167782
      %v1608 = vsel %vm1600, %v1591, %v1607
      %v1609 = vsel %vm1599, %v1606, %v1608
      %v1610 = vsel %vm1598, %v1588, %v1591
      %v1611 = vsel %vm1601, %v1597, 1326507024
      %v1612 = vsel %vm1600, %v1594, %v1611
      %v1613 = vsel %vm1599, %v1610, %v1612
      %v1614 = vshll.u32 %v1574, 8
      %v1615 = vand.u32 %v1614, 65535
      %v1616 = vshrl.u32 %v1614, 16
      %v1617 = vand.u32 %v1613, 65535
      %v1618 = vshrl.u32 %v1613, 16
      %v1619 = vmul.u32 %v1615, %v1617
      %v1620 = vmul.u32 %v1615, %v1618
      %v1621 = vmul.u32 %v1616, %v1617
      %v1622 = vmul.u32 %v1616, %v1618
      %v1623 = vshll.u32 %v1620, 16
      %v1624 = vshrl.u32 %v1620, 16
      %v1625 = vshll.u32 %v1621, 16
      %v1626 = vshrl.u32 %v1621, 16
      %vm1627 = vc.u32 %v1619, %v1623
      %v1628 = vsel %vm1627, 1, 0
      %v1629 = vadd.s32 %v1619, %v1623
      %v1630 = vadd.s32 %v1622, %v1628
      %vm1631 = vc.u32 %v1629, %v1625
      %v1632 = vsel %vm1631, 1, 0
      %v1633 = vadd.s32 %v1629, %v1625
      %v1634 = vadd.s32 %v1630, %v1632
      %v1635 = vadd.s32 %v1634, %v1624
      %v1636 = vadd.s32 %v1635, %v1626
      %v1637 = vand.u32 %v1614, 65535
      %v1638 = vshrl.u32 %v1614, 16
      %v1639 = vand.u32 %v1609, 65535
      %v1640 = vshrl.u32 %v1609, 16
      %v1641 = vmul.u32 %v1637, %v1639
      %v1642 = vmul.u32 %v1637, %v1640
      %v1643 = vmul.u32 %v1638, %v1639
      %v1644 = vmul.u32 %v1638, %v1640
      %v1645 = vshll.u32 %v1642, 16
      %v1646 = vshrl.u32 %v1642, 16
      %v1647 = vshll.u32 %v1643, 16
      %v1648 = vshrl.u32 %v1643, 16
      %vm1649 = vc.u32 %v1641, %v1645
      %v1650 = vsel %vm1649, 1, 0
      %v1651 = vadd.s32 %v1641, %v1645
      %v1652 = vadd.s32 %v1644, %v1650
      %vm1653 = vc.u32 %v1651, %v1647
      %v1654 = vsel %vm1653, 1, 0
      %v1655 = vadd.s32 %v1651, %v1647
      %v1656 = vadd.s32 %v1652, %v1654
      %v1657 = vadd.s32 %v1656, %v1646
      %v1658 = vadd.s32 %v1657, %v1648
      %v1659 = vmul.u32 %v1614, %v1605
      %v1660 = vadd.s32 %v1636, %v1655
      %vm1661 = vc.u32 %v1636, %v1655
      %v1662 = vadd.s32 %v1658, 1
      %v1663 = vsel %vm1661, %v1662, %v1658
      %v1664 = vadd.s32 %v1659, %v1663
      %v1665 = vadd.s32 %v1664, 536870912
      %v1666 = vshrl.u32 %v1665, 30
      %v1667 = vshll.u32 %v1666, 30
      %v1668 = vsub.s32 %v1664, %v1667
      %vm1669 = vcmp.lt.s32.totalorder %v1668, 0
      %v1670 = vsub.s32 0, %v1668
      %v1671 = vsel %vm1669, %v1670, %v1668
      %v1672 = vclz %v1671
      %v1673 = vsub.s32 %v1672, 2
      %vm1674 = vcmp.gt.s32.totalorder 0, %v1673
      %v1675 = vsel %vm1674, 0, %v1673
      %v1676 = vsub.s32 32, %v1675
      %v1677 = vshll.u32 %v1668, %v1675
      %v1678 = vshrl.u32 %v1660, %v1676
      %v1679 = vor.u32 %v1677, %v1678
      %v1680 = vsub.s32 4294967266, %v1675
      %v1681 = vadd.s32 %v1680, 127
      %v1682 = vshll.u32 %v1681, 23
      %v1683 = vor.u32 4788187, %v1682
      %v1684 = vand.u32 2147483647, %v1683
      %v1686 = vcvt.s32.f32 %v1679
      %v1687 = vmul.f32 %v1686, %v1684
      %v1688 = vxor.u32 %v1687, 2147483648
      %v1689 = vsel %vm1568, %v1688, %v1687
      %v1690 = vsub.s32 4, %v1666
      %v1691 = vsel %vm1568, %v1690, %v1666
      %v1692 = vsel %vm1567, %v479, %v1689
      %v1693 = vsel %vm1567, 0, %v1691
      %v1694 = vmul.f32 %v1692, %v1692
      %v1695 = vmul.f32 %v1694, -0.001358992
      %v1696 = vadd.f32 %v1695, 0.041655596
      %v1697 = vmul.f32 %v1694, %v1696
      %v1698 = vadd.f32 %v1697, -0.4999988
      %v1699 = vmul.f32 %v1694, %v1698
      %v1700 = vadd.f32 1.0, %v1699
      %v1701 = vmul.f32 %v1692, %v1692
      %v1702 = vmul.f32 %v1701, -0.00019511016
      %v1703 = vadd.f32 %v1702, 0.008332121
      %v1704 = vmul.f32 %v1701, %v1703
      %v1705 = vadd.f32 %v1704, -0.16666654
      %v1706 = vmul.f32 %v1701, %v1705
      %v1707 = vadd.f32 %v1706, 1.0
      %v1708 = vmul.f32 %v1707, %v1692
      %vm1709 = vweird.f32 %v479
      %v1710 = vadd.s32 %v1693, 3
      %v1711 = vand.u32 %v1710, 3
      %vm1712 = vcmp.lt.s32.totalorder %v1711, 2
      %vm1713 = vcmp.eq.s32.totalorder %v1711, 0
      %v1714 = vxor.u32 %v1708, 2147483648
      %v1715 = vsel %vm1713, %v1700, %v1714
      %vm1716 = vcmp.eq.s32.totalorder %v1711, 2
      %v1717 = vxor.u32 %v1700, 2147483648
      %v1718 = vsel %vm1716, %v1717, %v1708
      %v1719 = vsel %vm1712, %v1715, %v1718
      %v1720 = vsel %vm1709, nan, %v1719
      %v1721 = vpack.c.bf16 %v790, %v635
      %v1722 = vpack.c.bf16 %v1100, %v945
      %v1723 = vpack.c.bf16 %v1410, %v1255
      %v1724 = vpack.c.bf16 %v1720, %v1565
      %v1725 = vld [vmem:[%s3] sm:$0xf]
      %v1726 = vld [vmem:[%s3 + $0x4] sm:$0xf]
      %v1727 = vld [vmem:[%s3 + $0x8] sm:$0xf]
      %v1728 = vld [vmem:[%s3 + $0xc] sm:$0xf]
      %v1729 = vld [vmem:[%s3 + $0x10] sm:$0xf]
      %v1730 = vld [vmem:[%s3 + $0x14] sm:$0xf]
      %v1731 = vld [vmem:[%s3 + $0x18] sm:$0xf]
      %v1732 = vld [vmem:[%s3 + $0x1c] sm:$0xf]
      %v1733 = vld [vmem:[%s3 + $0x20] sm:$0xf]
      %v1734 = vld [vmem:[%s3 + $0x24] sm:$0xf]
      %v1735 = vld [vmem:[%s3 + $0x28] sm:$0xf]
      %v1736 = vld [vmem:[%s3 + $0x2c] sm:$0xf]
      %v1737 = vld [vmem:[%s3 + $0x30] sm:$0xf]
      %v1738 = vld [vmem:[%s3 + $0x34] sm:$0xf]
      %v1739 = vld [vmem:[%s3 + $0x38] sm:$0xf]
      %v1740 = vld [vmem:[%s3 + $0x3c] sm:$0xf]
      %v1741 = vld [vmem:[%s4] sm:$0x1]
      %v1743 = vperm.slane %v1741, 0
      %v1761 = vunpack.c.l.b16 %v1725
      %v1762 = vunpack.c.l.b16 %v1726
      %v1763 = vunpack.c.l.b16 %v1727
      %v1764 = vunpack.c.l.b16 %v1728
      %v1765 = vunpack.c.l.b16 %v1729
      %v1766 = vunpack.c.l.b16 %v1730
      %v1767 = vunpack.c.l.b16 %v1731
      %v1768 = vunpack.c.l.b16 %v1732
      %v1769 = vunpack.c.l.b16 %v1733
      %v1770 = vunpack.c.l.b16 %v1734
      %v1771 = vunpack.c.l.b16 %v1735
      %v1772 = vunpack.c.l.b16 %v1736
      %v1773 = vunpack.c.l.b16 %v1737
      %v1774 = vunpack.c.l.b16 %v1738
      %v1775 = vunpack.c.l.b16 %v1739
      %v1776 = vunpack.c.l.b16 %v1740
      %v1777 = vpack.c.b16 %v1762, %v1761
      %v1778 = vpack.c.b16 %v1764, %v1763
      %v1779 = vpack.c.b16 %v1766, %v1765
      %v1780 = vpack.c.b16 %v1768, %v1767
      %v1781 = vpack.c.b16 %v1770, %v1769
      %v1782 = vpack.c.b16 %v1772, %v1771
      %v1783 = vpack.c.b16 %v1774, %v1773
      %v1784 = vpack.c.b16 %v1776, %v1775
      %1793 = vmatpush.bf16.msra.mxu0 %v1784
      %1794 = vmatpush.bf16.msra.mxu0 %v1783
      %1795 = vmatpush.bf16.msra.mxu0 %v1782
      %1796 = vmatpush.bf16.msra.mxu0 %v1781
      %1797 = vmatpush.bf16.msra.mxu0 %v1780
      %1798 = vmatpush.bf16.msra.mxu0 %v1779
      %1799 = vmatpush.bf16.msra.mxu0 %v1778
      %1800 = vmatpush.bf16.msra.mxu0 %v1777
      %1801 = vmatmul.bf16.gmra.mxu0 %v1721
      %v1802 = vpop.f32.mrf.mxu0
      %v1803 = vadd.f32 %v1743, %v1802
      %v1804 = vpop.f32.mrf.mxu0
      %v1805 = vadd.f32 %v1743, %v1804
      %1806 = vmatmul.bf16.gmra.mxu0 %v1722
      %v1807 = vpop.f32.mrf.mxu0
      %v1808 = vadd.f32 %v1743, %v1807
      %v1809 = vpop.f32.mrf.mxu0
      %v1810 = vadd.f32 %v1743, %v1809
      %1811 = vmatmul.bf16.gmra.mxu0 %v1723
      %v1812 = vpop.f32.mrf.mxu0
      %v1813 = vadd.f32 %v1743, %v1812
      %v1814 = vpop.f32.mrf.mxu0
      %v1815 = vadd.f32 %v1743, %v1814
      %1816 = vmatmul.bf16.gmra.mxu0 %v1724
      %v1817 = vpop.f32.mrf.mxu0
      %v1818 = vadd.f32 %v1743, %v1817
      %v1819 = vpop.f32.mrf.mxu0
      %v1820 = vadd.f32 %v1743, %v1819
      %1821 = vdwg.mxu0
      %v1822 = vand.u32 2147483647, %v1803
      %vm1823 = vcmp.le.f32.partialorder %v1822, 0.7853982
      %vm1824 = vcmp.lt.s32.totalorder %v1803, 0
      %v1825 = vand.u32 %v1803, 2139095040
      %v1826 = vshrl.u32 %v1825, 23
      %v1827 = vsub.s32 %v1826, 127
      %v1828 = vand.u32 2147483647, %v1803
      %v1829 = vand.u32 %v1828, 8388607
      %v1830 = vor.u32 %v1829, 8388608
      %v1831 = vsub.s32 0, %v1830
      %v1832 = vadd.s32 %v1827, 1
      %vm1833 = vcmp.gt.s32.totalorder %v1832, 0
      %v1834 = vsel %vm1833, %v1832, 0
      %v1835 = vshrl.u32 %v1834, 5
      %v1836 = vand.u32 %v1834, 31
      %v1837 = vsub.s32 32, %v1836
      %v1838 = vshrl.u32 683565275, %v1837
      %v1839 = vshll.u32 683565275, %v1836
      %v1840 = vshrl.u32 2475754826, %v1837
      %v1841 = vor.u32 %v1839, %v1840
      %v1842 = vshll.u32 2475754826, %v1836
      %v1843 = vshrl.u32 2131351028, %v1837
      %v1844 = vor.u32 %v1842, %v1843
      %v1845 = vshll.u32 2131351028, %v1836
      %v1846 = vshrl.u32 2102212464, %v1837
      %v1847 = vor.u32 %v1845, %v1846
      %v1848 = vshll.u32 2102212464, %v1836
      %v1849 = vshrl.u32 920167782, %v1837
      %v1850 = vor.u32 %v1848, %v1849
      %v1851 = vshll.u32 920167782, %v1836
      %v1852 = vshrl.u32 1326507024, %v1837
      %v1853 = vor.u32 %v1851, %v1852
      %vm1854 = vcmp.lt.s32.totalorder %v1835, 1
      %vm1855 = vcmp.lt.s32.totalorder %v1835, 2
      %vm1856 = vcmp.lt.s32.totalorder %v1835, 3
      %vm1857 = vcmp.lt.s32.totalorder %v1835, 4
      %v1858 = vsel %vm1854, %v1838, %v1841
      %v1859 = vsel %vm1857, %v1847, 2102212464
      %v1860 = vsel %vm1856, %v1844, %v1859
      %v1861 = vsel %vm1855, %v1858, %v1860
      %v1862 = vsel %vm1854, %v1841, %v1844
      %v1863 = vsel %vm1857, %v1850, 920167782
      %v1864 = vsel %vm1856, %v1847, %v1863
      %v1865 = vsel %vm1855, %v1862, %v1864
      %v1866 = vsel %vm1854, %v1844, %v1847
      %v1867 = vsel %vm1857, %v1853, 1326507024
      %v1868 = vsel %vm1856, %v1850, %v1867
      %v1869 = vsel %vm1855, %v1866, %v1868
      %v1870 = vshll.u32 %v1830, 8
      %v1871 = vand.u32 %v1870, 65535
      %v1872 = vshrl.u32 %v1870, 16
      %v1873 = vand.u32 %v1869, 65535
      %v1874 = vshrl.u32 %v1869, 16
      %v1875 = vmul.u32 %v1871, %v1873
      %v1876 = vmul.u32 %v1871, %v1874
      %v1877 = vmul.u32 %v1872, %v1873
      %v1878 = vmul.u32 %v1872, %v1874
      %v1879 = vshll.u32 %v1876, 16
      %v1880 = vshrl.u32 %v1876, 16
      %v1881 = vshll.u32 %v1877, 16
      %v1882 = vshrl.u32 %v1877, 16
      %vm1883 = vc.u32 %v1875, %v1879
      %v1884 = vsel %vm1883, 1, 0
      %v1885 = vadd.s32 %v1875, %v1879
      %v1886 = vadd.s32 %v1878, %v1884
      %vm1887 = vc.u32 %v1885, %v1881
      %v1888 = vsel %vm1887, 1, 0
      %v1889 = vadd.s32 %v1885, %v1881
      %v1890 = vadd.s32 %v1886, %v1888
      %v1891 = vadd.s32 %v1890, %v1880
      %v1892 = vadd.s32 %v1891, %v1882
      %v1893 = vand.u32 %v1870, 65535
      %v1894 = vshrl.u32 %v1870, 16
      %v1895 = vand.u32 %v1865, 65535
      %v1896 = vshrl.u32 %v1865, 16
      %v1897 = vmul.u32 %v1893, %v1895
      %v1898 = vmul.u32 %v1893, %v1896
      %v1899 = vmul.u32 %v1894, %v1895
      %v1900 = vmul.u32 %v1894, %v1896
      %v1901 = vshll.u32 %v1898, 16
      %v1902 = vshrl.u32 %v1898, 16
      %v1903 = vshll.u32 %v1899, 16
      %v1904 = vshrl.u32 %v1899, 16
      %vm1905 = vc.u32 %v1897, %v1901
      %v1906 = vsel %vm1905, 1, 0
      %v1907 = vadd.s32 %v1897, %v1901
      %v1908 = vadd.s32 %v1900, %v1906
      %vm1909 = vc.u32 %v1907, %v1903
      %v1910 = vsel %vm1909, 1, 0
      %v1911 = vadd.s32 %v1907, %v1903
      %v1912 = vadd.s32 %v1908, %v1910
      %v1913 = vadd.s32 %v1912, %v1902
      %v1914 = vadd.s32 %v1913, %v1904
      %v1915 = vmul.u32 %v1870, %v1861
      %v1916 = vadd.s32 %v1892, %v1911
      %vm1917 = vc.u32 %v1892, %v1911
      %v1918 = vadd.s32 %v1914, 1
      %v1919 = vsel %vm1917, %v1918, %v1914
      %v1920 = vadd.s32 %v1915, %v1919
      %v1921 = vadd.s32 %v1920, 536870912
      %v1922 = vshrl.u32 %v1921, 30
      %v1923 = vshll.u32 %v1922, 30
      %v1924 = vsub.s32 %v1920, %v1923
      %vm1925 = vcmp.lt.s32.totalorder %v1924, 0
      %v1926 = vsub.s32 0, %v1924
      %v1927 = vsel %vm1925, %v1926, %v1924
      %v1928 = vclz %v1927
      %v1929 = vsub.s32 %v1928, 2
      %vm1930 = vcmp.gt.s32.totalorder 0, %v1929
      %v1931 = vsel %vm1930, 0, %v1929
      %v1932 = vsub.s32 32, %v1931
      %v1933 = vshll.u32 %v1924, %v1931
      %v1934 = vshrl.u32 %v1916, %v1932
      %v1935 = vor.u32 %v1933, %v1934
      %v1936 = vsub.s32 4294967266, %v1931
      %v1937 = vadd.s32 %v1936, 127
      %v1938 = vshll.u32 %v1937, 23
      %v1939 = vor.u32 4788187, %v1938
      %v1940 = vand.u32 2147483647, %v1939
      %v1942 = vcvt.s32.f32 %v1935
      %v1943 = vmul.f32 %v1942, %v1940
      %v1944 = vxor.u32 %v1943, 2147483648
      %v1945 = vsel %vm1824, %v1944, %v1943
      %v1946 = vsub.s32 4, %v1922
      %v1947 = vsel %vm1824, %v1946, %v1922
      %v1948 = vsel %vm1823, %v1803, %v1945
      %v1949 = vsel %vm1823, 0, %v1947
      %v1950 = vmul.f32 %v1948, %v1948
      %v1951 = vmul.f32 %v1950, -0.001358992
      %v1952 = vadd.f32 %v1951, 0.041655596
      %v1953 = vmul.f32 %v1950, %v1952
      %v1954 = vadd.f32 %v1953, -0.4999988
      %v1955 = vmul.f32 %v1950, %v1954
      %v1956 = vadd.f32 1.0, %v1955
      %v1957 = vmul.f32 %v1948, %v1948
      %v1958 = vmul.f32 %v1957, -0.00019511016
      %v1959 = vadd.f32 %v1958, 0.008332121
      %v1960 = vmul.f32 %v1957, %v1959
      %v1961 = vadd.f32 %v1960, -0.16666654
      %v1962 = vmul.f32 %v1957, %v1961
      %v1963 = vadd.f32 %v1962, 1.0
      %v1964 = vmul.f32 %v1963, %v1948
      %vm1965 = vweird.f32 %v1803
      %v1966 = vadd.s32 %v1949, 3
      %v1967 = vand.u32 %v1966, 3
      %vm1968 = vcmp.lt.s32.totalorder %v1967, 2
      %vm1969 = vcmp.eq.s32.totalorder %v1967, 0
      %v1970 = vxor.u32 %v1964, 2147483648
      %v1971 = vsel %vm1969, %v1956, %v1970
      %vm1972 = vcmp.eq.s32.totalorder %v1967, 2
      %v1973 = vxor.u32 %v1956, 2147483648
      %v1974 = vsel %vm1972, %v1973, %v1964
      %v1975 = vsel %vm1968, %v1971, %v1974
      %v1976 = vsel %vm1965, nan, %v1975
      %v1977 = vand.u32 2147483647, %v1805
      %vm1978 = vcmp.le.f32.partialorder %v1977, 0.7853982
      %vm1979 = vcmp.lt.s32.totalorder %v1805, 0
      %v1980 = vand.u32 %v1805, 2139095040
      %v1981 = vshrl.u32 %v1980, 23
      %v1982 = vsub.s32 %v1981, 127
      %v1983 = vand.u32 2147483647, %v1805
      %v1984 = vand.u32 %v1983, 8388607
      %v1985 = vor.u32 %v1984, 8388608
      %v1986 = vsub.s32 0, %v1985
      %v1987 = vadd.s32 %v1982, 1
      %vm1988 = vcmp.gt.s32.totalorder %v1987, 0
      %v1989 = vsel %vm1988, %v1987, 0
      %v1990 = vshrl.u32 %v1989, 5
      %v1991 = vand.u32 %v1989, 31
      %v1992 = vsub.s32 32, %v1991
      %v1993 = vshrl.u32 683565275, %v1992
      %v1994 = vshll.u32 683565275, %v1991
      %v1995 = vshrl.u32 2475754826, %v1992
      %v1996 = vor.u32 %v1994, %v1995
      %v1997 = vshll.u32 2475754826, %v1991
      %v1998 = vshrl.u32 2131351028, %v1992
      %v1999 = vor.u32 %v1997, %v1998
      %v2000 = vshll.u32 2131351028, %v1991
      %v2001 = vshrl.u32 2102212464, %v1992
      %v2002 = vor.u32 %v2000, %v2001
      %v2003 = vshll.u32 2102212464, %v1991
      %v2004 = vshrl.u32 920167782, %v1992
      %v2005 = vor.u32 %v2003, %v2004
      %v2006 = vshll.u32 920167782, %v1991
      %v2007 = vshrl.u32 1326507024, %v1992
      %v2008 = vor.u32 %v2006, %v2007
      %vm2009 = vcmp.lt.s32.totalorder %v1990, 1
      %vm2010 = vcmp.lt.s32.totalorder %v1990, 2
      %vm2011 = vcmp.lt.s32.totalorder %v1990, 3
      %vm2012 = vcmp.lt.s32.totalorder %v1990, 4
      %v2013 = vsel %vm2009, %v1993, %v1996
      %v2014 = vsel %vm2012, %v2002, 2102212464
      %v2015 = vsel %vm2011, %v1999, %v2014
      %v2016 = vsel %vm2010, %v2013, %v2015
      %v2017 = vsel %vm2009, %v1996, %v1999
      %v2018 = vsel %vm2012, %v2005, 920167782
      %v2019 = vsel %vm2011, %v2002, %v2018
      %v2020 = vsel %vm2010, %v2017, %v2019
      %v2021 = vsel %vm2009, %v1999, %v2002
      %v2022 = vsel %vm2012, %v2008, 1326507024
      %v2023 = vsel %vm2011, %v2005, %v2022
      %v2024 = vsel %vm2010, %v2021, %v2023
      %v2025 = vshll.u32 %v1985, 8
      %v2026 = vand.u32 %v2025, 65535
      %v2027 = vshrl.u32 %v2025, 16
      %v2028 = vand.u32 %v2024, 65535
      %v2029 = vshrl.u32 %v2024, 16
      %v2030 = vmul.u32 %v2026, %v2028
      %v2031 = vmul.u32 %v2026, %v2029
      %v2032 = vmul.u32 %v2027, %v2028
      %v2033 = vmul.u32 %v2027, %v2029
      %v2034 = vshll.u32 %v2031, 16
      %v2035 = vshrl.u32 %v2031, 16
      %v2036 = vshll.u32 %v2032, 16
      %v2037 = vshrl.u32 %v2032, 16
      %vm2038 = vc.u32 %v2030, %v2034
      %v2039 = vsel %vm2038, 1, 0
      %v2040 = vadd.s32 %v2030, %v2034
      %v2041 = vadd.s32 %v2033, %v2039
      %vm2042 = vc.u32 %v2040, %v2036
      %v2043 = vsel %vm2042, 1, 0
      %v2044 = vadd.s32 %v2040, %v2036
      %v2045 = vadd.s32 %v2041, %v2043
      %v2046 = vadd.s32 %v2045, %v2035
      %v2047 = vadd.s32 %v2046, %v2037
      %v2048 = vand.u32 %v2025, 65535
      %v2049 = vshrl.u32 %v2025, 16
      %v2050 = vand.u32 %v2020, 65535
      %v2051 = vshrl.u32 %v2020, 16
      %v2052 = vmul.u32 %v2048, %v2050
      %v2053 = vmul.u32 %v2048, %v2051
      %v2054 = vmul.u32 %v2049, %v2050
      %v2055 = vmul.u32 %v2049, %v2051
      %v2056 = vshll.u32 %v2053, 16
      %v2057 = vshrl.u32 %v2053, 16
      %v2058 = vshll.u32 %v2054, 16
      %v2059 = vshrl.u32 %v2054, 16
      %vm2060 = vc.u32 %v2052, %v2056
      %v2061 = vsel %vm2060, 1, 0
      %v2062 = vadd.s32 %v2052, %v2056
      %v2063 = vadd.s32 %v2055, %v2061
      %vm2064 = vc.u32 %v2062, %v2058
      %v2065 = vsel %vm2064, 1, 0
      %v2066 = vadd.s32 %v2062, %v2058
      %v2067 = vadd.s32 %v2063, %v2065
      %v2068 = vadd.s32 %v2067, %v2057
      %v2069 = vadd.s32 %v2068, %v2059
      %v2070 = vmul.u32 %v2025, %v2016
      %v2071 = vadd.s32 %v2047, %v2066
      %vm2072 = vc.u32 %v2047, %v2066
      %v2073 = vadd.s32 %v2069, 1
      %v2074 = vsel %vm2072, %v2073, %v2069
      %v2075 = vadd.s32 %v2070, %v2074
      %v2076 = vadd.s32 %v2075, 536870912
      %v2077 = vshrl.u32 %v2076, 30
      %v2078 = vshll.u32 %v2077, 30
      %v2079 = vsub.s32 %v2075, %v2078
      %vm2080 = vcmp.lt.s32.totalorder %v2079, 0
      %v2081 = vsub.s32 0, %v2079
      %v2082 = vsel %vm2080, %v2081, %v2079
      %v2083 = vclz %v2082
      %v2084 = vsub.s32 %v2083, 2
      %vm2085 = vcmp.gt.s32.totalorder 0, %v2084
      %v2086 = vsel %vm2085, 0, %v2084
      %v2087 = vsub.s32 32, %v2086
      %v2088 = vshll.u32 %v2079, %v2086
      %v2089 = vshrl.u32 %v2071, %v2087
      %v2090 = vor.u32 %v2088, %v2089
      %v2091 = vsub.s32 4294967266, %v2086
      %v2092 = vadd.s32 %v2091, 127
      %v2093 = vshll.u32 %v2092, 23
      %v2094 = vor.u32 4788187, %v2093
      %v2095 = vand.u32 2147483647, %v2094
      %v2097 = vcvt.s32.f32 %v2090
      %v2098 = vmul.f32 %v2097, %v2095
      %v2099 = vxor.u32 %v2098, 2147483648
      %v2100 = vsel %vm1979, %v2099, %v2098
      %v2101 = vsub.s32 4, %v2077
      %v2102 = vsel %vm1979, %v2101, %v2077
      %v2103 = vsel %vm1978, %v1805, %v2100
      %v2104 = vsel %vm1978, 0, %v2102
      %v2105 = vmul.f32 %v2103, %v2103
      %v2106 = vmul.f32 %v2105, -0.001358992
      %v2107 = vadd.f32 %v2106, 0.041655596
      %v2108 = vmul.f32 %v2105, %v2107
      %v2109 = vadd.f32 %v2108, -0.4999988
      %v2110 = vmul.f32 %v2105, %v2109
      %v2111 = vadd.f32 1.0, %v2110
      %v2112 = vmul.f32 %v2103, %v2103
      %v2113 = vmul.f32 %v2112, -0.00019511016
      %v2114 = vadd.f32 %v2113, 0.008332121
      %v2115 = vmul.f32 %v2112, %v2114
      %v2116 = vadd.f32 %v2115, -0.16666654
      %v2117 = vmul.f32 %v2112, %v2116
      %v2118 = vadd.f32 %v2117, 1.0
      %v2119 = vmul.f32 %v2118, %v2103
      %vm2120 = vweird.f32 %v1805
      %v2121 = vadd.s32 %v2104, 3
      %v2122 = vand.u32 %v2121, 3
      %vm2123 = vcmp.lt.s32.totalorder %v2122, 2
      %vm2124 = vcmp.eq.s32.totalorder %v2122, 0
      %v2125 = vxor.u32 %v2119, 2147483648
      %v2126 = vsel %vm2124, %v2111, %v2125
      %vm2127 = vcmp.eq.s32.totalorder %v2122, 2
      %v2128 = vxor.u32 %v2111, 2147483648
      %v2129 = vsel %vm2127, %v2128, %v2119
      %v2130 = vsel %vm2123, %v2126, %v2129
      %v2131 = vsel %vm2120, nan, %v2130
      %v2132 = vand.u32 2147483647, %v1808
      %vm2133 = vcmp.le.f32.partialorder %v2132, 0.7853982
      %vm2134 = vcmp.lt.s32.totalorder %v1808, 0
      %v2135 = vand.u32 %v1808, 2139095040
      %v2136 = vshrl.u32 %v2135, 23
      %v2137 = vsub.s32 %v2136, 127
      %v2138 = vand.u32 2147483647, %v1808
      %v2139 = vand.u32 %v2138, 8388607
      %v2140 = vor.u32 %v2139, 8388608
      %v2141 = vsub.s32 0, %v2140
      %v2142 = vadd.s32 %v2137, 1
      %vm2143 = vcmp.gt.s32.totalorder %v2142, 0
      %v2144 = vsel %vm2143, %v2142, 0
      %v2145 = vshrl.u32 %v2144, 5
      %v2146 = vand.u32 %v2144, 31
      %v2147 = vsub.s32 32, %v2146
      %v2148 = vshrl.u32 683565275, %v2147
      %v2149 = vshll.u32 683565275, %v2146
      %v2150 = vshrl.u32 2475754826, %v2147
      %v2151 = vor.u32 %v2149, %v2150
      %v2152 = vshll.u32 2475754826, %v2146
      %v2153 = vshrl.u32 2131351028, %v2147
      %v2154 = vor.u32 %v2152, %v2153
      %v2155 = vshll.u32 2131351028, %v2146
      %v2156 = vshrl.u32 2102212464, %v2147
      %v2157 = vor.u32 %v2155, %v2156
      %v2158 = vshll.u32 2102212464, %v2146
      %v2159 = vshrl.u32 920167782, %v2147
      %v2160 = vor.u32 %v2158, %v2159
      %v2161 = vshll.u32 920167782, %v2146
      %v2162 = vshrl.u32 1326507024, %v2147
      %v2163 = vor.u32 %v2161, %v2162
      %vm2164 = vcmp.lt.s32.totalorder %v2145, 1
      %vm2165 = vcmp.lt.s32.totalorder %v2145, 2
      %vm2166 = vcmp.lt.s32.totalorder %v2145, 3
      %vm2167 = vcmp.lt.s32.totalorder %v2145, 4
      %v2168 = vsel %vm2164, %v2148, %v2151
      %v2169 = vsel %vm2167, %v2157, 2102212464
      %v2170 = vsel %vm2166, %v2154, %v2169
      %v2171 = vsel %vm2165, %v2168, %v2170
      %v2172 = vsel %vm2164, %v2151, %v2154
      %v2173 = vsel %vm2167, %v2160, 920167782
      %v2174 = vsel %vm2166, %v2157, %v2173
      %v2175 = vsel %vm2165, %v2172, %v2174
      %v2176 = vsel %vm2164, %v2154, %v2157
      %v2177 = vsel %vm2167, %v2163, 1326507024
      %v2178 = vsel %vm2166, %v2160, %v2177
      %v2179 = vsel %vm2165, %v2176, %v2178
      %v2180 = vshll.u32 %v2140, 8
      %v2181 = vand.u32 %v2180, 65535
      %v2182 = vshrl.u32 %v2180, 16
      %v2183 = vand.u32 %v2179, 65535
      %v2184 = vshrl.u32 %v2179, 16
      %v2185 = vmul.u32 %v2181, %v2183
      %v2186 = vmul.u32 %v2181, %v2184
      %v2187 = vmul.u32 %v2182, %v2183
      %v2188 = vmul.u32 %v2182, %v2184
      %v2189 = vshll.u32 %v2186, 16
      %v2190 = vshrl.u32 %v2186, 16
      %v2191 = vshll.u32 %v2187, 16
      %v2192 = vshrl.u32 %v2187, 16
      %vm2193 = vc.u32 %v2185, %v2189
      %v2194 = vsel %vm2193, 1, 0
      %v2195 = vadd.s32 %v2185, %v2189
      %v2196 = vadd.s32 %v2188, %v2194
      %vm2197 = vc.u32 %v2195, %v2191
      %v2198 = vsel %vm2197, 1, 0
      %v2199 = vadd.s32 %v2195, %v2191
      %v2200 = vadd.s32 %v2196, %v2198
      %v2201 = vadd.s32 %v2200, %v2190
      %v2202 = vadd.s32 %v2201, %v2192
      %v2203 = vand.u32 %v2180, 65535
      %v2204 = vshrl.u32 %v2180, 16
      %v2205 = vand.u32 %v2175, 65535
      %v2206 = vshrl.u32 %v2175, 16
      %v2207 = vmul.u32 %v2203, %v2205
      %v2208 = vmul.u32 %v2203, %v2206
      %v2209 = vmul.u32 %v2204, %v2205
      %v2210 = vmul.u32 %v2204, %v2206
      %v2211 = vshll.u32 %v2208, 16
      %v2212 = vshrl.u32 %v2208, 16
      %v2213 = vshll.u32 %v2209, 16
      %v2214 = vshrl.u32 %v2209, 16
      %vm2215 = vc.u32 %v2207, %v2211
      %v2216 = vsel %vm2215, 1, 0
      %v2217 = vadd.s32 %v2207, %v2211
      %v2218 = vadd.s32 %v2210, %v2216
      %vm2219 = vc.u32 %v2217, %v2213
      %v2220 = vsel %vm2219, 1, 0
      %v2221 = vadd.s32 %v2217, %v2213
      %v2222 = vadd.s32 %v2218, %v2220
      %v2223 = vadd.s32 %v2222, %v2212
      %v2224 = vadd.s32 %v2223, %v2214
      %v2225 = vmul.u32 %v2180, %v2171
      %v2226 = vadd.s32 %v2202, %v2221
      %vm2227 = vc.u32 %v2202, %v2221
      %v2228 = vadd.s32 %v2224, 1
      %v2229 = vsel %vm2227, %v2228, %v2224
      %v2230 = vadd.s32 %v2225, %v2229
      %v2231 = vadd.s32 %v2230, 536870912
      %v2232 = vshrl.u32 %v2231, 30
      %v2233 = vshll.u32 %v2232, 30
      %v2234 = vsub.s32 %v2230, %v2233
      %vm2235 = vcmp.lt.s32.totalorder %v2234, 0
      %v2236 = vsub.s32 0, %v2234
      %v2237 = vsel %vm2235, %v2236, %v2234
      %v2238 = vclz %v2237
      %v2239 = vsub.s32 %v2238, 2
      %vm2240 = vcmp.gt.s32.totalorder 0, %v2239
      %v2241 = vsel %vm2240, 0, %v2239
      %v2242 = vsub.s32 32, %v2241
      %v2243 = vshll.u32 %v2234, %v2241
      %v2244 = vshrl.u32 %v2226, %v2242
      %v2245 = vor.u32 %v2243, %v2244
      %v2246 = vsub.s32 4294967266, %v2241
      %v2247 = vadd.s32 %v2246, 127
      %v2248 = vshll.u32 %v2247, 23
      %v2249 = vor.u32 4788187, %v2248
      %v2250 = vand.u32 2147483647, %v2249
      %v2252 = vcvt.s32.f32 %v2245
      %v2253 = vmul.f32 %v2252, %v2250
      %v2254 = vxor.u32 %v2253, 2147483648
      %v2255 = vsel %vm2134, %v2254, %v2253
      %v2256 = vsub.s32 4, %v2232
      %v2257 = vsel %vm2134, %v2256, %v2232
      %v2258 = vsel %vm2133, %v1808, %v2255
      %v2259 = vsel %vm2133, 0, %v2257
      %v2260 = vmul.f32 %v2258, %v2258
      %v2261 = vmul.f32 %v2260, -0.001358992
      %v2262 = vadd.f32 %v2261, 0.041655596
      %v2263 = vmul.f32 %v2260, %v2262
      %v2264 = vadd.f32 %v2263, -0.4999988
      %v2265 = vmul.f32 %v2260, %v2264
      %v2266 = vadd.f32 1.0, %v2265
      %v2267 = vmul.f32 %v2258, %v2258
      %v2268 = vmul.f32 %v2267, -0.00019511016
      %v2269 = vadd.f32 %v2268, 0.008332121
      %v2270 = vmul.f32 %v2267, %v2269
      %v2271 = vadd.f32 %v2270, -0.16666654
      %v2272 = vmul.f32 %v2267, %v2271
      %v2273 = vadd.f32 %v2272, 1.0
      %v2274 = vmul.f32 %v2273, %v2258
      %vm2275 = vweird.f32 %v1808
      %v2276 = vadd.s32 %v2259, 3
      %v2277 = vand.u32 %v2276, 3
      %vm2278 = vcmp.lt.s32.totalorder %v2277, 2
      %vm2279 = vcmp.eq.s32.totalorder %v2277, 0
      %v2280 = vxor.u32 %v2274, 2147483648
      %v2281 = vsel %vm2279, %v2266, %v2280
      %vm2282 = vcmp.eq.s32.totalorder %v2277, 2
      %v2283 = vxor.u32 %v2266, 2147483648
      %v2284 = vsel %vm2282, %v2283, %v2274
      %v2285 = vsel %vm2278, %v2281, %v2284
      %v2286 = vsel %vm2275, nan, %v2285
      %v2287 = vand.u32 2147483647, %v1810
      %vm2288 = vcmp.le.f32.partialorder %v2287, 0.7853982
      %vm2289 = vcmp.lt.s32.totalorder %v1810, 0
      %v2290 = vand.u32 %v1810, 2139095040
      %v2291 = vshrl.u32 %v2290, 23
      %v2292 = vsub.s32 %v2291, 127
      %v2293 = vand.u32 2147483647, %v1810
      %v2294 = vand.u32 %v2293, 8388607
      %v2295 = vor.u32 %v2294, 8388608
      %v2296 = vsub.s32 0, %v2295
      %v2297 = vadd.s32 %v2292, 1
      %vm2298 = vcmp.gt.s32.totalorder %v2297, 0
      %v2299 = vsel %vm2298, %v2297, 0
      %v2300 = vshrl.u32 %v2299, 5
      %v2301 = vand.u32 %v2299, 31
      %v2302 = vsub.s32 32, %v2301
      %v2303 = vshrl.u32 683565275, %v2302
      %v2304 = vshll.u32 683565275, %v2301
      %v2305 = vshrl.u32 2475754826, %v2302
      %v2306 = vor.u32 %v2304, %v2305
      %v2307 = vshll.u32 2475754826, %v2301
      %v2308 = vshrl.u32 2131351028, %v2302
      %v2309 = vor.u32 %v2307, %v2308
      %v2310 = vshll.u32 2131351028, %v2301
      %v2311 = vshrl.u32 2102212464, %v2302
      %v2312 = vor.u32 %v2310, %v2311
      %v2313 = vshll.u32 2102212464, %v2301
      %v2314 = vshrl.u32 920167782, %v2302
      %v2315 = vor.u32 %v2313, %v2314
      %v2316 = vshll.u32 920167782, %v2301
      %v2317 = vshrl.u32 1326507024, %v2302
      %v2318 = vor.u32 %v2316, %v2317
      %vm2319 = vcmp.lt.s32.totalorder %v2300, 1
      %vm2320 = vcmp.lt.s32.totalorder %v2300, 2
      %vm2321 = vcmp.lt.s32.totalorder %v2300, 3
      %vm2322 = vcmp.lt.s32.totalorder %v2300, 4
      %v2323 = vsel %vm2319, %v2303, %v2306
      %v2324 = vsel %vm2322, %v2312, 2102212464
      %v2325 = vsel %vm2321, %v2309, %v2324
      %v2326 = vsel %vm2320, %v2323, %v2325
      %v2327 = vsel %vm2319, %v2306, %v2309
      %v2328 = vsel %vm2322, %v2315, 920167782
      %v2329 = vsel %vm2321, %v2312, %v2328
      %v2330 = vsel %vm2320, %v2327, %v2329
      %v2331 = vsel %vm2319, %v2309, %v2312
      %v2332 = vsel %vm2322, %v2318, 1326507024
      %v2333 = vsel %vm2321, %v2315, %v2332
      %v2334 = vsel %vm2320, %v2331, %v2333
      %v2335 = vshll.u32 %v2295, 8
      %v2336 = vand.u32 %v2335, 65535
      %v2337 = vshrl.u32 %v2335, 16
      %v2338 = vand.u32 %v2334, 65535
      %v2339 = vshrl.u32 %v2334, 16
      %v2340 = vmul.u32 %v2336, %v2338
      %v2341 = vmul.u32 %v2336, %v2339
      %v2342 = vmul.u32 %v2337, %v2338
      %v2343 = vmul.u32 %v2337, %v2339
      %v2344 = vshll.u32 %v2341, 16
      %v2345 = vshrl.u32 %v2341, 16
      %v2346 = vshll.u32 %v2342, 16
      %v2347 = vshrl.u32 %v2342, 16
      %vm2348 = vc.u32 %v2340, %v2344
      %v2349 = vsel %vm2348, 1, 0
      %v2350 = vadd.s32 %v2340, %v2344
      %v2351 = vadd.s32 %v2343, %v2349
      %vm2352 = vc.u32 %v2350, %v2346
      %v2353 = vsel %vm2352, 1, 0
      %v2354 = vadd.s32 %v2350, %v2346
      %v2355 = vadd.s32 %v2351, %v2353
      %v2356 = vadd.s32 %v2355, %v2345
      %v2357 = vadd.s32 %v2356, %v2347
      %v2358 = vand.u32 %v2335, 65535
      %v2359 = vshrl.u32 %v2335, 16
      %v2360 = vand.u32 %v2330, 65535
      %v2361 = vshrl.u32 %v2330, 16
      %v2362 = vmul.u32 %v2358, %v2360
      %v2363 = vmul.u32 %v2358, %v2361
      %v2364 = vmul.u32 %v2359, %v2360
      %v2365 = vmul.u32 %v2359, %v2361
      %v2366 = vshll.u32 %v2363, 16
      %v2367 = vshrl.u32 %v2363, 16
      %v2368 = vshll.u32 %v2364, 16
      %v2369 = vshrl.u32 %v2364, 16
      %vm2370 = vc.u32 %v2362, %v2366
      %v2371 = vsel %vm2370, 1, 0
      %v2372 = vadd.s32 %v2362, %v2366
      %v2373 = vadd.s32 %v2365, %v2371
      %vm2374 = vc.u32 %v2372, %v2368
      %v2375 = vsel %vm2374, 1, 0
      %v2376 = vadd.s32 %v2372, %v2368
      %v2377 = vadd.s32 %v2373, %v2375
      %v2378 = vadd.s32 %v2377, %v2367
      %v2379 = vadd.s32 %v2378, %v2369
      %v2380 = vmul.u32 %v2335, %v2326
      %v2381 = vadd.s32 %v2357, %v2376
      %vm2382 = vc.u32 %v2357, %v2376
      %v2383 = vadd.s32 %v2379, 1
      %v2384 = vsel %vm2382, %v2383, %v2379
      %v2385 = vadd.s32 %v2380, %v2384
      %v2386 = vadd.s32 %v2385, 536870912
      %v2387 = vshrl.u32 %v2386, 30
      %v2388 = vshll.u32 %v2387, 30
      %v2389 = vsub.s32 %v2385, %v2388
      %vm2390 = vcmp.lt.s32.totalorder %v2389, 0
      %v2391 = vsub.s32 0, %v2389
      %v2392 = vsel %vm2390, %v2391, %v2389
      %v2393 = vclz %v2392
      %v2394 = vsub.s32 %v2393, 2
      %vm2395 = vcmp.gt.s32.totalorder 0, %v2394
      %v2396 = vsel %vm2395, 0, %v2394
      %v2397 = vsub.s32 32, %v2396
      %v2398 = vshll.u32 %v2389, %v2396
      %v2399 = vshrl.u32 %v2381, %v2397
      %v2400 = vor.u32 %v2398, %v2399
      %v2401 = vsub.s32 4294967266, %v2396
      %v2402 = vadd.s32 %v2401, 127
      %v2403 = vshll.u32 %v2402, 23
      %v2404 = vor.u32 4788187, %v2403
      %v2405 = vand.u32 2147483647, %v2404
      %v2407 = vcvt.s32.f32 %v2400
      %v2408 = vmul.f32 %v2407, %v2405
      %v2409 = vxor.u32 %v2408, 2147483648
      %v2410 = vsel %vm2289, %v2409, %v2408
      %v2411 = vsub.s32 4, %v2387
      %v2412 = vsel %vm2289, %v2411, %v2387
      %v2413 = vsel %vm2288, %v1810, %v2410
      %v2414 = vsel %vm2288, 0, %v2412
      %v2415 = vmul.f32 %v2413, %v2413
      %v2416 = vmul.f32 %v2415, -0.001358992
      %v2417 = vadd.f32 %v2416, 0.041655596
      %v2418 = vmul.f32 %v2415, %v2417
      %v2419 = vadd.f32 %v2418, -0.4999988
      %v2420 = vmul.f32 %v2415, %v2419
      %v2421 = vadd.f32 1.0, %v2420
      %v2422 = vmul.f32 %v2413, %v2413
      %v2423 = vmul.f32 %v2422, -0.00019511016
      %v2424 = vadd.f32 %v2423, 0.008332121
      %v2425 = vmul.f32 %v2422, %v2424
      %v2426 = vadd.f32 %v2425, -0.16666654
      %v2427 = vmul.f32 %v2422, %v2426
      %v2428 = vadd.f32 %v2427, 1.0
      %v2429 = vmul.f32 %v2428, %v2413
      %vm2430 = vweird.f32 %v1810
      %v2431 = vadd.s32 %v2414, 3
      %v2432 = vand.u32 %v2431, 3
      %vm2433 = vcmp.lt.s32.totalorder %v2432, 2
      %vm2434 = vcmp.eq.s32.totalorder %v2432, 0
      %v2435 = vxor.u32 %v2429, 2147483648
      %v2436 = vsel %vm2434, %v2421, %v2435
      %vm2437 = vcmp.eq.s32.totalorder %v2432, 2
      %v2438 = vxor.u32 %v2421, 2147483648
      %v2439 = vsel %vm2437, %v2438, %v2429
      %v2440 = vsel %vm2433, %v2436, %v2439
      %v2441 = vsel %vm2430, nan, %v2440
      %v2442 = vand.u32 2147483647, %v1813
      %vm2443 = vcmp.le.f32.partialorder %v2442, 0.7853982
      %vm2444 = vcmp.lt.s32.totalorder %v1813, 0
      %v2445 = vand.u32 %v1813, 2139095040
      %v2446 = vshrl.u32 %v2445, 23
      %v2447 = vsub.s32 %v2446, 127
      %v2448 = vand.u32 2147483647, %v1813
      %v2449 = vand.u32 %v2448, 8388607
      %v2450 = vor.u32 %v2449, 8388608
      %v2451 = vsub.s32 0, %v2450
      %v2452 = vadd.s32 %v2447, 1
      %vm2453 = vcmp.gt.s32.totalorder %v2452, 0
      %v2454 = vsel %vm2453, %v2452, 0
      %v2455 = vshrl.u32 %v2454, 5
      %v2456 = vand.u32 %v2454, 31
      %v2457 = vsub.s32 32, %v2456
      %v2458 = vshrl.u32 683565275, %v2457
      %v2459 = vshll.u32 683565275, %v2456
      %v2460 = vshrl.u32 2475754826, %v2457
      %v2461 = vor.u32 %v2459, %v2460
      %v2462 = vshll.u32 2475754826, %v2456
      %v2463 = vshrl.u32 2131351028, %v2457
      %v2464 = vor.u32 %v2462, %v2463
      %v2465 = vshll.u32 2131351028, %v2456
      %v2466 = vshrl.u32 2102212464, %v2457
      %v2467 = vor.u32 %v2465, %v2466
      %v2468 = vshll.u32 2102212464, %v2456
      %v2469 = vshrl.u32 920167782, %v2457
      %v2470 = vor.u32 %v2468, %v2469
      %v2471 = vshll.u32 920167782, %v2456
      %v2472 = vshrl.u32 1326507024, %v2457
      %v2473 = vor.u32 %v2471, %v2472
      %vm2474 = vcmp.lt.s32.totalorder %v2455, 1
      %vm2475 = vcmp.lt.s32.totalorder %v2455, 2
      %vm2476 = vcmp.lt.s32.totalorder %v2455, 3
      %vm2477 = vcmp.lt.s32.totalorder %v2455, 4
      %v2478 = vsel %vm2474, %v2458, %v2461
      %v2479 = vsel %vm2477, %v2467, 2102212464
      %v2480 = vsel %vm2476, %v2464, %v2479
      %v2481 = vsel %vm2475, %v2478, %v2480
      %v2482 = vsel %vm2474, %v2461, %v2464
      %v2483 = vsel %vm2477, %v2470, 920167782
      %v2484 = vsel %vm2476, %v2467, %v2483
      %v2485 = vsel %vm2475, %v2482, %v2484
      %v2486 = vsel %vm2474, %v2464, %v2467
      %v2487 = vsel %vm2477, %v2473, 1326507024
      %v2488 = vsel %vm2476, %v2470, %v2487
      %v2489 = vsel %vm2475, %v2486, %v2488
      %v2490 = vshll.u32 %v2450, 8
      %v2491 = vand.u32 %v2490, 65535
      %v2492 = vshrl.u32 %v2490, 16
      %v2493 = vand.u32 %v2489, 65535
      %v2494 = vshrl.u32 %v2489, 16
      %v2495 = vmul.u32 %v2491, %v2493
      %v2496 = vmul.u32 %v2491, %v2494
      %v2497 = vmul.u32 %v2492, %v2493
      %v2498 = vmul.u32 %v2492, %v2494
      %v2499 = vshll.u32 %v2496, 16
      %v2500 = vshrl.u32 %v2496, 16
      %v2501 = vshll.u32 %v2497, 16
      %v2502 = vshrl.u32 %v2497, 16
      %vm2503 = vc.u32 %v2495, %v2499
      %v2504 = vsel %vm2503, 1, 0
      %v2505 = vadd.s32 %v2495, %v2499
      %v2506 = vadd.s32 %v2498, %v2504
      %vm2507 = vc.u32 %v2505, %v2501
      %v2508 = vsel %vm2507, 1, 0
      %v2509 = vadd.s32 %v2505, %v2501
      %v2510 = vadd.s32 %v2506, %v2508
      %v2511 = vadd.s32 %v2510, %v2500
      %v2512 = vadd.s32 %v2511, %v2502
      %v2513 = vand.u32 %v2490, 65535
      %v2514 = vshrl.u32 %v2490, 16
      %v2515 = vand.u32 %v2485, 65535
      %v2516 = vshrl.u32 %v2485, 16
      %v2517 = vmul.u32 %v2513, %v2515
      %v2518 = vmul.u32 %v2513, %v2516
      %v2519 = vmul.u32 %v2514, %v2515
      %v2520 = vmul.u32 %v2514, %v2516
      %v2521 = vshll.u32 %v2518, 16
      %v2522 = vshrl.u32 %v2518, 16
      %v2523 = vshll.u32 %v2519, 16
      %v2524 = vshrl.u32 %v2519, 16
      %vm2525 = vc.u32 %v2517, %v2521
      %v2526 = vsel %vm2525, 1, 0
      %v2527 = vadd.s32 %v2517, %v2521
      %v2528 = vadd.s32 %v2520, %v2526
      %vm2529 = vc.u32 %v2527, %v2523
      %v2530 = vsel %vm2529, 1, 0
      %v2531 = vadd.s32 %v2527, %v2523
      %v2532 = vadd.s32 %v2528, %v2530
      %v2533 = vadd.s32 %v2532, %v2522
      %v2534 = vadd.s32 %v2533, %v2524
      %v2535 = vmul.u32 %v2490, %v2481
      %v2536 = vadd.s32 %v2512, %v2531
      %vm2537 = vc.u32 %v2512, %v2531
      %v2538 = vadd.s32 %v2534, 1
      %v2539 = vsel %vm2537, %v2538, %v2534
      %v2540 = vadd.s32 %v2535, %v2539
      %v2541 = vadd.s32 %v2540, 536870912
      %v2542 = vshrl.u32 %v2541, 30
      %v2543 = vshll.u32 %v2542, 30
      %v2544 = vsub.s32 %v2540, %v2543
      %vm2545 = vcmp.lt.s32.totalorder %v2544, 0
      %v2546 = vsub.s32 0, %v2544
      %v2547 = vsel %vm2545, %v2546, %v2544
      %v2548 = vclz %v2547
      %v2549 = vsub.s32 %v2548, 2
      %vm2550 = vcmp.gt.s32.totalorder 0, %v2549
      %v2551 = vsel %vm2550, 0, %v2549
      %v2552 = vsub.s32 32, %v2551
      %v2553 = vshll.u32 %v2544, %v2551
      %v2554 = vshrl.u32 %v2536, %v2552
      %v2555 = vor.u32 %v2553, %v2554
      %v2556 = vsub.s32 4294967266, %v2551
      %v2557 = vadd.s32 %v2556, 127
      %v2558 = vshll.u32 %v2557, 23
      %v2559 = vor.u32 4788187, %v2558
      %v2560 = vand.u32 2147483647, %v2559
      %v2562 = vcvt.s32.f32 %v2555
      %v2563 = vmul.f32 %v2562, %v2560
      %v2564 = vxor.u32 %v2563, 2147483648
      %v2565 = vsel %vm2444, %v2564, %v2563
      %v2566 = vsub.s32 4, %v2542
      %v2567 = vsel %vm2444, %v2566, %v2542
      %v2568 = vsel %vm2443, %v1813, %v2565
      %v2569 = vsel %vm2443, 0, %v2567
      %v2570 = vmul.f32 %v2568, %v2568
      %v2571 = vmul.f32 %v2570, -0.001358992
      %v2572 = vadd.f32 %v2571, 0.041655596
      %v2573 = vmul.f32 %v2570, %v2572
      %v2574 = vadd.f32 %v2573, -0.4999988
      %v2575 = vmul.f32 %v2570, %v2574
      %v2576 = vadd.f32 1.0, %v2575
      %v2577 = vmul.f32 %v2568, %v2568
      %v2578 = vmul.f32 %v2577, -0.00019511016
      %v2579 = vadd.f32 %v2578, 0.008332121
      %v2580 = vmul.f32 %v2577, %v2579
      %v2581 = vadd.f32 %v2580, -0.16666654
      %v2582 = vmul.f32 %v2577, %v2581
      %v2583 = vadd.f32 %v2582, 1.0
      %v2584 = vmul.f32 %v2583, %v2568
      %vm2585 = vweird.f32 %v1813
      %v2586 = vadd.s32 %v2569, 3
      %v2587 = vand.u32 %v2586, 3
      %vm2588 = vcmp.lt.s32.totalorder %v2587, 2
      %vm2589 = vcmp.eq.s32.totalorder %v2587, 0
      %v2590 = vxor.u32 %v2584, 2147483648
      %v2591 = vsel %vm2589, %v2576, %v2590
      %vm2592 = vcmp.eq.s32.totalorder %v2587, 2
      %v2593 = vxor.u32 %v2576, 2147483648
      %v2594 = vsel %vm2592, %v2593, %v2584
      %v2595 = vsel %vm2588, %v2591, %v2594
      %v2596 = vsel %vm2585, nan, %v2595
      %v2597 = vand.u32 2147483647, %v1815
      %vm2598 = vcmp.le.f32.partialorder %v2597, 0.7853982
      %vm2599 = vcmp.lt.s32.totalorder %v1815, 0
      %v2600 = vand.u32 %v1815, 2139095040
      %v2601 = vshrl.u32 %v2600, 23
      %v2602 = vsub.s32 %v2601, 127
      %v2603 = vand.u32 2147483647, %v1815
      %v2604 = vand.u32 %v2603, 8388607
      %v2605 = vor.u32 %v2604, 8388608
      %v2606 = vsub.s32 0, %v2605
      %v2607 = vadd.s32 %v2602, 1
      %vm2608 = vcmp.gt.s32.totalorder %v2607, 0
      %v2609 = vsel %vm2608, %v2607, 0
      %v2610 = vshrl.u32 %v2609, 5
      %v2611 = vand.u32 %v2609, 31
      %v2612 = vsub.s32 32, %v2611
      %v2613 = vshrl.u32 683565275, %v2612
      %v2614 = vshll.u32 683565275, %v2611
      %v2615 = vshrl.u32 2475754826, %v2612
      %v2616 = vor.u32 %v2614, %v2615
      %v2617 = vshll.u32 2475754826, %v2611
      %v2618 = vshrl.u32 2131351028, %v2612
      %v2619 = vor.u32 %v2617, %v2618
      %v2620 = vshll.u32 2131351028, %v2611
      %v2621 = vshrl.u32 2102212464, %v2612
      %v2622 = vor.u32 %v2620, %v2621
      %v2623 = vshll.u32 2102212464, %v2611
      %v2624 = vshrl.u32 920167782, %v2612
      %v2625 = vor.u32 %v2623, %v2624
      %v2626 = vshll.u32 920167782, %v2611
      %v2627 = vshrl.u32 1326507024, %v2612
      %v2628 = vor.u32 %v2626, %v2627
      %vm2629 = vcmp.lt.s32.totalorder %v2610, 1
      %vm2630 = vcmp.lt.s32.totalorder %v2610, 2
      %vm2631 = vcmp.lt.s32.totalorder %v2610, 3
      %vm2632 = vcmp.lt.s32.totalorder %v2610, 4
      %v2633 = vsel %vm2629, %v2613, %v2616
      %v2634 = vsel %vm2632, %v2622, 2102212464
      %v2635 = vsel %vm2631, %v2619, %v2634
      %v2636 = vsel %vm2630, %v2633, %v2635
      %v2637 = vsel %vm2629, %v2616, %v2619
      %v2638 = vsel %vm2632, %v2625, 920167782
      %v2639 = vsel %vm2631, %v2622, %v2638
      %v2640 = vsel %vm2630, %v2637, %v2639
      %v2641 = vsel %vm2629, %v2619, %v2622
      %v2642 = vsel %vm2632, %v2628, 1326507024
      %v2643 = vsel %vm2631, %v2625, %v2642
      %v2644 = vsel %vm2630, %v2641, %v2643
      %v2645 = vshll.u32 %v2605, 8
      %v2646 = vand.u32 %v2645, 65535
      %v2647 = vshrl.u32 %v2645, 16
      %v2648 = vand.u32 %v2644, 65535
      %v2649 = vshrl.u32 %v2644, 16
      %v2650 = vmul.u32 %v2646, %v2648
      %v2651 = vmul.u32 %v2646, %v2649
      %v2652 = vmul.u32 %v2647, %v2648
      %v2653 = vmul.u32 %v2647, %v2649
      %v2654 = vshll.u32 %v2651, 16
      %v2655 = vshrl.u32 %v2651, 16
      %v2656 = vshll.u32 %v2652, 16
      %v2657 = vshrl.u32 %v2652, 16
      %vm2658 = vc.u32 %v2650, %v2654
      %v2659 = vsel %vm2658, 1, 0
      %v2660 = vadd.s32 %v2650, %v2654
      %v2661 = vadd.s32 %v2653, %v2659
      %vm2662 = vc.u32 %v2660, %v2656
      %v2663 = vsel %vm2662, 1, 0
      %v2664 = vadd.s32 %v2660, %v2656
      %v2665 = vadd.s32 %v2661, %v2663
      %v2666 = vadd.s32 %v2665, %v2655
      %v2667 = vadd.s32 %v2666, %v2657
      %v2668 = vand.u32 %v2645, 65535
      %v2669 = vshrl.u32 %v2645, 16
      %v2670 = vand.u32 %v2640, 65535
      %v2671 = vshrl.u32 %v2640, 16
      %v2672 = vmul.u32 %v2668, %v2670
      %v2673 = vmul.u32 %v2668, %v2671
      %v2674 = vmul.u32 %v2669, %v2670
      %v2675 = vmul.u32 %v2669, %v2671
      %v2676 = vshll.u32 %v2673, 16
      %v2677 = vshrl.u32 %v2673, 16
      %v2678 = vshll.u32 %v2674, 16
      %v2679 = vshrl.u32 %v2674, 16
      %vm2680 = vc.u32 %v2672, %v2676
      %v2681 = vsel %vm2680, 1, 0
      %v2682 = vadd.s32 %v2672, %v2676
      %v2683 = vadd.s32 %v2675, %v2681
      %vm2684 = vc.u32 %v2682, %v2678
      %v2685 = vsel %vm2684, 1, 0
      %v2686 = vadd.s32 %v2682, %v2678
      %v2687 = vadd.s32 %v2683, %v2685
      %v2688 = vadd.s32 %v2687, %v2677
      %v2689 = vadd.s32 %v2688, %v2679
      %v2690 = vmul.u32 %v2645, %v2636
      %v2691 = vadd.s32 %v2667, %v2686
      %vm2692 = vc.u32 %v2667, %v2686
      %v2693 = vadd.s32 %v2689, 1
      %v2694 = vsel %vm2692, %v2693, %v2689
      %v2695 = vadd.s32 %v2690, %v2694
      %v2696 = vadd.s32 %v2695, 536870912
      %v2697 = vshrl.u32 %v2696, 30
      %v2698 = vshll.u32 %v2697, 30
      %v2699 = vsub.s32 %v2695, %v2698
      %vm2700 = vcmp.lt.s32.totalorder %v2699, 0
      %v2701 = vsub.s32 0, %v2699
      %v2702 = vsel %vm2700, %v2701, %v2699
      %v2703 = vclz %v2702
      %v2704 = vsub.s32 %v2703, 2
      %vm2705 = vcmp.gt.s32.totalorder 0, %v2704
      %v2706 = vsel %vm2705, 0, %v2704
      %v2707 = vsub.s32 32, %v2706
      %v2708 = vshll.u32 %v2699, %v2706
      %v2709 = vshrl.u32 %v2691, %v2707
      %v2710 = vor.u32 %v2708, %v2709
      %v2711 = vsub.s32 4294967266, %v2706
      %v2712 = vadd.s32 %v2711, 127
      %v2713 = vshll.u32 %v2712, 23
      %v2714 = vor.u32 4788187, %v2713
      %v2715 = vand.u32 2147483647, %v2714
      %v2717 = vcvt.s32.f32 %v2710
      %v2718 = vmul.f32 %v2717, %v2715
      %v2719 = vxor.u32 %v2718, 2147483648
      %v2720 = vsel %vm2599, %v2719, %v2718
      %v2721 = vsub.s32 4, %v2697
      %v2722 = vsel %vm2599, %v2721, %v2697
      %v2723 = vsel %vm2598, %v1815, %v2720
      %v2724 = vsel %vm2598, 0, %v2722
      %v2725 = vmul.f32 %v2723, %v2723
      %v2726 = vmul.f32 %v2725, -0.001358992
      %v2727 = vadd.f32 %v2726, 0.041655596
      %v2728 = vmul.f32 %v2725, %v2727
      %v2729 = vadd.f32 %v2728, -0.4999988
      %v2730 = vmul.f32 %v2725, %v2729
      %v2731 = vadd.f32 1.0, %v2730
      %v2732 = vmul.f32 %v2723, %v2723
      %v2733 = vmul.f32 %v2732, -0.00019511016
      %v2734 = vadd.f32 %v2733, 0.008332121
      %v2735 = vmul.f32 %v2732, %v2734
      %v2736 = vadd.f32 %v2735, -0.16666654
      %v2737 = vmul.f32 %v2732, %v2736
      %v2738 = vadd.f32 %v2737, 1.0
      %v2739 = vmul.f32 %v2738, %v2723
      %vm2740 = vweird.f32 %v1815
      %v2741 = vadd.s32 %v2724, 3
      %v2742 = vand.u32 %v2741, 3
      %vm2743 = vcmp.lt.s32.totalorder %v2742, 2
      %vm2744 = vcmp.eq.s32.totalorder %v2742, 0
      %v2745 = vxor.u32 %v2739, 2147483648
      %v2746 = vsel %vm2744, %v2731, %v2745
      %vm2747 = vcmp.eq.s32.totalorder %v2742, 2
      %v2748 = vxor.u32 %v2731, 2147483648
      %v2749 = vsel %vm2747, %v2748, %v2739
      %v2750 = vsel %vm2743, %v2746, %v2749
      %v2751 = vsel %vm2740, nan, %v2750
      %v2752 = vand.u32 2147483647, %v1818
      %vm2753 = vcmp.le.f32.partialorder %v2752, 0.7853982
      %vm2754 = vcmp.lt.s32.totalorder %v1818, 0
      %v2755 = vand.u32 %v1818, 2139095040
      %v2756 = vshrl.u32 %v2755, 23
      %v2757 = vsub.s32 %v2756, 127
      %v2758 = vand.u32 2147483647, %v1818
      %v2759 = vand.u32 %v2758, 8388607
      %v2760 = vor.u32 %v2759, 8388608
      %v2761 = vsub.s32 0, %v2760
      %v2762 = vadd.s32 %v2757, 1
      %vm2763 = vcmp.gt.s32.totalorder %v2762, 0
      %v2764 = vsel %vm2763, %v2762, 0
      %v2765 = vshrl.u32 %v2764, 5
      %v2766 = vand.u32 %v2764, 31
      %v2767 = vsub.s32 32, %v2766
      %v2768 = vshrl.u32 683565275, %v2767
      %v2769 = vshll.u32 683565275, %v2766
      %v2770 = vshrl.u32 2475754826, %v2767
      %v2771 = vor.u32 %v2769, %v2770
      %v2772 = vshll.u32 2475754826, %v2766
      %v2773 = vshrl.u32 2131351028, %v2767
      %v2774 = vor.u32 %v2772, %v2773
      %v2775 = vshll.u32 2131351028, %v2766
      %v2776 = vshrl.u32 2102212464, %v2767
      %v2777 = vor.u32 %v2775, %v2776
      %v2778 = vshll.u32 2102212464, %v2766
      %v2779 = vshrl.u32 920167782, %v2767
      %v2780 = vor.u32 %v2778, %v2779
      %v2781 = vshll.u32 920167782, %v2766
      %v2782 = vshrl.u32 1326507024, %v2767
      %v2783 = vor.u32 %v2781, %v2782
      %vm2784 = vcmp.lt.s32.totalorder %v2765, 1
      %vm2785 = vcmp.lt.s32.totalorder %v2765, 2
      %vm2786 = vcmp.lt.s32.totalorder %v2765, 3
      %vm2787 = vcmp.lt.s32.totalorder %v2765, 4
      %v2788 = vsel %vm2784, %v2768, %v2771
      %v2789 = vsel %vm2787, %v2777, 2102212464
      %v2790 = vsel %vm2786, %v2774, %v2789
      %v2791 = vsel %vm2785, %v2788, %v2790
      %v2792 = vsel %vm2784, %v2771, %v2774
      %v2793 = vsel %vm2787, %v2780, 920167782
      %v2794 = vsel %vm2786, %v2777, %v2793
      %v2795 = vsel %vm2785, %v2792, %v2794
      %v2796 = vsel %vm2784, %v2774, %v2777
      %v2797 = vsel %vm2787, %v2783, 1326507024
      %v2798 = vsel %vm2786, %v2780, %v2797
      %v2799 = vsel %vm2785, %v2796, %v2798
      %v2800 = vshll.u32 %v2760, 8
      %v2801 = vand.u32 %v2800, 65535
      %v2802 = vshrl.u32 %v2800, 16
      %v2803 = vand.u32 %v2799, 65535
      %v2804 = vshrl.u32 %v2799, 16
      %v2805 = vmul.u32 %v2801, %v2803
      %v2806 = vmul.u32 %v2801, %v2804
      %v2807 = vmul.u32 %v2802, %v2803
      %v2808 = vmul.u32 %v2802, %v2804
      %v2809 = vshll.u32 %v2806, 16
      %v2810 = vshrl.u32 %v2806, 16
      %v2811 = vshll.u32 %v2807, 16
      %v2812 = vshrl.u32 %v2807, 16
      %vm2813 = vc.u32 %v2805, %v2809
      %v2814 = vsel %vm2813, 1, 0
      %v2815 = vadd.s32 %v2805, %v2809
      %v2816 = vadd.s32 %v2808, %v2814
      %vm2817 = vc.u32 %v2815, %v2811
      %v2818 = vsel %vm2817, 1, 0
      %v2819 = vadd.s32 %v2815, %v2811
      %v2820 = vadd.s32 %v2816, %v2818
      %v2821 = vadd.s32 %v2820, %v2810
      %v2822 = vadd.s32 %v2821, %v2812
      %v2823 = vand.u32 %v2800, 65535
      %v2824 = vshrl.u32 %v2800, 16
      %v2825 = vand.u32 %v2795, 65535
      %v2826 = vshrl.u32 %v2795, 16
      %v2827 = vmul.u32 %v2823, %v2825
      %v2828 = vmul.u32 %v2823, %v2826
      %v2829 = vmul.u32 %v2824, %v2825
      %v2830 = vmul.u32 %v2824, %v2826
      %v2831 = vshll.u32 %v2828, 16
      %v2832 = vshrl.u32 %v2828, 16
      %v2833 = vshll.u32 %v2829, 16
      %v2834 = vshrl.u32 %v2829, 16
      %vm2835 = vc.u32 %v2827, %v2831
      %v2836 = vsel %vm2835, 1, 0
      %v2837 = vadd.s32 %v2827, %v2831
      %v2838 = vadd.s32 %v2830, %v2836
      %vm2839 = vc.u32 %v2837, %v2833
      %v2840 = vsel %vm2839, 1, 0
      %v2841 = vadd.s32 %v2837, %v2833
      %v2842 = vadd.s32 %v2838, %v2840
      %v2843 = vadd.s32 %v2842, %v2832
      %v2844 = vadd.s32 %v2843, %v2834
      %v2845 = vmul.u32 %v2800, %v2791
      %v2846 = vadd.s32 %v2822, %v2841
      %vm2847 = vc.u32 %v2822, %v2841
      %v2848 = vadd.s32 %v2844, 1
      %v2849 = vsel %vm2847, %v2848, %v2844
      %v2850 = vadd.s32 %v2845, %v2849
      %v2851 = vadd.s32 %v2850, 536870912
      %v2852 = vshrl.u32 %v2851, 30
      %v2853 = vshll.u32 %v2852, 30
      %v2854 = vsub.s32 %v2850, %v2853
      %vm2855 = vcmp.lt.s32.totalorder %v2854, 0
      %v2856 = vsub.s32 0, %v2854
      %v2857 = vsel %vm2855, %v2856, %v2854
      %v2858 = vclz %v2857
      %v2859 = vsub.s32 %v2858, 2
      %vm2860 = vcmp.gt.s32.totalorder 0, %v2859
      %v2861 = vsel %vm2860, 0, %v2859
      %v2862 = vsub.s32 32, %v2861
      %v2863 = vshll.u32 %v2854, %v2861
      %v2864 = vshrl.u32 %v2846, %v2862
      %v2865 = vor.u32 %v2863, %v2864
      %v2866 = vsub.s32 4294967266, %v2861
      %v2867 = vadd.s32 %v2866, 127
      %v2868 = vshll.u32 %v2867, 23
      %v2869 = vor.u32 4788187, %v2868
      %v2870 = vand.u32 2147483647, %v2869
      %v2872 = vcvt.s32.f32 %v2865
      %v2873 = vmul.f32 %v2872, %v2870
      %v2874 = vxor.u32 %v2873, 2147483648
      %v2875 = vsel %vm2754, %v2874, %v2873
      %v2876 = vsub.s32 4, %v2852
      %v2877 = vsel %vm2754, %v2876, %v2852
      %v2878 = vsel %vm2753, %v1818, %v2875
      %v2879 = vsel %vm2753, 0, %v2877
      %v2880 = vmul.f32 %v2878, %v2878
      %v2881 = vmul.f32 %v2880, -0.001358992
      %v2882 = vadd.f32 %v2881, 0.041655596
      %v2883 = vmul.f32 %v2880, %v2882
      %v2884 = vadd.f32 %v2883, -0.4999988
      %v2885 = vmul.f32 %v2880, %v2884
      %v2886 = vadd.f32 1.0, %v2885
      %v2887 = vmul.f32 %v2878, %v2878
      %v2888 = vmul.f32 %v2887, -0.00019511016
      %v2889 = vadd.f32 %v2888, 0.008332121
      %v2890 = vmul.f32 %v2887, %v2889
      %v2891 = vadd.f32 %v2890, -0.16666654
      %v2892 = vmul.f32 %v2887, %v2891
      %v2893 = vadd.f32 %v2892, 1.0
      %v2894 = vmul.f32 %v2893, %v2878
      %vm2895 = vweird.f32 %v1818
      %v2896 = vadd.s32 %v2879, 3
      %v2897 = vand.u32 %v2896, 3
      %vm2898 = vcmp.lt.s32.totalorder %v2897, 2
      %vm2899 = vcmp.eq.s32.totalorder %v2897, 0
      %v2900 = vxor.u32 %v2894, 2147483648
      %v2901 = vsel %vm2899, %v2886, %v2900
      %vm2902 = vcmp.eq.s32.totalorder %v2897, 2
      %v2903 = vxor.u32 %v2886, 2147483648
      %v2904 = vsel %vm2902, %v2903, %v2894
      %v2905 = vsel %vm2898, %v2901, %v2904
      %v2906 = vsel %vm2895, nan, %v2905
      %v2907 = vand.u32 2147483647, %v1820
      %vm2908 = vcmp.le.f32.partialorder %v2907, 0.7853982
      %vm2909 = vcmp.lt.s32.totalorder %v1820, 0
      %v2910 = vand.u32 %v1820, 2139095040
      %v2911 = vshrl.u32 %v2910, 23
      %v2912 = vsub.s32 %v2911, 127
      %v2913 = vand.u32 2147483647, %v1820
      %v2914 = vand.u32 %v2913, 8388607
      %v2915 = vor.u32 %v2914, 8388608
      %v2916 = vsub.s32 0, %v2915
      %v2917 = vadd.s32 %v2912, 1
      %vm2918 = vcmp.gt.s32.totalorder %v2917, 0
      %v2919 = vsel %vm2918, %v2917, 0
      %v2920 = vshrl.u32 %v2919, 5
      %v2921 = vand.u32 %v2919, 31
      %v2922 = vsub.s32 32, %v2921
      %v2923 = vshrl.u32 683565275, %v2922
      %v2924 = vshll.u32 683565275, %v2921
      %v2925 = vshrl.u32 2475754826, %v2922
      %v2926 = vor.u32 %v2924, %v2925
      %v2927 = vshll.u32 2475754826, %v2921
      %v2928 = vshrl.u32 2131351028, %v2922
      %v2929 = vor.u32 %v2927, %v2928
      %v2930 = vshll.u32 2131351028, %v2921
      %v2931 = vshrl.u32 2102212464, %v2922
      %v2932 = vor.u32 %v2930, %v2931
      %v2933 = vshll.u32 2102212464, %v2921
      %v2934 = vshrl.u32 920167782, %v2922
      %v2935 = vor.u32 %v2933, %v2934
      %v2936 = vshll.u32 920167782, %v2921
      %v2937 = vshrl.u32 1326507024, %v2922
      %v2938 = vor.u32 %v2936, %v2937
      %vm2939 = vcmp.lt.s32.totalorder %v2920, 1
      %vm2940 = vcmp.lt.s32.totalorder %v2920, 2
      %vm2941 = vcmp.lt.s32.totalorder %v2920, 3
      %vm2942 = vcmp.lt.s32.totalorder %v2920, 4
      %v2943 = vsel %vm2939, %v2923, %v2926
      %v2944 = vsel %vm2942, %v2932, 2102212464
      %v2945 = vsel %vm2941, %v2929, %v2944
      %v2946 = vsel %vm2940, %v2943, %v2945
      %v2947 = vsel %vm2939, %v2926, %v2929
      %v2948 = vsel %vm2942, %v2935, 920167782
      %v2949 = vsel %vm2941, %v2932, %v2948
      %v2950 = vsel %vm2940, %v2947, %v2949
      %v2951 = vsel %vm2939, %v2929, %v2932
      %v2952 = vsel %vm2942, %v2938, 1326507024
      %v2953 = vsel %vm2941, %v2935, %v2952
      %v2954 = vsel %vm2940, %v2951, %v2953
      %v2955 = vshll.u32 %v2915, 8
      %v2956 = vand.u32 %v2955, 65535
      %v2957 = vshrl.u32 %v2955, 16
      %v2958 = vand.u32 %v2954, 65535
      %v2959 = vshrl.u32 %v2954, 16
      %v2960 = vmul.u32 %v2956, %v2958
      %v2961 = vmul.u32 %v2956, %v2959
      %v2962 = vmul.u32 %v2957, %v2958
      %v2963 = vmul.u32 %v2957, %v2959
      %v2964 = vshll.u32 %v2961, 16
      %v2965 = vshrl.u32 %v2961, 16
      %v2966 = vshll.u32 %v2962, 16
      %v2967 = vshrl.u32 %v2962, 16
      %vm2968 = vc.u32 %v2960, %v2964
      %v2969 = vsel %vm2968, 1, 0
      %v2970 = vadd.s32 %v2960, %v2964
      %v2971 = vadd.s32 %v2963, %v2969
      %vm2972 = vc.u32 %v2970, %v2966
      %v2973 = vsel %vm2972, 1, 0
      %v2974 = vadd.s32 %v2970, %v2966
      %v2975 = vadd.s32 %v2971, %v2973
      %v2976 = vadd.s32 %v2975, %v2965
      %v2977 = vadd.s32 %v2976, %v2967
      %v2978 = vand.u32 %v2955, 65535
      %v2979 = vshrl.u32 %v2955, 16
      %v2980 = vand.u32 %v2950, 65535
      %v2981 = vshrl.u32 %v2950, 16
      %v2982 = vmul.u32 %v2978, %v2980
      %v2983 = vmul.u32 %v2978, %v2981
      %v2984 = vmul.u32 %v2979, %v2980
      %v2985 = vmul.u32 %v2979, %v2981
      %v2986 = vshll.u32 %v2983, 16
      %v2987 = vshrl.u32 %v2983, 16
      %v2988 = vshll.u32 %v2984, 16
      %v2989 = vshrl.u32 %v2984, 16
      %vm2990 = vc.u32 %v2982, %v2986
      %v2991 = vsel %vm2990, 1, 0
      %v2992 = vadd.s32 %v2982, %v2986
      %v2993 = vadd.s32 %v2985, %v2991
      %vm2994 = vc.u32 %v2992, %v2988
      %v2995 = vsel %vm2994, 1, 0
      %v2996 = vadd.s32 %v2992, %v2988
      %v2997 = vadd.s32 %v2993, %v2995
      %v2998 = vadd.s32 %v2997, %v2987
      %v2999 = vadd.s32 %v2998, %v2989
      %v3000 = vmul.u32 %v2955, %v2946
      %v3001 = vadd.s32 %v2977, %v2996
      %vm3002 = vc.u32 %v2977, %v2996
      %v3003 = vadd.s32 %v2999, 1
      %v3004 = vsel %vm3002, %v3003, %v2999
      %v3005 = vadd.s32 %v3000, %v3004
      %v3006 = vadd.s32 %v3005, 536870912
      %v3007 = vshrl.u32 %v3006, 30
      %v3008 = vshll.u32 %v3007, 30
      %v3009 = vsub.s32 %v3005, %v3008
      %vm3010 = vcmp.lt.s32.totalorder %v3009, 0
      %v3011 = vsub.s32 0, %v3009
      %v3012 = vsel %vm3010, %v3011, %v3009
      %v3013 = vclz %v3012
      %v3014 = vsub.s32 %v3013, 2
      %vm3015 = vcmp.gt.s32.totalorder 0, %v3014
      %v3016 = vsel %vm3015, 0, %v3014
      %v3017 = vsub.s32 32, %v3016
      %v3018 = vshll.u32 %v3009, %v3016
      %v3019 = vshrl.u32 %v3001, %v3017
      %v3020 = vor.u32 %v3018, %v3019
      %v3021 = vsub.s32 4294967266, %v3016
      %v3022 = vadd.s32 %v3021, 127
      %v3023 = vshll.u32 %v3022, 23
      %v3024 = vor.u32 4788187, %v3023
      %v3025 = vand.u32 2147483647, %v3024
      %v3027 = vcvt.s32.f32 %v3020
      %v3028 = vmul.f32 %v3027, %v3025
      %v3029 = vxor.u32 %v3028, 2147483648
      %v3030 = vsel %vm2909, %v3029, %v3028
      %v3031 = vsub.s32 4, %v3007
      %v3032 = vsel %vm2909, %v3031, %v3007
      %v3033 = vsel %vm2908, %v1820, %v3030
      %v3034 = vsel %vm2908, 0, %v3032
      %v3035 = vmul.f32 %v3033, %v3033
      %v3036 = vmul.f32 %v3035, -0.001358992
      %v3037 = vadd.f32 %v3036, 0.041655596
      %v3038 = vmul.f32 %v3035, %v3037
      %v3039 = vadd.f32 %v3038, -0.4999988
      %v3040 = vmul.f32 %v3035, %v3039
      %v3041 = vadd.f32 1.0, %v3040
      %v3042 = vmul.f32 %v3033, %v3033
      %v3043 = vmul.f32 %v3042, -0.00019511016
      %v3044 = vadd.f32 %v3043, 0.008332121
      %v3045 = vmul.f32 %v3042, %v3044
      %v3046 = vadd.f32 %v3045, -0.16666654
      %v3047 = vmul.f32 %v3042, %v3046
      %v3048 = vadd.f32 %v3047, 1.0
      %v3049 = vmul.f32 %v3048, %v3033
      %vm3050 = vweird.f32 %v1820
      %v3051 = vadd.s32 %v3034, 3
      %v3052 = vand.u32 %v3051, 3
      %vm3053 = vcmp.lt.s32.totalorder %v3052, 2
      %vm3054 = vcmp.eq.s32.totalorder %v3052, 0
      %v3055 = vxor.u32 %v3049, 2147483648
      %v3056 = vsel %vm3054, %v3041, %v3055
      %vm3057 = vcmp.eq.s32.totalorder %v3052, 2
      %v3058 = vxor.u32 %v3041, 2147483648
      %v3059 = vsel %vm3057, %v3058, %v3049
      %v3060 = vsel %vm3053, %v3056, %v3059
      %v3061 = vsel %vm3050, nan, %v3060
      %v3062 = vpack.c.bf16 %v2131, %v1976
      %v3063 = vpack.c.bf16 %v2441, %v2286
      %v3064 = vpack.c.bf16 %v2751, %v2596
      %v3065 = vpack.c.bf16 %v3061, %v2906
      %v3066 = vld [vmem:[%s5] sm:$0xf]
      %v3067 = vld [vmem:[%s5 + $0x4] sm:$0xf]
      %v3068 = vld [vmem:[%s5 + $0x8] sm:$0xf]
      %v3069 = vld [vmem:[%s5 + $0xc] sm:$0xf]
      %v3070 = vld [vmem:[%s5 + $0x10] sm:$0xf]
      %v3071 = vld [vmem:[%s5 + $0x14] sm:$0xf]
      %v3072 = vld [vmem:[%s5 + $0x18] sm:$0xf]
      %v3073 = vld [vmem:[%s5 + $0x1c] sm:$0xf]
      %v3074 = vld [vmem:[%s5 + $0x20] sm:$0xf]
      %v3075 = vld [vmem:[%s5 + $0x24] sm:$0xf]
      %v3076 = vld [vmem:[%s5 + $0x28] sm:$0xf]
      %v3077 = vld [vmem:[%s5 + $0x2c] sm:$0xf]
      %v3078 = vld [vmem:[%s5 + $0x30] sm:$0xf]
      %v3079 = vld [vmem:[%s5 + $0x34] sm:$0xf]
      %v3080 = vld [vmem:[%s5 + $0x38] sm:$0xf]
      %v3081 = vld [vmem:[%s5 + $0x3c] sm:$0xf]
      %v3082 = vld [vmem:[%s6] sm:$0x1]
      %v3084 = vperm.slane %v3082, 0
      %v3102 = vunpack.c.l.b16 %v3066
      %v3103 = vunpack.c.l.b16 %v3067
      %v3104 = vunpack.c.l.b16 %v3068
      %v3105 = vunpack.c.l.b16 %v3069
      %v3106 = vunpack.c.l.b16 %v3070
      %v3107 = vunpack.c.l.b16 %v3071
      %v3108 = vunpack.c.l.b16 %v3072
      %v3109 = vunpack.c.l.b16 %v3073
      %v3110 = vunpack.c.l.b16 %v3074
      %v3111 = vunpack.c.l.b16 %v3075
      %v3112 = vunpack.c.l.b16 %v3076
      %v3113 = vunpack.c.l.b16 %v3077
      %v3114 = vunpack.c.l.b16 %v3078
      %v3115 = vunpack.c.l.b16 %v3079
      %v3116 = vunpack.c.l.b16 %v3080
      %v3117 = vunpack.c.l.b16 %v3081
      %v3118 = vpack.c.b16 %v3103, %v3102
      %v3119 = vpack.c.b16 %v3105, %v3104
      %v3120 = vpack.c.b16 %v3107, %v3106
      %v3121 = vpack.c.b16 %v3109, %v3108
      %v3122 = vpack.c.b16 %v3111, %v3110
      %v3123 = vpack.c.b16 %v3113, %v3112
      %v3124 = vpack.c.b16 %v3115, %v3114
      %v3125 = vpack.c.b16 %v3117, %v3116
      %3134 = vmatpush.bf16.msra.mxu0 %v3125
      %3135 = vmatpush.bf16.msra.mxu0 %v3124
      %3136 = vmatpush.bf16.msra.mxu0 %v3123
      %3137 = vmatpush.bf16.msra.mxu0 %v3122
      %3138 = vmatpush.bf16.msra.mxu0 %v3121
      %3139 = vmatpush.bf16.msra.mxu0 %v3120
      %3140 = vmatpush.bf16.msra.mxu0 %v3119
      %3141 = vmatpush.bf16.msra.mxu0 %v3118
      %3142 = vmatmul.bf16.gmra.mxu0 %v3062
      %v3143 = vpop.f32.mrf.mxu0
      %v3144 = vadd.f32 %v3084, %v3143
      %v3145 = vpop.f32.mrf.mxu0
      %v3146 = vadd.f32 %v3084, %v3145
      %3147 = vmatmul.bf16.gmra.mxu0 %v3063
      %v3148 = vpop.f32.mrf.mxu0
      %v3149 = vadd.f32 %v3084, %v3148
      %v3150 = vpop.f32.mrf.mxu0
      %v3151 = vadd.f32 %v3084, %v3150
      %3152 = vmatmul.bf16.gmra.mxu0 %v3064
      %v3153 = vpop.f32.mrf.mxu0
      %v3154 = vadd.f32 %v3084, %v3153
      %v3155 = vpop.f32.mrf.mxu0
      %v3156 = vadd.f32 %v3084, %v3155
      %3157 = vmatmul.bf16.gmra.mxu0 %v3065
      %v3158 = vpop.f32.mrf.mxu0
      %v3159 = vadd.f32 %v3084, %v3158
      %v3160 = vpop.f32.mrf.mxu0
      %v3161 = vadd.f32 %v3084, %v3160
      %3162 = vdwg.mxu0
      %v3163 = vand.u32 2147483647, %v3144
      %vm3164 = vcmp.le.f32.partialorder %v3163, 0.7853982
      %vm3165 = vcmp.lt.s32.totalorder %v3144, 0
      %v3166 = vand.u32 %v3144, 2139095040
      %v3167 = vshrl.u32 %v3166, 23
      %v3168 = vsub.s32 %v3167, 127
      %v3169 = vand.u32 2147483647, %v3144
      %v3170 = vand.u32 %v3169, 8388607
      %v3171 = vor.u32 %v3170, 8388608
      %v3172 = vsub.s32 0, %v3171
      %v3173 = vadd.s32 %v3168, 1
      %vm3174 = vcmp.gt.s32.totalorder %v3173, 0
      %v3175 = vsel %vm3174, %v3173, 0
      %v3176 = vshrl.u32 %v3175, 5
      %v3177 = vand.u32 %v3175, 31
      %v3178 = vsub.s32 32, %v3177
      %v3179 = vshrl.u32 683565275, %v3178
      %v3180 = vshll.u32 683565275, %v3177
      %v3181 = vshrl.u32 2475754826, %v3178
      %v3182 = vor.u32 %v3180, %v3181
      %v3183 = vshll.u32 2475754826, %v3177
      %v3184 = vshrl.u32 2131351028, %v3178
      %v3185 = vor.u32 %v3183, %v3184
      %v3186 = vshll.u32 2131351028, %v3177
      %v3187 = vshrl.u32 2102212464, %v3178
      %v3188 = vor.u32 %v3186, %v3187
      %v3189 = vshll.u32 2102212464, %v3177
      %v3190 = vshrl.u32 920167782, %v3178
      %v3191 = vor.u32 %v3189, %v3190
      %v3192 = vshll.u32 920167782, %v3177
      %v3193 = vshrl.u32 1326507024, %v3178
      %v3194 = vor.u32 %v3192, %v3193
      %vm3195 = vcmp.lt.s32.totalorder %v3176, 1
      %vm3196 = vcmp.lt.s32.totalorder %v3176, 2
      %vm3197 = vcmp.lt.s32.totalorder %v3176, 3
      %vm3198 = vcmp.lt.s32.totalorder %v3176, 4
      %v3199 = vsel %vm3195, %v3179, %v3182
      %v3200 = vsel %vm3198, %v3188, 2102212464
      %v3201 = vsel %vm3197, %v3185, %v3200
      %v3202 = vsel %vm3196, %v3199, %v3201
      %v3203 = vsel %vm3195, %v3182, %v3185
      %v3204 = vsel %vm3198, %v3191, 920167782
      %v3205 = vsel %vm3197, %v3188, %v3204
      %v3206 = vsel %vm3196, %v3203, %v3205
      %v3207 = vsel %vm3195, %v3185, %v3188
      %v3208 = vsel %vm3198, %v3194, 1326507024
      %v3209 = vsel %vm3197, %v3191, %v3208
      %v3210 = vsel %vm3196, %v3207, %v3209
      %v3211 = vshll.u32 %v3171, 8
      %v3212 = vand.u32 %v3211, 65535
      %v3213 = vshrl.u32 %v3211, 16
      %v3214 = vand.u32 %v3210, 65535
      %v3215 = vshrl.u32 %v3210, 16
      %v3216 = vmul.u32 %v3212, %v3214
      %v3217 = vmul.u32 %v3212, %v3215
      %v3218 = vmul.u32 %v3213, %v3214
      %v3219 = vmul.u32 %v3213, %v3215
      %v3220 = vshll.u32 %v3217, 16
      %v3221 = vshrl.u32 %v3217, 16
      %v3222 = vshll.u32 %v3218, 16
      %v3223 = vshrl.u32 %v3218, 16
      %vm3224 = vc.u32 %v3216, %v3220
      %v3225 = vsel %vm3224, 1, 0
      %v3226 = vadd.s32 %v3216, %v3220
      %v3227 = vadd.s32 %v3219, %v3225
      %vm3228 = vc.u32 %v3226, %v3222
      %v3229 = vsel %vm3228, 1, 0
      %v3230 = vadd.s32 %v3226, %v3222
      %v3231 = vadd.s32 %v3227, %v3229
      %v3232 = vadd.s32 %v3231, %v3221
      %v3233 = vadd.s32 %v3232, %v3223
      %v3234 = vand.u32 %v3211, 65535
      %v3235 = vshrl.u32 %v3211, 16
      %v3236 = vand.u32 %v3206, 65535
      %v3237 = vshrl.u32 %v3206, 16
      %v3238 = vmul.u32 %v3234, %v3236
      %v3239 = vmul.u32 %v3234, %v3237
      %v3240 = vmul.u32 %v3235, %v3236
      %v3241 = vmul.u32 %v3235, %v3237
      %v3242 = vshll.u32 %v3239, 16
      %v3243 = vshrl.u32 %v3239, 16
      %v3244 = vshll.u32 %v3240, 16
      %v3245 = vshrl.u32 %v3240, 16
      %vm3246 = vc.u32 %v3238, %v3242
      %v3247 = vsel %vm3246, 1, 0
      %v3248 = vadd.s32 %v3238, %v3242
      %v3249 = vadd.s32 %v3241, %v3247
      %vm3250 = vc.u32 %v3248, %v3244
      %v3251 = vsel %vm3250, 1, 0
      %v3252 = vadd.s32 %v3248, %v3244
      %v3253 = vadd.s32 %v3249, %v3251
      %v3254 = vadd.s32 %v3253, %v3243
      %v3255 = vadd.s32 %v3254, %v3245
      %v3256 = vmul.u32 %v3211, %v3202
      %v3257 = vadd.s32 %v3233, %v3252
      %vm3258 = vc.u32 %v3233, %v3252
      %v3259 = vadd.s32 %v3255, 1
      %v3260 = vsel %vm3258, %v3259, %v3255
      %v3261 = vadd.s32 %v3256, %v3260
      %v3262 = vadd.s32 %v3261, 536870912
      %v3263 = vshrl.u32 %v3262, 30
      %v3264 = vshll.u32 %v3263, 30
      %v3265 = vsub.s32 %v3261, %v3264
      %vm3266 = vcmp.lt.s32.totalorder %v3265, 0
      %v3267 = vsub.s32 0, %v3265
      %v3268 = vsel %vm3266, %v3267, %v3265
      %v3269 = vclz %v3268
      %v3270 = vsub.s32 %v3269, 2
      %vm3271 = vcmp.gt.s32.totalorder 0, %v3270
      %v3272 = vsel %vm3271, 0, %v3270
      %v3273 = vsub.s32 32, %v3272
      %v3274 = vshll.u32 %v3265, %v3272
      %v3275 = vshrl.u32 %v3257, %v3273
      %v3276 = vor.u32 %v3274, %v3275
      %v3277 = vsub.s32 4294967266, %v3272
      %v3278 = vadd.s32 %v3277, 127
      %v3279 = vshll.u32 %v3278, 23
      %v3280 = vor.u32 4788187, %v3279
      %v3281 = vand.u32 2147483647, %v3280
      %v3283 = vcvt.s32.f32 %v3276
      %v3284 = vmul.f32 %v3283, %v3281
      %v3285 = vxor.u32 %v3284, 2147483648
      %v3286 = vsel %vm3165, %v3285, %v3284
      %v3287 = vsub.s32 4, %v3263
      %v3288 = vsel %vm3165, %v3287, %v3263
      %v3289 = vsel %vm3164, %v3144, %v3286
      %v3290 = vsel %vm3164, 0, %v3288
      %v3291 = vmul.f32 %v3289, %v3289
      %v3292 = vmul.f32 %v3291, -0.001358992
      %v3293 = vadd.f32 %v3292, 0.041655596
      %v3294 = vmul.f32 %v3291, %v3293
      %v3295 = vadd.f32 %v3294, -0.4999988
      %v3296 = vmul.f32 %v3291, %v3295
      %v3297 = vadd.f32 1.0, %v3296
      %v3298 = vmul.f32 %v3289, %v3289
      %v3299 = vmul.f32 %v3298, -0.00019511016
      %v3300 = vadd.f32 %v3299, 0.008332121
      %v3301 = vmul.f32 %v3298, %v3300
      %v3302 = vadd.f32 %v3301, -0.16666654
      %v3303 = vmul.f32 %v3298, %v3302
      %v3304 = vadd.f32 %v3303, 1.0
      %v3305 = vmul.f32 %v3304, %v3289
      %vm3306 = vweird.f32 %v3144
      %v3307 = vadd.s32 %v3290, 3
      %v3308 = vand.u32 %v3307, 3
      %vm3309 = vcmp.lt.s32.totalorder %v3308, 2
      %vm3310 = vcmp.eq.s32.totalorder %v3308, 0
      %v3311 = vxor.u32 %v3305, 2147483648
      %v3312 = vsel %vm3310, %v3297, %v3311
      %vm3313 = vcmp.eq.s32.totalorder %v3308, 2
      %v3314 = vxor.u32 %v3297, 2147483648
      %v3315 = vsel %vm3313, %v3314, %v3305
      %v3316 = vsel %vm3309, %v3312, %v3315
      %v3317 = vsel %vm3306, nan, %v3316
      %v3318 = vand.u32 2147483647, %v3146
      %vm3319 = vcmp.le.f32.partialorder %v3318, 0.7853982
      %vm3320 = vcmp.lt.s32.totalorder %v3146, 0
      %v3321 = vand.u32 %v3146, 2139095040
      %v3322 = vshrl.u32 %v3321, 23
      %v3323 = vsub.s32 %v3322, 127
      %v3324 = vand.u32 2147483647, %v3146
      %v3325 = vand.u32 %v3324, 8388607
      %v3326 = vor.u32 %v3325, 8388608
      %v3327 = vsub.s32 0, %v3326
      %v3328 = vadd.s32 %v3323, 1
      %vm3329 = vcmp.gt.s32.totalorder %v3328, 0
      %v3330 = vsel %vm3329, %v3328, 0
      %v3331 = vshrl.u32 %v3330, 5
      %v3332 = vand.u32 %v3330, 31
      %v3333 = vsub.s32 32, %v3332
      %v3334 = vshrl.u32 683565275, %v3333
      %v3335 = vshll.u32 683565275, %v3332
      %v3336 = vshrl.u32 2475754826, %v3333
      %v3337 = vor.u32 %v3335, %v3336
      %v3338 = vshll.u32 2475754826, %v3332
      %v3339 = vshrl.u32 2131351028, %v3333
      %v3340 = vor.u32 %v3338, %v3339
      %v3341 = vshll.u32 2131351028, %v3332
      %v3342 = vshrl.u32 2102212464, %v3333
      %v3343 = vor.u32 %v3341, %v3342
      %v3344 = vshll.u32 2102212464, %v3332
      %v3345 = vshrl.u32 920167782, %v3333
      %v3346 = vor.u32 %v3344, %v3345
      %v3347 = vshll.u32 920167782, %v3332
      %v3348 = vshrl.u32 1326507024, %v3333
      %v3349 = vor.u32 %v3347, %v3348
      %vm3350 = vcmp.lt.s32.totalorder %v3331, 1
      %vm3351 = vcmp.lt.s32.totalorder %v3331, 2
      %vm3352 = vcmp.lt.s32.totalorder %v3331, 3
      %vm3353 = vcmp.lt.s32.totalorder %v3331, 4
      %v3354 = vsel %vm3350, %v3334, %v3337
      %v3355 = vsel %vm3353, %v3343, 2102212464
      %v3356 = vsel %vm3352, %v3340, %v3355
      %v3357 = vsel %vm3351, %v3354, %v3356
      %v3358 = vsel %vm3350, %v3337, %v3340
      %v3359 = vsel %vm3353, %v3346, 920167782
      %v3360 = vsel %vm3352, %v3343, %v3359
      %v3361 = vsel %vm3351, %v3358, %v3360
      %v3362 = vsel %vm3350, %v3340, %v3343
      %v3363 = vsel %vm3353, %v3349, 1326507024
      %v3364 = vsel %vm3352, %v3346, %v3363
      %v3365 = vsel %vm3351, %v3362, %v3364
      %v3366 = vshll.u32 %v3326, 8
      %v3367 = vand.u32 %v3366, 65535
      %v3368 = vshrl.u32 %v3366, 16
      %v3369 = vand.u32 %v3365, 65535
      %v3370 = vshrl.u32 %v3365, 16
      %v3371 = vmul.u32 %v3367, %v3369
      %v3372 = vmul.u32 %v3367, %v3370
      %v3373 = vmul.u32 %v3368, %v3369
      %v3374 = vmul.u32 %v3368, %v3370
      %v3375 = vshll.u32 %v3372, 16
      %v3376 = vshrl.u32 %v3372, 16
      %v3377 = vshll.u32 %v3373, 16
      %v3378 = vshrl.u32 %v3373, 16
      %vm3379 = vc.u32 %v3371, %v3375
      %v3380 = vsel %vm3379, 1, 0
      %v3381 = vadd.s32 %v3371, %v3375
      %v3382 = vadd.s32 %v3374, %v3380
      %vm3383 = vc.u32 %v3381, %v3377
      %v3384 = vsel %vm3383, 1, 0
      %v3385 = vadd.s32 %v3381, %v3377
      %v3386 = vadd.s32 %v3382, %v3384
      %v3387 = vadd.s32 %v3386, %v3376
      %v3388 = vadd.s32 %v3387, %v3378
      %v3389 = vand.u32 %v3366, 65535
      %v3390 = vshrl.u32 %v3366, 16
      %v3391 = vand.u32 %v3361, 65535
      %v3392 = vshrl.u32 %v3361, 16
      %v3393 = vmul.u32 %v3389, %v3391
      %v3394 = vmul.u32 %v3389, %v3392
      %v3395 = vmul.u32 %v3390, %v3391
      %v3396 = vmul.u32 %v3390, %v3392
      %v3397 = vshll.u32 %v3394, 16
      %v3398 = vshrl.u32 %v3394, 16
      %v3399 = vshll.u32 %v3395, 16
      %v3400 = vshrl.u32 %v3395, 16
      %vm3401 = vc.u32 %v3393, %v3397
      %v3402 = vsel %vm3401, 1, 0
      %v3403 = vadd.s32 %v3393, %v3397
      %v3404 = vadd.s32 %v3396, %v3402
      %vm3405 = vc.u32 %v3403, %v3399
      %v3406 = vsel %vm3405, 1, 0
      %v3407 = vadd.s32 %v3403, %v3399
      %v3408 = vadd.s32 %v3404, %v3406
      %v3409 = vadd.s32 %v3408, %v3398
      %v3410 = vadd.s32 %v3409, %v3400
      %v3411 = vmul.u32 %v3366, %v3357
      %v3412 = vadd.s32 %v3388, %v3407
      %vm3413 = vc.u32 %v3388, %v3407
      %v3414 = vadd.s32 %v3410, 1
      %v3415 = vsel %vm3413, %v3414, %v3410
      %v3416 = vadd.s32 %v3411, %v3415
      %v3417 = vadd.s32 %v3416, 536870912
      %v3418 = vshrl.u32 %v3417, 30
      %v3419 = vshll.u32 %v3418, 30
      %v3420 = vsub.s32 %v3416, %v3419
      %vm3421 = vcmp.lt.s32.totalorder %v3420, 0
      %v3422 = vsub.s32 0, %v3420
      %v3423 = vsel %vm3421, %v3422, %v3420
      %v3424 = vclz %v3423
      %v3425 = vsub.s32 %v3424, 2
      %vm3426 = vcmp.gt.s32.totalorder 0, %v3425
      %v3427 = vsel %vm3426, 0, %v3425
      %v3428 = vsub.s32 32, %v3427
      %v3429 = vshll.u32 %v3420, %v3427
      %v3430 = vshrl.u32 %v3412, %v3428
      %v3431 = vor.u32 %v3429, %v3430
      %v3432 = vsub.s32 4294967266, %v3427
      %v3433 = vadd.s32 %v3432, 127
      %v3434 = vshll.u32 %v3433, 23
      %v3435 = vor.u32 4788187, %v3434
      %v3436 = vand.u32 2147483647, %v3435
      %v3438 = vcvt.s32.f32 %v3431
      %v3439 = vmul.f32 %v3438, %v3436
      %v3440 = vxor.u32 %v3439, 2147483648
      %v3441 = vsel %vm3320, %v3440, %v3439
      %v3442 = vsub.s32 4, %v3418
      %v3443 = vsel %vm3320, %v3442, %v3418
      %v3444 = vsel %vm3319, %v3146, %v3441
      %v3445 = vsel %vm3319, 0, %v3443
      %v3446 = vmul.f32 %v3444, %v3444
      %v3447 = vmul.f32 %v3446, -0.001358992
      %v3448 = vadd.f32 %v3447, 0.041655596
      %v3449 = vmul.f32 %v3446, %v3448
      %v3450 = vadd.f32 %v3449, -0.4999988
      %v3451 = vmul.f32 %v3446, %v3450
      %v3452 = vadd.f32 1.0, %v3451
      %v3453 = vmul.f32 %v3444, %v3444
      %v3454 = vmul.f32 %v3453, -0.00019511016
      %v3455 = vadd.f32 %v3454, 0.008332121
      %v3456 = vmul.f32 %v3453, %v3455
      %v3457 = vadd.f32 %v3456, -0.16666654
      %v3458 = vmul.f32 %v3453, %v3457
      %v3459 = vadd.f32 %v3458, 1.0
      %v3460 = vmul.f32 %v3459, %v3444
      %vm3461 = vweird.f32 %v3146
      %v3462 = vadd.s32 %v3445, 3
      %v3463 = vand.u32 %v3462, 3
      %vm3464 = vcmp.lt.s32.totalorder %v3463, 2
      %vm3465 = vcmp.eq.s32.totalorder %v3463, 0
      %v3466 = vxor.u32 %v3460, 2147483648
      %v3467 = vsel %vm3465, %v3452, %v3466
      %vm3468 = vcmp.eq.s32.totalorder %v3463, 2
      %v3469 = vxor.u32 %v3452, 2147483648
      %v3470 = vsel %vm3468, %v3469, %v3460
      %v3471 = vsel %vm3464, %v3467, %v3470
      %v3472 = vsel %vm3461, nan, %v3471
      %v3473 = vand.u32 2147483647, %v3149
      %vm3474 = vcmp.le.f32.partialorder %v3473, 0.7853982
      %vm3475 = vcmp.lt.s32.totalorder %v3149, 0
      %v3476 = vand.u32 %v3149, 2139095040
      %v3477 = vshrl.u32 %v3476, 23
      %v3478 = vsub.s32 %v3477, 127
      %v3479 = vand.u32 2147483647, %v3149
      %v3480 = vand.u32 %v3479, 8388607
      %v3481 = vor.u32 %v3480, 8388608
      %v3482 = vsub.s32 0, %v3481
      %v3483 = vadd.s32 %v3478, 1
      %vm3484 = vcmp.gt.s32.totalorder %v3483, 0
      %v3485 = vsel %vm3484, %v3483, 0
      %v3486 = vshrl.u32 %v3485, 5
      %v3487 = vand.u32 %v3485, 31
      %v3488 = vsub.s32 32, %v3487
      %v3489 = vshrl.u32 683565275, %v3488
      %v3490 = vshll.u32 683565275, %v3487
      %v3491 = vshrl.u32 2475754826, %v3488
      %v3492 = vor.u32 %v3490, %v3491
      %v3493 = vshll.u32 2475754826, %v3487
      %v3494 = vshrl.u32 2131351028, %v3488
      %v3495 = vor.u32 %v3493, %v3494
      %v3496 = vshll.u32 2131351028, %v3487
      %v3497 = vshrl.u32 2102212464, %v3488
      %v3498 = vor.u32 %v3496, %v3497
      %v3499 = vshll.u32 2102212464, %v3487
      %v3500 = vshrl.u32 920167782, %v3488
      %v3501 = vor.u32 %v3499, %v3500
      %v3502 = vshll.u32 920167782, %v3487
      %v3503 = vshrl.u32 1326507024, %v3488
      %v3504 = vor.u32 %v3502, %v3503
      %vm3505 = vcmp.lt.s32.totalorder %v3486, 1
      %vm3506 = vcmp.lt.s32.totalorder %v3486, 2
      %vm3507 = vcmp.lt.s32.totalorder %v3486, 3
      %vm3508 = vcmp.lt.s32.totalorder %v3486, 4
      %v3509 = vsel %vm3505, %v3489, %v3492
      %v3510 = vsel %vm3508, %v3498, 2102212464
      %v3511 = vsel %vm3507, %v3495, %v3510
      %v3512 = vsel %vm3506, %v3509, %v3511
      %v3513 = vsel %vm3505, %v3492, %v3495
      %v3514 = vsel %vm3508, %v3501, 920167782
      %v3515 = vsel %vm3507, %v3498, %v3514
      %v3516 = vsel %vm3506, %v3513, %v3515
      %v3517 = vsel %vm3505, %v3495, %v3498
      %v3518 = vsel %vm3508, %v3504, 1326507024
      %v3519 = vsel %vm3507, %v3501, %v3518
      %v3520 = vsel %vm3506, %v3517, %v3519
      %v3521 = vshll.u32 %v3481, 8
      %v3522 = vand.u32 %v3521, 65535
      %v3523 = vshrl.u32 %v3521, 16
      %v3524 = vand.u32 %v3520, 65535
      %v3525 = vshrl.u32 %v3520, 16
      %v3526 = vmul.u32 %v3522, %v3524
      %v3527 = vmul.u32 %v3522, %v3525
      %v3528 = vmul.u32 %v3523, %v3524
      %v3529 = vmul.u32 %v3523, %v3525
      %v3530 = vshll.u32 %v3527, 16
      %v3531 = vshrl.u32 %v3527, 16
      %v3532 = vshll.u32 %v3528, 16
      %v3533 = vshrl.u32 %v3528, 16
      %vm3534 = vc.u32 %v3526, %v3530
      %v3535 = vsel %vm3534, 1, 0
      %v3536 = vadd.s32 %v3526, %v3530
      %v3537 = vadd.s32 %v3529, %v3535
      %vm3538 = vc.u32 %v3536, %v3532
      %v3539 = vsel %vm3538, 1, 0
      %v3540 = vadd.s32 %v3536, %v3532
      %v3541 = vadd.s32 %v3537, %v3539
      %v3542 = vadd.s32 %v3541, %v3531
      %v3543 = vadd.s32 %v3542, %v3533
      %v3544 = vand.u32 %v3521, 65535
      %v3545 = vshrl.u32 %v3521, 16
      %v3546 = vand.u32 %v3516, 65535
      %v3547 = vshrl.u32 %v3516, 16
      %v3548 = vmul.u32 %v3544, %v3546
      %v3549 = vmul.u32 %v3544, %v3547
      %v3550 = vmul.u32 %v3545, %v3546
      %v3551 = vmul.u32 %v3545, %v3547
      %v3552 = vshll.u32 %v3549, 16
      %v3553 = vshrl.u32 %v3549, 16
      %v3554 = vshll.u32 %v3550, 16
      %v3555 = vshrl.u32 %v3550, 16
      %vm3556 = vc.u32 %v3548, %v3552
      %v3557 = vsel %vm3556, 1, 0
      %v3558 = vadd.s32 %v3548, %v3552
      %v3559 = vadd.s32 %v3551, %v3557
      %vm3560 = vc.u32 %v3558, %v3554
      %v3561 = vsel %vm3560, 1, 0
      %v3562 = vadd.s32 %v3558, %v3554
      %v3563 = vadd.s32 %v3559, %v3561
      %v3564 = vadd.s32 %v3563, %v3553
      %v3565 = vadd.s32 %v3564, %v3555
      %v3566 = vmul.u32 %v3521, %v3512
      %v3567 = vadd.s32 %v3543, %v3562
      %vm3568 = vc.u32 %v3543, %v3562
      %v3569 = vadd.s32 %v3565, 1
      %v3570 = vsel %vm3568, %v3569, %v3565
      %v3571 = vadd.s32 %v3566, %v3570
      %v3572 = vadd.s32 %v3571, 536870912
      %v3573 = vshrl.u32 %v3572, 30
      %v3574 = vshll.u32 %v3573, 30
      %v3575 = vsub.s32 %v3571, %v3574
      %vm3576 = vcmp.lt.s32.totalorder %v3575, 0
      %v3577 = vsub.s32 0, %v3575
      %v3578 = vsel %vm3576, %v3577, %v3575
      %v3579 = vclz %v3578
      %v3580 = vsub.s32 %v3579, 2
      %vm3581 = vcmp.gt.s32.totalorder 0, %v3580
      %v3582 = vsel %vm3581, 0, %v3580
      %v3583 = vsub.s32 32, %v3582
      %v3584 = vshll.u32 %v3575, %v3582
      %v3585 = vshrl.u32 %v3567, %v3583
      %v3586 = vor.u32 %v3584, %v3585
      %v3587 = vsub.s32 4294967266, %v3582
      %v3588 = vadd.s32 %v3587, 127
      %v3589 = vshll.u32 %v3588, 23
      %v3590 = vor.u32 4788187, %v3589
      %v3591 = vand.u32 2147483647, %v3590
      %v3593 = vcvt.s32.f32 %v3586
      %v3594 = vmul.f32 %v3593, %v3591
      %v3595 = vxor.u32 %v3594, 2147483648
      %v3596 = vsel %vm3475, %v3595, %v3594
      %v3597 = vsub.s32 4, %v3573
      %v3598 = vsel %vm3475, %v3597, %v3573
      %v3599 = vsel %vm3474, %v3149, %v3596
      %v3600 = vsel %vm3474, 0, %v3598
      %v3601 = vmul.f32 %v3599, %v3599
      %v3602 = vmul.f32 %v3601, -0.001358992
      %v3603 = vadd.f32 %v3602, 0.041655596
      %v3604 = vmul.f32 %v3601, %v3603
      %v3605 = vadd.f32 %v3604, -0.4999988
      %v3606 = vmul.f32 %v3601, %v3605
      %v3607 = vadd.f32 1.0, %v3606
      %v3608 = vmul.f32 %v3599, %v3599
      %v3609 = vmul.f32 %v3608, -0.00019511016
      %v3610 = vadd.f32 %v3609, 0.008332121
      %v3611 = vmul.f32 %v3608, %v3610
      %v3612 = vadd.f32 %v3611, -0.16666654
      %v3613 = vmul.f32 %v3608, %v3612
      %v3614 = vadd.f32 %v3613, 1.0
      %v3615 = vmul.f32 %v3614, %v3599
      %vm3616 = vweird.f32 %v3149
      %v3617 = vadd.s32 %v3600, 3
      %v3618 = vand.u32 %v3617, 3
      %vm3619 = vcmp.lt.s32.totalorder %v3618, 2
      %vm3620 = vcmp.eq.s32.totalorder %v3618, 0
      %v3621 = vxor.u32 %v3615, 2147483648
      %v3622 = vsel %vm3620, %v3607, %v3621
      %vm3623 = vcmp.eq.s32.totalorder %v3618, 2
      %v3624 = vxor.u32 %v3607, 2147483648
      %v3625 = vsel %vm3623, %v3624, %v3615
      %v3626 = vsel %vm3619, %v3622, %v3625
      %v3627 = vsel %vm3616, nan, %v3626
      %v3628 = vand.u32 2147483647, %v3151
      %vm3629 = vcmp.le.f32.partialorder %v3628, 0.7853982
      %vm3630 = vcmp.lt.s32.totalorder %v3151, 0
      %v3631 = vand.u32 %v3151, 2139095040
      %v3632 = vshrl.u32 %v3631, 23
      %v3633 = vsub.s32 %v3632, 127
      %v3634 = vand.u32 2147483647, %v3151
      %v3635 = vand.u32 %v3634, 8388607
      %v3636 = vor.u32 %v3635, 8388608
      %v3637 = vsub.s32 0, %v3636
      %v3638 = vadd.s32 %v3633, 1
      %vm3639 = vcmp.gt.s32.totalorder %v3638, 0
      %v3640 = vsel %vm3639, %v3638, 0
      %v3641 = vshrl.u32 %v3640, 5
      %v3642 = vand.u32 %v3640, 31
      %v3643 = vsub.s32 32, %v3642
      %v3644 = vshrl.u32 683565275, %v3643
      %v3645 = vshll.u32 683565275, %v3642
      %v3646 = vshrl.u32 2475754826, %v3643
      %v3647 = vor.u32 %v3645, %v3646
      %v3648 = vshll.u32 2475754826, %v3642
      %v3649 = vshrl.u32 2131351028, %v3643
      %v3650 = vor.u32 %v3648, %v3649
      %v3651 = vshll.u32 2131351028, %v3642
      %v3652 = vshrl.u32 2102212464, %v3643
      %v3653 = vor.u32 %v3651, %v3652
      %v3654 = vshll.u32 2102212464, %v3642
      %v3655 = vshrl.u32 920167782, %v3643
      %v3656 = vor.u32 %v3654, %v3655
      %v3657 = vshll.u32 920167782, %v3642
      %v3658 = vshrl.u32 1326507024, %v3643
      %v3659 = vor.u32 %v3657, %v3658
      %vm3660 = vcmp.lt.s32.totalorder %v3641, 1
      %vm3661 = vcmp.lt.s32.totalorder %v3641, 2
      %vm3662 = vcmp.lt.s32.totalorder %v3641, 3
      %vm3663 = vcmp.lt.s32.totalorder %v3641, 4
      %v3664 = vsel %vm3660, %v3644, %v3647
      %v3665 = vsel %vm3663, %v3653, 2102212464
      %v3666 = vsel %vm3662, %v3650, %v3665
      %v3667 = vsel %vm3661, %v3664, %v3666
      %v3668 = vsel %vm3660, %v3647, %v3650
      %v3669 = vsel %vm3663, %v3656, 920167782
      %v3670 = vsel %vm3662, %v3653, %v3669
      %v3671 = vsel %vm3661, %v3668, %v3670
      %v3672 = vsel %vm3660, %v3650, %v3653
      %v3673 = vsel %vm3663, %v3659, 1326507024
      %v3674 = vsel %vm3662, %v3656, %v3673
      %v3675 = vsel %vm3661, %v3672, %v3674
      %v3676 = vshll.u32 %v3636, 8
      %v3677 = vand.u32 %v3676, 65535
      %v3678 = vshrl.u32 %v3676, 16
      %v3679 = vand.u32 %v3675, 65535
      %v3680 = vshrl.u32 %v3675, 16
      %v3681 = vmul.u32 %v3677, %v3679
      %v3682 = vmul.u32 %v3677, %v3680
      %v3683 = vmul.u32 %v3678, %v3679
      %v3684 = vmul.u32 %v3678, %v3680
      %v3685 = vshll.u32 %v3682, 16
      %v3686 = vshrl.u32 %v3682, 16
      %v3687 = vshll.u32 %v3683, 16
      %v3688 = vshrl.u32 %v3683, 16
      %vm3689 = vc.u32 %v3681, %v3685
      %v3690 = vsel %vm3689, 1, 0
      %v3691 = vadd.s32 %v3681, %v3685
      %v3692 = vadd.s32 %v3684, %v3690
      %vm3693 = vc.u32 %v3691, %v3687
      %v3694 = vsel %vm3693, 1, 0
      %v3695 = vadd.s32 %v3691, %v3687
      %v3696 = vadd.s32 %v3692, %v3694
      %v3697 = vadd.s32 %v3696, %v3686
      %v3698 = vadd.s32 %v3697, %v3688
      %v3699 = vand.u32 %v3676, 65535
      %v3700 = vshrl.u32 %v3676, 16
      %v3701 = vand.u32 %v3671, 65535
      %v3702 = vshrl.u32 %v3671, 16
      %v3703 = vmul.u32 %v3699, %v3701
      %v3704 = vmul.u32 %v3699, %v3702
      %v3705 = vmul.u32 %v3700, %v3701
      %v3706 = vmul.u32 %v3700, %v3702
      %v3707 = vshll.u32 %v3704, 16
      %v3708 = vshrl.u32 %v3704, 16
      %v3709 = vshll.u32 %v3705, 16
      %v3710 = vshrl.u32 %v3705, 16
      %vm3711 = vc.u32 %v3703, %v3707
      %v3712 = vsel %vm3711, 1, 0
      %v3713 = vadd.s32 %v3703, %v3707
      %v3714 = vadd.s32 %v3706, %v3712
      %vm3715 = vc.u32 %v3713, %v3709
      %v3716 = vsel %vm3715, 1, 0
      %v3717 = vadd.s32 %v3713, %v3709
      %v3718 = vadd.s32 %v3714, %v3716
      %v3719 = vadd.s32 %v3718, %v3708
      %v3720 = vadd.s32 %v3719, %v3710
      %v3721 = vmul.u32 %v3676, %v3667
      %v3722 = vadd.s32 %v3698, %v3717
      %vm3723 = vc.u32 %v3698, %v3717
      %v3724 = vadd.s32 %v3720, 1
      %v3725 = vsel %vm3723, %v3724, %v3720
      %v3726 = vadd.s32 %v3721, %v3725
      %v3727 = vadd.s32 %v3726, 536870912
      %v3728 = vshrl.u32 %v3727, 30
      %v3729 = vshll.u32 %v3728, 30
      %v3730 = vsub.s32 %v3726, %v3729
      %vm3731 = vcmp.lt.s32.totalorder %v3730, 0
      %v3732 = vsub.s32 0, %v3730
      %v3733 = vsel %vm3731, %v3732, %v3730
      %v3734 = vclz %v3733
      %v3735 = vsub.s32 %v3734, 2
      %vm3736 = vcmp.gt.s32.totalorder 0, %v3735
      %v3737 = vsel %vm3736, 0, %v3735
      %v3738 = vsub.s32 32, %v3737
      %v3739 = vshll.u32 %v3730, %v3737
      %v3740 = vshrl.u32 %v3722, %v3738
      %v3741 = vor.u32 %v3739, %v3740
      %v3742 = vsub.s32 4294967266, %v3737
      %v3743 = vadd.s32 %v3742, 127
      %v3744 = vshll.u32 %v3743, 23
      %v3745 = vor.u32 4788187, %v3744
      %v3746 = vand.u32 2147483647, %v3745
      %v3748 = vcvt.s32.f32 %v3741
      %v3749 = vmul.f32 %v3748, %v3746
      %v3750 = vxor.u32 %v3749, 2147483648
      %v3751 = vsel %vm3630, %v3750, %v3749
      %v3752 = vsub.s32 4, %v3728
      %v3753 = vsel %vm3630, %v3752, %v3728
      %v3754 = vsel %vm3629, %v3151, %v3751
      %v3755 = vsel %vm3629, 0, %v3753
      %v3756 = vmul.f32 %v3754, %v3754
      %v3757 = vmul.f32 %v3756, -0.001358992
      %v3758 = vadd.f32 %v3757, 0.041655596
      %v3759 = vmul.f32 %v3756, %v3758
      %v3760 = vadd.f32 %v3759, -0.4999988
      %v3761 = vmul.f32 %v3756, %v3760
      %v3762 = vadd.f32 1.0, %v3761
      %v3763 = vmul.f32 %v3754, %v3754
      %v3764 = vmul.f32 %v3763, -0.00019511016
      %v3765 = vadd.f32 %v3764, 0.008332121
      %v3766 = vmul.f32 %v3763, %v3765
      %v3767 = vadd.f32 %v3766, -0.16666654
      %v3768 = vmul.f32 %v3763, %v3767
      %v3769 = vadd.f32 %v3768, 1.0
      %v3770 = vmul.f32 %v3769, %v3754
      %vm3771 = vweird.f32 %v3151
      %v3772 = vadd.s32 %v3755, 3
      %v3773 = vand.u32 %v3772, 3
      %vm3774 = vcmp.lt.s32.totalorder %v3773, 2
      %vm3775 = vcmp.eq.s32.totalorder %v3773, 0
      %v3776 = vxor.u32 %v3770, 2147483648
      %v3777 = vsel %vm3775, %v3762, %v3776
      %vm3778 = vcmp.eq.s32.totalorder %v3773, 2
      %v3779 = vxor.u32 %v3762, 2147483648
      %v3780 = vsel %vm3778, %v3779, %v3770
      %v3781 = vsel %vm3774, %v3777, %v3780
      %v3782 = vsel %vm3771, nan, %v3781
      %v3783 = vand.u32 2147483647, %v3154
      %vm3784 = vcmp.le.f32.partialorder %v3783, 0.7853982
      %vm3785 = vcmp.lt.s32.totalorder %v3154, 0
      %v3786 = vand.u32 %v3154, 2139095040
      %v3787 = vshrl.u32 %v3786, 23
      %v3788 = vsub.s32 %v3787, 127
      %v3789 = vand.u32 2147483647, %v3154
      %v3790 = vand.u32 %v3789, 8388607
      %v3791 = vor.u32 %v3790, 8388608
      %v3792 = vsub.s32 0, %v3791
      %v3793 = vadd.s32 %v3788, 1
      %vm3794 = vcmp.gt.s32.totalorder %v3793, 0
      %v3795 = vsel %vm3794, %v3793, 0
      %v3796 = vshrl.u32 %v3795, 5
      %v3797 = vand.u32 %v3795, 31
      %v3798 = vsub.s32 32, %v3797
      %v3799 = vshrl.u32 683565275, %v3798
      %v3800 = vshll.u32 683565275, %v3797
      %v3801 = vshrl.u32 2475754826, %v3798
      %v3802 = vor.u32 %v3800, %v3801
      %v3803 = vshll.u32 2475754826, %v3797
      %v3804 = vshrl.u32 2131351028, %v3798
      %v3805 = vor.u32 %v3803, %v3804
      %v3806 = vshll.u32 2131351028, %v3797
      %v3807 = vshrl.u32 2102212464, %v3798
      %v3808 = vor.u32 %v3806, %v3807
      %v3809 = vshll.u32 2102212464, %v3797
      %v3810 = vshrl.u32 920167782, %v3798
      %v3811 = vor.u32 %v3809, %v3810
      %v3812 = vshll.u32 920167782, %v3797
      %v3813 = vshrl.u32 1326507024, %v3798
      %v3814 = vor.u32 %v3812, %v3813
      %vm3815 = vcmp.lt.s32.totalorder %v3796, 1
      %vm3816 = vcmp.lt.s32.totalorder %v3796, 2
      %vm3817 = vcmp.lt.s32.totalorder %v3796, 3
      %vm3818 = vcmp.lt.s32.totalorder %v3796, 4
      %v3819 = vsel %vm3815, %v3799, %v3802
      %v3820 = vsel %vm3818, %v3808, 2102212464
      %v3821 = vsel %vm3817, %v3805, %v3820
      %v3822 = vsel %vm3816, %v3819, %v3821
      %v3823 = vsel %vm3815, %v3802, %v3805
      %v3824 = vsel %vm3818, %v3811, 920167782
      %v3825 = vsel %vm3817, %v3808, %v3824
      %v3826 = vsel %vm3816, %v3823, %v3825
      %v3827 = vsel %vm3815, %v3805, %v3808
      %v3828 = vsel %vm3818, %v3814, 1326507024
      %v3829 = vsel %vm3817, %v3811, %v3828
      %v3830 = vsel %vm3816, %v3827, %v3829
      %v3831 = vshll.u32 %v3791, 8
      %v3832 = vand.u32 %v3831, 65535
      %v3833 = vshrl.u32 %v3831, 16
      %v3834 = vand.u32 %v3830, 65535
      %v3835 = vshrl.u32 %v3830, 16
      %v3836 = vmul.u32 %v3832, %v3834
      %v3837 = vmul.u32 %v3832, %v3835
      %v3838 = vmul.u32 %v3833, %v3834
      %v3839 = vmul.u32 %v3833, %v3835
      %v3840 = vshll.u32 %v3837, 16
      %v3841 = vshrl.u32 %v3837, 16
      %v3842 = vshll.u32 %v3838, 16
      %v3843 = vshrl.u32 %v3838, 16
      %vm3844 = vc.u32 %v3836, %v3840
      %v3845 = vsel %vm3844, 1, 0
      %v3846 = vadd.s32 %v3836, %v3840
      %v3847 = vadd.s32 %v3839, %v3845
      %vm3848 = vc.u32 %v3846, %v3842
      %v3849 = vsel %vm3848, 1, 0
      %v3850 = vadd.s32 %v3846, %v3842
      %v3851 = vadd.s32 %v3847, %v3849
      %v3852 = vadd.s32 %v3851, %v3841
      %v3853 = vadd.s32 %v3852, %v3843
      %v3854 = vand.u32 %v3831, 65535
      %v3855 = vshrl.u32 %v3831, 16
      %v3856 = vand.u32 %v3826, 65535
      %v3857 = vshrl.u32 %v3826, 16
      %v3858 = vmul.u32 %v3854, %v3856
      %v3859 = vmul.u32 %v3854, %v3857
      %v3860 = vmul.u32 %v3855, %v3856
      %v3861 = vmul.u32 %v3855, %v3857
      %v3862 = vshll.u32 %v3859, 16
      %v3863 = vshrl.u32 %v3859, 16
      %v3864 = vshll.u32 %v3860, 16
      %v3865 = vshrl.u32 %v3860, 16
      %vm3866 = vc.u32 %v3858, %v3862
      %v3867 = vsel %vm3866, 1, 0
      %v3868 = vadd.s32 %v3858, %v3862
      %v3869 = vadd.s32 %v3861, %v3867
      %vm3870 = vc.u32 %v3868, %v3864
      %v3871 = vsel %vm3870, 1, 0
      %v3872 = vadd.s32 %v3868, %v3864
      %v3873 = vadd.s32 %v3869, %v3871
      %v3874 = vadd.s32 %v3873, %v3863
      %v3875 = vadd.s32 %v3874, %v3865
      %v3876 = vmul.u32 %v3831, %v3822
      %v3877 = vadd.s32 %v3853, %v3872
      %vm3878 = vc.u32 %v3853, %v3872
      %v3879 = vadd.s32 %v3875, 1
      %v3880 = vsel %vm3878, %v3879, %v3875
      %v3881 = vadd.s32 %v3876, %v3880
      %v3882 = vadd.s32 %v3881, 536870912
      %v3883 = vshrl.u32 %v3882, 30
      %v3884 = vshll.u32 %v3883, 30
      %v3885 = vsub.s32 %v3881, %v3884
      %vm3886 = vcmp.lt.s32.totalorder %v3885, 0
      %v3887 = vsub.s32 0, %v3885
      %v3888 = vsel %vm3886, %v3887, %v3885
      %v3889 = vclz %v3888
      %v3890 = vsub.s32 %v3889, 2
      %vm3891 = vcmp.gt.s32.totalorder 0, %v3890
      %v3892 = vsel %vm3891, 0, %v3890
      %v3893 = vsub.s32 32, %v3892
      %v3894 = vshll.u32 %v3885, %v3892
      %v3895 = vshrl.u32 %v3877, %v3893
      %v3896 = vor.u32 %v3894, %v3895
      %v3897 = vsub.s32 4294967266, %v3892
      %v3898 = vadd.s32 %v3897, 127
      %v3899 = vshll.u32 %v3898, 23
      %v3900 = vor.u32 4788187, %v3899
      %v3901 = vand.u32 2147483647, %v3900
      %v3903 = vcvt.s32.f32 %v3896
      %v3904 = vmul.f32 %v3903, %v3901
      %v3905 = vxor.u32 %v3904, 2147483648
      %v3906 = vsel %vm3785, %v3905, %v3904
      %v3907 = vsub.s32 4, %v3883
      %v3908 = vsel %vm3785, %v3907, %v3883
      %v3909 = vsel %vm3784, %v3154, %v3906
      %v3910 = vsel %vm3784, 0, %v3908
      %v3911 = vmul.f32 %v3909, %v3909
      %v3912 = vmul.f32 %v3911, -0.001358992
      %v3913 = vadd.f32 %v3912, 0.041655596
      %v3914 = vmul.f32 %v3911, %v3913
      %v3915 = vadd.f32 %v3914, -0.4999988
      %v3916 = vmul.f32 %v3911, %v3915
      %v3917 = vadd.f32 1.0, %v3916
      %v3918 = vmul.f32 %v3909, %v3909
      %v3919 = vmul.f32 %v3918, -0.00019511016
      %v3920 = vadd.f32 %v3919, 0.008332121
      %v3921 = vmul.f32 %v3918, %v3920
      %v3922 = vadd.f32 %v3921, -0.16666654
      %v3923 = vmul.f32 %v3918, %v3922
      %v3924 = vadd.f32 %v3923, 1.0
      %v3925 = vmul.f32 %v3924, %v3909
      %vm3926 = vweird.f32 %v3154
      %v3927 = vadd.s32 %v3910, 3
      %v3928 = vand.u32 %v3927, 3
      %vm3929 = vcmp.lt.s32.totalorder %v3928, 2
      %vm3930 = vcmp.eq.s32.totalorder %v3928, 0
      %v3931 = vxor.u32 %v3925, 2147483648
      %v3932 = vsel %vm3930, %v3917, %v3931
      %vm3933 = vcmp.eq.s32.totalorder %v3928, 2
      %v3934 = vxor.u32 %v3917, 2147483648
      %v3935 = vsel %vm3933, %v3934, %v3925
      %v3936 = vsel %vm3929, %v3932, %v3935
      %v3937 = vsel %vm3926, nan, %v3936
      %v3938 = vand.u32 2147483647, %v3156
      %vm3939 = vcmp.le.f32.partialorder %v3938, 0.7853982
      %vm3940 = vcmp.lt.s32.totalorder %v3156, 0
      %v3941 = vand.u32 %v3156, 2139095040
      %v3942 = vshrl.u32 %v3941, 23
      %v3943 = vsub.s32 %v3942, 127
      %v3944 = vand.u32 2147483647, %v3156
      %v3945 = vand.u32 %v3944, 8388607
      %v3946 = vor.u32 %v3945, 8388608
      %v3947 = vsub.s32 0, %v3946
      %v3948 = vadd.s32 %v3943, 1
      %vm3949 = vcmp.gt.s32.totalorder %v3948, 0
      %v3950 = vsel %vm3949, %v3948, 0
      %v3951 = vshrl.u32 %v3950, 5
      %v3952 = vand.u32 %v3950, 31
      %v3953 = vsub.s32 32, %v3952
      %v3954 = vshrl.u32 683565275, %v3953
      %v3955 = vshll.u32 683565275, %v3952
      %v3956 = vshrl.u32 2475754826, %v3953
      %v3957 = vor.u32 %v3955, %v3956
      %v3958 = vshll.u32 2475754826, %v3952
      %v3959 = vshrl.u32 2131351028, %v3953
      %v3960 = vor.u32 %v3958, %v3959
      %v3961 = vshll.u32 2131351028, %v3952
      %v3962 = vshrl.u32 2102212464, %v3953
      %v3963 = vor.u32 %v3961, %v3962
      %v3964 = vshll.u32 2102212464, %v3952
      %v3965 = vshrl.u32 920167782, %v3953
      %v3966 = vor.u32 %v3964, %v3965
      %v3967 = vshll.u32 920167782, %v3952
      %v3968 = vshrl.u32 1326507024, %v3953
      %v3969 = vor.u32 %v3967, %v3968
      %vm3970 = vcmp.lt.s32.totalorder %v3951, 1
      %vm3971 = vcmp.lt.s32.totalorder %v3951, 2
      %vm3972 = vcmp.lt.s32.totalorder %v3951, 3
      %vm3973 = vcmp.lt.s32.totalorder %v3951, 4
      %v3974 = vsel %vm3970, %v3954, %v3957
      %v3975 = vsel %vm3973, %v3963, 2102212464
      %v3976 = vsel %vm3972, %v3960, %v3975
      %v3977 = vsel %vm3971, %v3974, %v3976
      %v3978 = vsel %vm3970, %v3957, %v3960
      %v3979 = vsel %vm3973, %v3966, 920167782
      %v3980 = vsel %vm3972, %v3963, %v3979
      %v3981 = vsel %vm3971, %v3978, %v3980
      %v3982 = vsel %vm3970, %v3960, %v3963
      %v3983 = vsel %vm3973, %v3969, 1326507024
      %v3984 = vsel %vm3972, %v3966, %v3983
      %v3985 = vsel %vm3971, %v3982, %v3984
      %v3986 = vshll.u32 %v3946, 8
      %v3987 = vand.u32 %v3986, 65535
      %v3988 = vshrl.u32 %v3986, 16
      %v3989 = vand.u32 %v3985, 65535
      %v3990 = vshrl.u32 %v3985, 16
      %v3991 = vmul.u32 %v3987, %v3989
      %v3992 = vmul.u32 %v3987, %v3990
      %v3993 = vmul.u32 %v3988, %v3989
      %v3994 = vmul.u32 %v3988, %v3990
      %v3995 = vshll.u32 %v3992, 16
      %v3996 = vshrl.u32 %v3992, 16
      %v3997 = vshll.u32 %v3993, 16
      %v3998 = vshrl.u32 %v3993, 16
      %vm3999 = vc.u32 %v3991, %v3995
      %v4000 = vsel %vm3999, 1, 0
      %v4001 = vadd.s32 %v3991, %v3995
      %v4002 = vadd.s32 %v3994, %v4000
      %vm4003 = vc.u32 %v4001, %v3997
      %v4004 = vsel %vm4003, 1, 0
      %v4005 = vadd.s32 %v4001, %v3997
      %v4006 = vadd.s32 %v4002, %v4004
      %v4007 = vadd.s32 %v4006, %v3996
      %v4008 = vadd.s32 %v4007, %v3998
      %v4009 = vand.u32 %v3986, 65535
      %v4010 = vshrl.u32 %v3986, 16
      %v4011 = vand.u32 %v3981, 65535
      %v4012 = vshrl.u32 %v3981, 16
      %v4013 = vmul.u32 %v4009, %v4011
      %v4014 = vmul.u32 %v4009, %v4012
      %v4015 = vmul.u32 %v4010, %v4011
      %v4016 = vmul.u32 %v4010, %v4012
      %v4017 = vshll.u32 %v4014, 16
      %v4018 = vshrl.u32 %v4014, 16
      %v4019 = vshll.u32 %v4015, 16
      %v4020 = vshrl.u32 %v4015, 16
      %vm4021 = vc.u32 %v4013, %v4017
      %v4022 = vsel %vm4021, 1, 0
      %v4023 = vadd.s32 %v4013, %v4017
      %v4024 = vadd.s32 %v4016, %v4022
      %vm4025 = vc.u32 %v4023, %v4019
      %v4026 = vsel %vm4025, 1, 0
      %v4027 = vadd.s32 %v4023, %v4019
      %v4028 = vadd.s32 %v4024, %v4026
      %v4029 = vadd.s32 %v4028, %v4018
      %v4030 = vadd.s32 %v4029, %v4020
      %v4031 = vmul.u32 %v3986, %v3977
      %v4032 = vadd.s32 %v4008, %v4027
      %vm4033 = vc.u32 %v4008, %v4027
      %v4034 = vadd.s32 %v4030, 1
      %v4035 = vsel %vm4033, %v4034, %v4030
      %v4036 = vadd.s32 %v4031, %v4035
      %v4037 = vadd.s32 %v4036, 536870912
      %v4038 = vshrl.u32 %v4037, 30
      %v4039 = vshll.u32 %v4038, 30
      %v4040 = vsub.s32 %v4036, %v4039
      %vm4041 = vcmp.lt.s32.totalorder %v4040, 0
      %v4042 = vsub.s32 0, %v4040
      %v4043 = vsel %vm4041, %v4042, %v4040
      %v4044 = vclz %v4043
      %v4045 = vsub.s32 %v4044, 2
      %vm4046 = vcmp.gt.s32.totalorder 0, %v4045
      %v4047 = vsel %vm4046, 0, %v4045
      %v4048 = vsub.s32 32, %v4047
      %v4049 = vshll.u32 %v4040, %v4047
      %v4050 = vshrl.u32 %v4032, %v4048
      %v4051 = vor.u32 %v4049, %v4050
      %v4052 = vsub.s32 4294967266, %v4047
      %v4053 = vadd.s32 %v4052, 127
      %v4054 = vshll.u32 %v4053, 23
      %v4055 = vor.u32 4788187, %v4054
      %v4056 = vand.u32 2147483647, %v4055
      %v4058 = vcvt.s32.f32 %v4051
      %v4059 = vmul.f32 %v4058, %v4056
      %v4060 = vxor.u32 %v4059, 2147483648
      %v4061 = vsel %vm3940, %v4060, %v4059
      %v4062 = vsub.s32 4, %v4038
      %v4063 = vsel %vm3940, %v4062, %v4038
      %v4064 = vsel %vm3939, %v3156, %v4061
      %v4065 = vsel %vm3939, 0, %v4063
      %v4066 = vmul.f32 %v4064, %v4064
      %v4067 = vmul.f32 %v4066, -0.001358992
      %v4068 = vadd.f32 %v4067, 0.041655596
      %v4069 = vmul.f32 %v4066, %v4068
      %v4070 = vadd.f32 %v4069, -0.4999988
      %v4071 = vmul.f32 %v4066, %v4070
      %v4072 = vadd.f32 1.0, %v4071
      %v4073 = vmul.f32 %v4064, %v4064
      %v4074 = vmul.f32 %v4073, -0.00019511016
      %v4075 = vadd.f32 %v4074, 0.008332121
      %v4076 = vmul.f32 %v4073, %v4075
      %v4077 = vadd.f32 %v4076, -0.16666654
      %v4078 = vmul.f32 %v4073, %v4077
      %v4079 = vadd.f32 %v4078, 1.0
      %v4080 = vmul.f32 %v4079, %v4064
      %vm4081 = vweird.f32 %v3156
      %v4082 = vadd.s32 %v4065, 3
      %v4083 = vand.u32 %v4082, 3
      %vm4084 = vcmp.lt.s32.totalorder %v4083, 2
      %vm4085 = vcmp.eq.s32.totalorder %v4083, 0
      %v4086 = vxor.u32 %v4080, 2147483648
      %v4087 = vsel %vm4085, %v4072, %v4086
      %vm4088 = vcmp.eq.s32.totalorder %v4083, 2
      %v4089 = vxor.u32 %v4072, 2147483648
      %v4090 = vsel %vm4088, %v4089, %v4080
      %v4091 = vsel %vm4084, %v4087, %v4090
      %v4092 = vsel %vm4081, nan, %v4091
      %v4093 = vand.u32 2147483647, %v3159
      %vm4094 = vcmp.le.f32.partialorder %v4093, 0.7853982
      %vm4095 = vcmp.lt.s32.totalorder %v3159, 0
      %v4096 = vand.u32 %v3159, 2139095040
      %v4097 = vshrl.u32 %v4096, 23
      %v4098 = vsub.s32 %v4097, 127
      %v4099 = vand.u32 2147483647, %v3159
      %v4100 = vand.u32 %v4099, 8388607
      %v4101 = vor.u32 %v4100, 8388608
      %v4102 = vsub.s32 0, %v4101
      %v4103 = vadd.s32 %v4098, 1
      %vm4104 = vcmp.gt.s32.totalorder %v4103, 0
      %v4105 = vsel %vm4104, %v4103, 0
      %v4106 = vshrl.u32 %v4105, 5
      %v4107 = vand.u32 %v4105, 31
      %v4108 = vsub.s32 32, %v4107
      %v4109 = vshrl.u32 683565275, %v4108
      %v4110 = vshll.u32 683565275, %v4107
      %v4111 = vshrl.u32 2475754826, %v4108
      %v4112 = vor.u32 %v4110, %v4111
      %v4113 = vshll.u32 2475754826, %v4107
      %v4114 = vshrl.u32 2131351028, %v4108
      %v4115 = vor.u32 %v4113, %v4114
      %v4116 = vshll.u32 2131351028, %v4107
      %v4117 = vshrl.u32 2102212464, %v4108
      %v4118 = vor.u32 %v4116, %v4117
      %v4119 = vshll.u32 2102212464, %v4107
      %v4120 = vshrl.u32 920167782, %v4108
      %v4121 = vor.u32 %v4119, %v4120
      %v4122 = vshll.u32 920167782, %v4107
      %v4123 = vshrl.u32 1326507024, %v4108
      %v4124 = vor.u32 %v4122, %v4123
      %vm4125 = vcmp.lt.s32.totalorder %v4106, 1
      %vm4126 = vcmp.lt.s32.totalorder %v4106, 2
      %vm4127 = vcmp.lt.s32.totalorder %v4106, 3
      %vm4128 = vcmp.lt.s32.totalorder %v4106, 4
      %v4129 = vsel %vm4125, %v4109, %v4112
      %v4130 = vsel %vm4128, %v4118, 2102212464
      %v4131 = vsel %vm4127, %v4115, %v4130
      %v4132 = vsel %vm4126, %v4129, %v4131
      %v4133 = vsel %vm4125, %v4112, %v4115
      %v4134 = vsel %vm4128, %v4121, 920167782
      %v4135 = vsel %vm4127, %v4118, %v4134
      %v4136 = vsel %vm4126, %v4133, %v4135
      %v4137 = vsel %vm4125, %v4115, %v4118
      %v4138 = vsel %vm4128, %v4124, 1326507024
      %v4139 = vsel %vm4127, %v4121, %v4138
      %v4140 = vsel %vm4126, %v4137, %v4139
      %v4141 = vshll.u32 %v4101, 8
      %v4142 = vand.u32 %v4141, 65535
      %v4143 = vshrl.u32 %v4141, 16
      %v4144 = vand.u32 %v4140, 65535
      %v4145 = vshrl.u32 %v4140, 16
      %v4146 = vmul.u32 %v4142, %v4144
      %v4147 = vmul.u32 %v4142, %v4145
      %v4148 = vmul.u32 %v4143, %v4144
      %v4149 = vmul.u32 %v4143, %v4145
      %v4150 = vshll.u32 %v4147, 16
      %v4151 = vshrl.u32 %v4147, 16
      %v4152 = vshll.u32 %v4148, 16
      %v4153 = vshrl.u32 %v4148, 16
      %vm4154 = vc.u32 %v4146, %v4150
      %v4155 = vsel %vm4154, 1, 0
      %v4156 = vadd.s32 %v4146, %v4150
      %v4157 = vadd.s32 %v4149, %v4155
      %vm4158 = vc.u32 %v4156, %v4152
      %v4159 = vsel %vm4158, 1, 0
      %v4160 = vadd.s32 %v4156, %v4152
      %v4161 = vadd.s32 %v4157, %v4159
      %v4162 = vadd.s32 %v4161, %v4151
      %v4163 = vadd.s32 %v4162, %v4153
      %v4164 = vand.u32 %v4141, 65535
      %v4165 = vshrl.u32 %v4141, 16
      %v4166 = vand.u32 %v4136, 65535
      %v4167 = vshrl.u32 %v4136, 16
      %v4168 = vmul.u32 %v4164, %v4166
      %v4169 = vmul.u32 %v4164, %v4167
      %v4170 = vmul.u32 %v4165, %v4166
      %v4171 = vmul.u32 %v4165, %v4167
      %v4172 = vshll.u32 %v4169, 16
      %v4173 = vshrl.u32 %v4169, 16
      %v4174 = vshll.u32 %v4170, 16
      %v4175 = vshrl.u32 %v4170, 16
      %vm4176 = vc.u32 %v4168, %v4172
      %v4177 = vsel %vm4176, 1, 0
      %v4178 = vadd.s32 %v4168, %v4172
      %v4179 = vadd.s32 %v4171, %v4177
      %vm4180 = vc.u32 %v4178, %v4174
      %v4181 = vsel %vm4180, 1, 0
      %v4182 = vadd.s32 %v4178, %v4174
      %v4183 = vadd.s32 %v4179, %v4181
      %v4184 = vadd.s32 %v4183, %v4173
      %v4185 = vadd.s32 %v4184, %v4175
      %v4186 = vmul.u32 %v4141, %v4132
      %v4187 = vadd.s32 %v4163, %v4182
      %vm4188 = vc.u32 %v4163, %v4182
      %v4189 = vadd.s32 %v4185, 1
      %v4190 = vsel %vm4188, %v4189, %v4185
      %v4191 = vadd.s32 %v4186, %v4190
      %v4192 = vadd.s32 %v4191, 536870912
      %v4193 = vshrl.u32 %v4192, 30
      %v4194 = vshll.u32 %v4193, 30
      %v4195 = vsub.s32 %v4191, %v4194
      %vm4196 = vcmp.lt.s32.totalorder %v4195, 0
      %v4197 = vsub.s32 0, %v4195
      %v4198 = vsel %vm4196, %v4197, %v4195
      %v4199 = vclz %v4198
      %v4200 = vsub.s32 %v4199, 2
      %vm4201 = vcmp.gt.s32.totalorder 0, %v4200
      %v4202 = vsel %vm4201, 0, %v4200
      %v4203 = vsub.s32 32, %v4202
      %v4204 = vshll.u32 %v4195, %v4202
      %v4205 = vshrl.u32 %v4187, %v4203
      %v4206 = vor.u32 %v4204, %v4205
      %v4207 = vsub.s32 4294967266, %v4202
      %v4208 = vadd.s32 %v4207, 127
      %v4209 = vshll.u32 %v4208, 23
      %v4210 = vor.u32 4788187, %v4209
      %v4211 = vand.u32 2147483647, %v4210
      %v4213 = vcvt.s32.f32 %v4206
      %v4214 = vmul.f32 %v4213, %v4211
      %v4215 = vxor.u32 %v4214, 2147483648
      %v4216 = vsel %vm4095, %v4215, %v4214
      %v4217 = vsub.s32 4, %v4193
      %v4218 = vsel %vm4095, %v4217, %v4193
      %v4219 = vsel %vm4094, %v3159, %v4216
      %v4220 = vsel %vm4094, 0, %v4218
      %v4221 = vmul.f32 %v4219, %v4219
      %v4222 = vmul.f32 %v4221, -0.001358992
      %v4223 = vadd.f32 %v4222, 0.041655596
      %v4224 = vmul.f32 %v4221, %v4223
      %v4225 = vadd.f32 %v4224, -0.4999988
      %v4226 = vmul.f32 %v4221, %v4225
      %v4227 = vadd.f32 1.0, %v4226
      %v4228 = vmul.f32 %v4219, %v4219
      %v4229 = vmul.f32 %v4228, -0.00019511016
      %v4230 = vadd.f32 %v4229, 0.008332121
      %v4231 = vmul.f32 %v4228, %v4230
      %v4232 = vadd.f32 %v4231, -0.16666654
      %v4233 = vmul.f32 %v4228, %v4232
      %v4234 = vadd.f32 %v4233, 1.0
      %v4235 = vmul.f32 %v4234, %v4219
      %vm4236 = vweird.f32 %v3159
      %v4237 = vadd.s32 %v4220, 3
      %v4238 = vand.u32 %v4237, 3
      %vm4239 = vcmp.lt.s32.totalorder %v4238, 2
      %vm4240 = vcmp.eq.s32.totalorder %v4238, 0
      %v4241 = vxor.u32 %v4235, 2147483648
      %v4242 = vsel %vm4240, %v4227, %v4241
      %vm4243 = vcmp.eq.s32.totalorder %v4238, 2
      %v4244 = vxor.u32 %v4227, 2147483648
      %v4245 = vsel %vm4243, %v4244, %v4235
      %v4246 = vsel %vm4239, %v4242, %v4245
      %v4247 = vsel %vm4236, nan, %v4246
      %v4248 = vand.u32 2147483647, %v3161
      %vm4249 = vcmp.le.f32.partialorder %v4248, 0.7853982
      %vm4250 = vcmp.lt.s32.totalorder %v3161, 0
      %v4251 = vand.u32 %v3161, 2139095040
      %v4252 = vshrl.u32 %v4251, 23
      %v4253 = vsub.s32 %v4252, 127
      %v4254 = vand.u32 2147483647, %v3161
      %v4255 = vand.u32 %v4254, 8388607
      %v4256 = vor.u32 %v4255, 8388608
      %v4257 = vsub.s32 0, %v4256
      %v4258 = vadd.s32 %v4253, 1
      %vm4259 = vcmp.gt.s32.totalorder %v4258, 0
      %v4260 = vsel %vm4259, %v4258, 0
      %v4261 = vshrl.u32 %v4260, 5
      %v4262 = vand.u32 %v4260, 31
      %v4263 = vsub.s32 32, %v4262
      %v4264 = vshrl.u32 683565275, %v4263
      %v4265 = vshll.u32 683565275, %v4262
      %v4266 = vshrl.u32 2475754826, %v4263
      %v4267 = vor.u32 %v4265, %v4266
      %v4268 = vshll.u32 2475754826, %v4262
      %v4269 = vshrl.u32 2131351028, %v4263
      %v4270 = vor.u32 %v4268, %v4269
      %v4271 = vshll.u32 2131351028, %v4262
      %v4272 = vshrl.u32 2102212464, %v4263
      %v4273 = vor.u32 %v4271, %v4272
      %v4274 = vshll.u32 2102212464, %v4262
      %v4275 = vshrl.u32 920167782, %v4263
      %v4276 = vor.u32 %v4274, %v4275
      %v4277 = vshll.u32 920167782, %v4262
      %v4278 = vshrl.u32 1326507024, %v4263
      %v4279 = vor.u32 %v4277, %v4278
      %vm4280 = vcmp.lt.s32.totalorder %v4261, 1
      %vm4281 = vcmp.lt.s32.totalorder %v4261, 2
      %vm4282 = vcmp.lt.s32.totalorder %v4261, 3
      %vm4283 = vcmp.lt.s32.totalorder %v4261, 4
      %v4284 = vsel %vm4280, %v4264, %v4267
      %v4285 = vsel %vm4283, %v4273, 2102212464
      %v4286 = vsel %vm4282, %v4270, %v4285
      %v4287 = vsel %vm4281, %v4284, %v4286
      %v4288 = vsel %vm4280, %v4267, %v4270
      %v4289 = vsel %vm4283, %v4276, 920167782
      %v4290 = vsel %vm4282, %v4273, %v4289
      %v4291 = vsel %vm4281, %v4288, %v4290
      %v4292 = vsel %vm4280, %v4270, %v4273
      %v4293 = vsel %vm4283, %v4279, 1326507024
      %v4294 = vsel %vm4282, %v4276, %v4293
      %v4295 = vsel %vm4281, %v4292, %v4294
      %v4296 = vshll.u32 %v4256, 8
      %v4297 = vand.u32 %v4296, 65535
      %v4298 = vshrl.u32 %v4296, 16
      %v4299 = vand.u32 %v4295, 65535
      %v4300 = vshrl.u32 %v4295, 16
      %v4301 = vmul.u32 %v4297, %v4299
      %v4302 = vmul.u32 %v4297, %v4300
      %v4303 = vmul.u32 %v4298, %v4299
      %v4304 = vmul.u32 %v4298, %v4300
      %v4305 = vshll.u32 %v4302, 16
      %v4306 = vshrl.u32 %v4302, 16
      %v4307 = vshll.u32 %v4303, 16
      %v4308 = vshrl.u32 %v4303, 16
      %vm4309 = vc.u32 %v4301, %v4305
      %v4310 = vsel %vm4309, 1, 0
      %v4311 = vadd.s32 %v4301, %v4305
      %v4312 = vadd.s32 %v4304, %v4310
      %vm4313 = vc.u32 %v4311, %v4307
      %v4314 = vsel %vm4313, 1, 0
      %v4315 = vadd.s32 %v4311, %v4307
      %v4316 = vadd.s32 %v4312, %v4314
      %v4317 = vadd.s32 %v4316, %v4306
      %v4318 = vadd.s32 %v4317, %v4308
      %v4319 = vand.u32 %v4296, 65535
      %v4320 = vshrl.u32 %v4296, 16
      %v4321 = vand.u32 %v4291, 65535
      %v4322 = vshrl.u32 %v4291, 16
      %v4323 = vmul.u32 %v4319, %v4321
      %v4324 = vmul.u32 %v4319, %v4322
      %v4325 = vmul.u32 %v4320, %v4321
      %v4326 = vmul.u32 %v4320, %v4322
      %v4327 = vshll.u32 %v4324, 16
      %v4328 = vshrl.u32 %v4324, 16
      %v4329 = vshll.u32 %v4325, 16
      %v4330 = vshrl.u32 %v4325, 16
      %vm4331 = vc.u32 %v4323, %v4327
      %v4332 = vsel %vm4331, 1, 0
      %v4333 = vadd.s32 %v4323, %v4327
      %v4334 = vadd.s32 %v4326, %v4332
      %vm4335 = vc.u32 %v4333, %v4329
      %v4336 = vsel %vm4335, 1, 0
      %v4337 = vadd.s32 %v4333, %v4329
      %v4338 = vadd.s32 %v4334, %v4336
      %v4339 = vadd.s32 %v4338, %v4328
      %v4340 = vadd.s32 %v4339, %v4330
      %v4341 = vmul.u32 %v4296, %v4287
      %v4342 = vadd.s32 %v4318, %v4337
      %vm4343 = vc.u32 %v4318, %v4337
      %v4344 = vadd.s32 %v4340, 1
      %v4345 = vsel %vm4343, %v4344, %v4340
      %v4346 = vadd.s32 %v4341, %v4345
      %v4347 = vadd.s32 %v4346, 536870912
      %v4348 = vshrl.u32 %v4347, 30
      %v4349 = vshll.u32 %v4348, 30
      %v4350 = vsub.s32 %v4346, %v4349
      %vm4351 = vcmp.lt.s32.totalorder %v4350, 0
      %v4352 = vsub.s32 0, %v4350
      %v4353 = vsel %vm4351, %v4352, %v4350
      %v4354 = vclz %v4353
      %v4355 = vsub.s32 %v4354, 2
      %vm4356 = vcmp.gt.s32.totalorder 0, %v4355
      %v4357 = vsel %vm4356, 0, %v4355
      %v4358 = vsub.s32 32, %v4357
      %v4359 = vshll.u32 %v4350, %v4357
      %v4360 = vshrl.u32 %v4342, %v4358
      %v4361 = vor.u32 %v4359, %v4360
      %v4362 = vsub.s32 4294967266, %v4357
      %v4363 = vadd.s32 %v4362, 127
      %v4364 = vshll.u32 %v4363, 23
      %v4365 = vor.u32 4788187, %v4364
      %v4366 = vand.u32 2147483647, %v4365
      %v4368 = vcvt.s32.f32 %v4361
      %v4369 = vmul.f32 %v4368, %v4366
      %v4370 = vxor.u32 %v4369, 2147483648
      %v4371 = vsel %vm4250, %v4370, %v4369
      %v4372 = vsub.s32 4, %v4348
      %v4373 = vsel %vm4250, %v4372, %v4348
      %v4374 = vsel %vm4249, %v3161, %v4371
      %v4375 = vsel %vm4249, 0, %v4373
      %v4376 = vmul.f32 %v4374, %v4374
      %v4377 = vmul.f32 %v4376, -0.001358992
      %v4378 = vadd.f32 %v4377, 0.041655596
      %v4379 = vmul.f32 %v4376, %v4378
      %v4380 = vadd.f32 %v4379, -0.4999988
      %v4381 = vmul.f32 %v4376, %v4380
      %v4382 = vadd.f32 1.0, %v4381
      %v4383 = vmul.f32 %v4374, %v4374
      %v4384 = vmul.f32 %v4383, -0.00019511016
      %v4385 = vadd.f32 %v4384, 0.008332121
      %v4386 = vmul.f32 %v4383, %v4385
      %v4387 = vadd.f32 %v4386, -0.16666654
      %v4388 = vmul.f32 %v4383, %v4387
      %v4389 = vadd.f32 %v4388, 1.0
      %v4390 = vmul.f32 %v4389, %v4374
      %vm4391 = vweird.f32 %v3161
      %v4392 = vadd.s32 %v4375, 3
      %v4393 = vand.u32 %v4392, 3
      %vm4394 = vcmp.lt.s32.totalorder %v4393, 2
      %vm4395 = vcmp.eq.s32.totalorder %v4393, 0
      %v4396 = vxor.u32 %v4390, 2147483648
      %v4397 = vsel %vm4395, %v4382, %v4396
      %vm4398 = vcmp.eq.s32.totalorder %v4393, 2
      %v4399 = vxor.u32 %v4382, 2147483648
      %v4400 = vsel %vm4398, %v4399, %v4390
      %v4401 = vsel %vm4394, %v4397, %v4400
      %v4402 = vsel %vm4391, nan, %v4401
      %v4403 = vpack.c.bf16 %v3472, %v3317
      %v4404 = vpack.c.bf16 %v3782, %v3627
      %v4405 = vpack.c.bf16 %v4092, %v3937
      %v4406 = vpack.c.bf16 %v4402, %v4247
      %v4407 = vld [vmem:[%s7] sm:$0xf]
      %v4408 = vld [vmem:[%s7 + $0x4] sm:$0xf]
      %v4409 = vld [vmem:[%s7 + $0x8] sm:$0xf]
      %v4410 = vld [vmem:[%s7 + $0xc] sm:$0xf]
      %v4411 = vld [vmem:[%s7 + $0x10] sm:$0xf]
      %v4412 = vld [vmem:[%s7 + $0x14] sm:$0xf]
      %v4413 = vld [vmem:[%s7 + $0x18] sm:$0xf]
      %v4414 = vld [vmem:[%s7 + $0x1c] sm:$0xf]
      %v4415 = vld [vmem:[%s7 + $0x20] sm:$0xf]
      %v4416 = vld [vmem:[%s7 + $0x24] sm:$0xf]
      %v4417 = vld [vmem:[%s7 + $0x28] sm:$0xf]
      %v4418 = vld [vmem:[%s7 + $0x2c] sm:$0xf]
      %v4419 = vld [vmem:[%s7 + $0x30] sm:$0xf]
      %v4420 = vld [vmem:[%s7 + $0x34] sm:$0xf]
      %v4421 = vld [vmem:[%s7 + $0x38] sm:$0xf]
      %v4422 = vld [vmem:[%s7 + $0x3c] sm:$0xf]
      %v4423 = vld [vmem:[%s8] sm:$0x1]
      %v4425 = vperm.slane %v4423, 0
      %v4443 = vunpack.c.l.b16 %v4407
      %v4444 = vunpack.c.l.b16 %v4408
      %v4445 = vunpack.c.l.b16 %v4409
      %v4446 = vunpack.c.l.b16 %v4410
      %v4447 = vunpack.c.l.b16 %v4411
      %v4448 = vunpack.c.l.b16 %v4412
      %v4449 = vunpack.c.l.b16 %v4413
      %v4450 = vunpack.c.l.b16 %v4414
      %v4451 = vunpack.c.l.b16 %v4415
      %v4452 = vunpack.c.l.b16 %v4416
      %v4453 = vunpack.c.l.b16 %v4417
      %v4454 = vunpack.c.l.b16 %v4418
      %v4455 = vunpack.c.l.b16 %v4419
      %v4456 = vunpack.c.l.b16 %v4420
      %v4457 = vunpack.c.l.b16 %v4421
      %v4458 = vunpack.c.l.b16 %v4422
      %v4459 = vpack.c.b16 %v4444, %v4443
      %v4460 = vpack.c.b16 %v4446, %v4445
      %v4461 = vpack.c.b16 %v4448, %v4447
      %v4462 = vpack.c.b16 %v4450, %v4449
      %v4463 = vpack.c.b16 %v4452, %v4451
      %v4464 = vpack.c.b16 %v4454, %v4453
      %v4465 = vpack.c.b16 %v4456, %v4455
      %v4466 = vpack.c.b16 %v4458, %v4457
      %4475 = vmatpush.bf16.msra.mxu0 %v4466
      %4476 = vmatpush.bf16.msra.mxu0 %v4465
      %4477 = vmatpush.bf16.msra.mxu0 %v4464
      %4478 = vmatpush.bf16.msra.mxu0 %v4463
      %4479 = vmatpush.bf16.msra.mxu0 %v4462
      %4480 = vmatpush.bf16.msra.mxu0 %v4461
      %4481 = vmatpush.bf16.msra.mxu0 %v4460
      %4482 = vmatpush.bf16.msra.mxu0 %v4459
      %4483 = vmatmul.bf16.gmra.mxu0 %v4403
      %v4484 = vpop.f32.mrf.mxu0
      %v4485 = vadd.f32 %v4425, %v4484
      %v4486 = vpop.f32.mrf.mxu0
      %v4487 = vadd.f32 %v4425, %v4486
      %4488 = vmatmul.bf16.gmra.mxu0 %v4404
      %v4489 = vpop.f32.mrf.mxu0
      %v4490 = vadd.f32 %v4425, %v4489
      %v4491 = vpop.f32.mrf.mxu0
      %v4492 = vadd.f32 %v4425, %v4491
      %4493 = vmatmul.bf16.gmra.mxu0 %v4405
      %v4494 = vpop.f32.mrf.mxu0
      %v4495 = vadd.f32 %v4425, %v4494
      %v4496 = vpop.f32.mrf.mxu0
      %v4497 = vadd.f32 %v4425, %v4496
      %4498 = vmatmul.bf16.gmra.mxu0 %v4406
      %v4499 = vpop.f32.mrf.mxu0
      %v4500 = vadd.f32 %v4425, %v4499
      %v4501 = vpop.f32.mrf.mxu0
      %v4502 = vadd.f32 %v4425, %v4501
      %4503 = vdwg.mxu0
      %v4504 = vand.u32 2147483647, %v4485
      %vm4505 = vcmp.le.f32.partialorder %v4504, 0.7853982
      %vm4506 = vcmp.lt.s32.totalorder %v4485, 0
      %v4507 = vand.u32 %v4485, 2139095040
      %v4508 = vshrl.u32 %v4507, 23
      %v4509 = vsub.s32 %v4508, 127
      %v4510 = vand.u32 2147483647, %v4485
      %v4511 = vand.u32 %v4510, 8388607
      %v4512 = vor.u32 %v4511, 8388608
      %v4513 = vsub.s32 0, %v4512
      %v4514 = vadd.s32 %v4509, 1
      %vm4515 = vcmp.gt.s32.totalorder %v4514, 0
      %v4516 = vsel %vm4515, %v4514, 0
      %v4517 = vshrl.u32 %v4516, 5
      %v4518 = vand.u32 %v4516, 31
      %v4519 = vsub.s32 32, %v4518
      %v4520 = vshrl.u32 683565275, %v4519
      %v4521 = vshll.u32 683565275, %v4518
      %v4522 = vshrl.u32 2475754826, %v4519
      %v4523 = vor.u32 %v4521, %v4522
      %v4524 = vshll.u32 2475754826, %v4518
      %v4525 = vshrl.u32 2131351028, %v4519
      %v4526 = vor.u32 %v4524, %v4525
      %v4527 = vshll.u32 2131351028, %v4518
      %v4528 = vshrl.u32 2102212464, %v4519
      %v4529 = vor.u32 %v4527, %v4528
      %v4530 = vshll.u32 2102212464, %v4518
      %v4531 = vshrl.u32 920167782, %v4519
      %v4532 = vor.u32 %v4530, %v4531
      %v4533 = vshll.u32 920167782, %v4518
      %v4534 = vshrl.u32 1326507024, %v4519
      %v4535 = vor.u32 %v4533, %v4534
      %vm4536 = vcmp.lt.s32.totalorder %v4517, 1
      %vm4537 = vcmp.lt.s32.totalorder %v4517, 2
      %vm4538 = vcmp.lt.s32.totalorder %v4517, 3
      %vm4539 = vcmp.lt.s32.totalorder %v4517, 4
      %v4540 = vsel %vm4536, %v4520, %v4523
      %v4541 = vsel %vm4539, %v4529, 2102212464
      %v4542 = vsel %vm4538, %v4526, %v4541
      %v4543 = vsel %vm4537, %v4540, %v4542
      %v4544 = vsel %vm4536, %v4523, %v4526
      %v4545 = vsel %vm4539, %v4532, 920167782
      %v4546 = vsel %vm4538, %v4529, %v4545
      %v4547 = vsel %vm4537, %v4544, %v4546
      %v4548 = vsel %vm4536, %v4526, %v4529
      %v4549 = vsel %vm4539, %v4535, 1326507024
      %v4550 = vsel %vm4538, %v4532, %v4549
      %v4551 = vsel %vm4537, %v4548, %v4550
      %v4552 = vshll.u32 %v4512, 8
      %v4553 = vand.u32 %v4552, 65535
      %v4554 = vshrl.u32 %v4552, 16
      %v4555 = vand.u32 %v4551, 65535
      %v4556 = vshrl.u32 %v4551, 16
      %v4557 = vmul.u32 %v4553, %v4555
      %v4558 = vmul.u32 %v4553, %v4556
      %v4559 = vmul.u32 %v4554, %v4555
      %v4560 = vmul.u32 %v4554, %v4556
      %v4561 = vshll.u32 %v4558, 16
      %v4562 = vshrl.u32 %v4558, 16
      %v4563 = vshll.u32 %v4559, 16
      %v4564 = vshrl.u32 %v4559, 16
      %vm4565 = vc.u32 %v4557, %v4561
      %v4566 = vsel %vm4565, 1, 0
      %v4567 = vadd.s32 %v4557, %v4561
      %v4568 = vadd.s32 %v4560, %v4566
      %vm4569 = vc.u32 %v4567, %v4563
      %v4570 = vsel %vm4569, 1, 0
      %v4571 = vadd.s32 %v4567, %v4563
      %v4572 = vadd.s32 %v4568, %v4570
      %v4573 = vadd.s32 %v4572, %v4562
      %v4574 = vadd.s32 %v4573, %v4564
      %v4575 = vand.u32 %v4552, 65535
      %v4576 = vshrl.u32 %v4552, 16
      %v4577 = vand.u32 %v4547, 65535
      %v4578 = vshrl.u32 %v4547, 16
      %v4579 = vmul.u32 %v4575, %v4577
      %v4580 = vmul.u32 %v4575, %v4578
      %v4581 = vmul.u32 %v4576, %v4577
      %v4582 = vmul.u32 %v4576, %v4578
      %v4583 = vshll.u32 %v4580, 16
      %v4584 = vshrl.u32 %v4580, 16
      %v4585 = vshll.u32 %v4581, 16
      %v4586 = vshrl.u32 %v4581, 16
      %vm4587 = vc.u32 %v4579, %v4583
      %v4588 = vsel %vm4587, 1, 0
      %v4589 = vadd.s32 %v4579, %v4583
      %v4590 = vadd.s32 %v4582, %v4588
      %vm4591 = vc.u32 %v4589, %v4585
      %v4592 = vsel %vm4591, 1, 0
      %v4593 = vadd.s32 %v4589, %v4585
      %v4594 = vadd.s32 %v4590, %v4592
      %v4595 = vadd.s32 %v4594, %v4584
      %v4596 = vadd.s32 %v4595, %v4586
      %v4597 = vmul.u32 %v4552, %v4543
      %v4598 = vadd.s32 %v4574, %v4593
      %vm4599 = vc.u32 %v4574, %v4593
      %v4600 = vadd.s32 %v4596, 1
      %v4601 = vsel %vm4599, %v4600, %v4596
      %v4602 = vadd.s32 %v4597, %v4601
      %v4603 = vadd.s32 %v4602, 536870912
      %v4604 = vshrl.u32 %v4603, 30
      %v4605 = vshll.u32 %v4604, 30
      %v4606 = vsub.s32 %v4602, %v4605
      %vm4607 = vcmp.lt.s32.totalorder %v4606, 0
      %v4608 = vsub.s32 0, %v4606
      %v4609 = vsel %vm4607, %v4608, %v4606
      %v4610 = vclz %v4609
      %v4611 = vsub.s32 %v4610, 2
      %vm4612 = vcmp.gt.s32.totalorder 0, %v4611
      %v4613 = vsel %vm4612, 0, %v4611
      %v4614 = vsub.s32 32, %v4613
      %v4615 = vshll.u32 %v4606, %v4613
      %v4616 = vshrl.u32 %v4598, %v4614
      %v4617 = vor.u32 %v4615, %v4616
      %v4618 = vsub.s32 4294967266, %v4613
      %v4619 = vadd.s32 %v4618, 127
      %v4620 = vshll.u32 %v4619, 23
      %v4621 = vor.u32 4788187, %v4620
      %v4622 = vand.u32 2147483647, %v4621
      %v4624 = vcvt.s32.f32 %v4617
      %v4625 = vmul.f32 %v4624, %v4622
      %v4626 = vxor.u32 %v4625, 2147483648
      %v4627 = vsel %vm4506, %v4626, %v4625
      %v4628 = vsub.s32 4, %v4604
      %v4629 = vsel %vm4506, %v4628, %v4604
      %v4630 = vsel %vm4505, %v4485, %v4627
      %v4631 = vsel %vm4505, 0, %v4629
      %v4632 = vmul.f32 %v4630, %v4630
      %v4633 = vmul.f32 %v4632, -0.001358992
      %v4634 = vadd.f32 %v4633, 0.041655596
      %v4635 = vmul.f32 %v4632, %v4634
      %v4636 = vadd.f32 %v4635, -0.4999988
      %v4637 = vmul.f32 %v4632, %v4636
      %v4638 = vadd.f32 1.0, %v4637
      %v4639 = vmul.f32 %v4630, %v4630
      %v4640 = vmul.f32 %v4639, -0.00019511016
      %v4641 = vadd.f32 %v4640, 0.008332121
      %v4642 = vmul.f32 %v4639, %v4641
      %v4643 = vadd.f32 %v4642, -0.16666654
      %v4644 = vmul.f32 %v4639, %v4643
      %v4645 = vadd.f32 %v4644, 1.0
      %v4646 = vmul.f32 %v4645, %v4630
      %vm4647 = vweird.f32 %v4485
      %v4648 = vadd.s32 %v4631, 3
      %v4649 = vand.u32 %v4648, 3
      %vm4650 = vcmp.lt.s32.totalorder %v4649, 2
      %vm4651 = vcmp.eq.s32.totalorder %v4649, 0
      %v4652 = vxor.u32 %v4646, 2147483648
      %v4653 = vsel %vm4651, %v4638, %v4652
      %vm4654 = vcmp.eq.s32.totalorder %v4649, 2
      %v4655 = vxor.u32 %v4638, 2147483648
      %v4656 = vsel %vm4654, %v4655, %v4646
      %v4657 = vsel %vm4650, %v4653, %v4656
      %v4658 = vsel %vm4647, nan, %v4657
      %v4659 = vand.u32 2147483647, %v4487
      %vm4660 = vcmp.le.f32.partialorder %v4659, 0.7853982
      %vm4661 = vcmp.lt.s32.totalorder %v4487, 0
      %v4662 = vand.u32 %v4487, 2139095040
      %v4663 = vshrl.u32 %v4662, 23
      %v4664 = vsub.s32 %v4663, 127
      %v4665 = vand.u32 2147483647, %v4487
      %v4666 = vand.u32 %v4665, 8388607
      %v4667 = vor.u32 %v4666, 8388608
      %v4668 = vsub.s32 0, %v4667
      %v4669 = vadd.s32 %v4664, 1
      %vm4670 = vcmp.gt.s32.totalorder %v4669, 0
      %v4671 = vsel %vm4670, %v4669, 0
      %v4672 = vshrl.u32 %v4671, 5
      %v4673 = vand.u32 %v4671, 31
      %v4674 = vsub.s32 32, %v4673
      %v4675 = vshrl.u32 683565275, %v4674
      %v4676 = vshll.u32 683565275, %v4673
      %v4677 = vshrl.u32 2475754826, %v4674
      %v4678 = vor.u32 %v4676, %v4677
      %v4679 = vshll.u32 2475754826, %v4673
      %v4680 = vshrl.u32 2131351028, %v4674
      %v4681 = vor.u32 %v4679, %v4680
      %v4682 = vshll.u32 2131351028, %v4673
      %v4683 = vshrl.u32 2102212464, %v4674
      %v4684 = vor.u32 %v4682, %v4683
      %v4685 = vshll.u32 2102212464, %v4673
      %v4686 = vshrl.u32 920167782, %v4674
      %v4687 = vor.u32 %v4685, %v4686
      %v4688 = vshll.u32 920167782, %v4673
      %v4689 = vshrl.u32 1326507024, %v4674
      %v4690 = vor.u32 %v4688, %v4689
      %vm4691 = vcmp.lt.s32.totalorder %v4672, 1
      %vm4692 = vcmp.lt.s32.totalorder %v4672, 2
      %vm4693 = vcmp.lt.s32.totalorder %v4672, 3
      %vm4694 = vcmp.lt.s32.totalorder %v4672, 4
      %v4695 = vsel %vm4691, %v4675, %v4678
      %v4696 = vsel %vm4694, %v4684, 2102212464
      %v4697 = vsel %vm4693, %v4681, %v4696
      %v4698 = vsel %vm4692, %v4695, %v4697
      %v4699 = vsel %vm4691, %v4678, %v4681
      %v4700 = vsel %vm4694, %v4687, 920167782
      %v4701 = vsel %vm4693, %v4684, %v4700
      %v4702 = vsel %vm4692, %v4699, %v4701
      %v4703 = vsel %vm4691, %v4681, %v4684
      %v4704 = vsel %vm4694, %v4690, 1326507024
      %v4705 = vsel %vm4693, %v4687, %v4704
      %v4706 = vsel %vm4692, %v4703, %v4705
      %v4707 = vshll.u32 %v4667, 8
      %v4708 = vand.u32 %v4707, 65535
      %v4709 = vshrl.u32 %v4707, 16
      %v4710 = vand.u32 %v4706, 65535
      %v4711 = vshrl.u32 %v4706, 16
      %v4712 = vmul.u32 %v4708, %v4710
      %v4713 = vmul.u32 %v4708, %v4711
      %v4714 = vmul.u32 %v4709, %v4710
      %v4715 = vmul.u32 %v4709, %v4711
      %v4716 = vshll.u32 %v4713, 16
      %v4717 = vshrl.u32 %v4713, 16
      %v4718 = vshll.u32 %v4714, 16
      %v4719 = vshrl.u32 %v4714, 16
      %vm4720 = vc.u32 %v4712, %v4716
      %v4721 = vsel %vm4720, 1, 0
      %v4722 = vadd.s32 %v4712, %v4716
      %v4723 = vadd.s32 %v4715, %v4721
      %vm4724 = vc.u32 %v4722, %v4718
      %v4725 = vsel %vm4724, 1, 0
      %v4726 = vadd.s32 %v4722, %v4718
      %v4727 = vadd.s32 %v4723, %v4725
      %v4728 = vadd.s32 %v4727, %v4717
      %v4729 = vadd.s32 %v4728, %v4719
      %v4730 = vand.u32 %v4707, 65535
      %v4731 = vshrl.u32 %v4707, 16
      %v4732 = vand.u32 %v4702, 65535
      %v4733 = vshrl.u32 %v4702, 16
      %v4734 = vmul.u32 %v4730, %v4732
      %v4735 = vmul.u32 %v4730, %v4733
      %v4736 = vmul.u32 %v4731, %v4732
      %v4737 = vmul.u32 %v4731, %v4733
      %v4738 = vshll.u32 %v4735, 16
      %v4739 = vshrl.u32 %v4735, 16
      %v4740 = vshll.u32 %v4736, 16
      %v4741 = vshrl.u32 %v4736, 16
      %vm4742 = vc.u32 %v4734, %v4738
      %v4743 = vsel %vm4742, 1, 0
      %v4744 = vadd.s32 %v4734, %v4738
      %v4745 = vadd.s32 %v4737, %v4743
      %vm4746 = vc.u32 %v4744, %v4740
      %v4747 = vsel %vm4746, 1, 0
      %v4748 = vadd.s32 %v4744, %v4740
      %v4749 = vadd.s32 %v4745, %v4747
      %v4750 = vadd.s32 %v4749, %v4739
      %v4751 = vadd.s32 %v4750, %v4741
      %v4752 = vmul.u32 %v4707, %v4698
      %v4753 = vadd.s32 %v4729, %v4748
      %vm4754 = vc.u32 %v4729, %v4748
      %v4755 = vadd.s32 %v4751, 1
      %v4756 = vsel %vm4754, %v4755, %v4751
      %v4757 = vadd.s32 %v4752, %v4756
      %v4758 = vadd.s32 %v4757, 536870912
      %v4759 = vshrl.u32 %v4758, 30
      %v4760 = vshll.u32 %v4759, 30
      %v4761 = vsub.s32 %v4757, %v4760
      %vm4762 = vcmp.lt.s32.totalorder %v4761, 0
      %v4763 = vsub.s32 0, %v4761
      %v4764 = vsel %vm4762, %v4763, %v4761
      %v4765 = vclz %v4764
      %v4766 = vsub.s32 %v4765, 2
      %vm4767 = vcmp.gt.s32.totalorder 0, %v4766
      %v4768 = vsel %vm4767, 0, %v4766
      %v4769 = vsub.s32 32, %v4768
      %v4770 = vshll.u32 %v4761, %v4768
      %v4771 = vshrl.u32 %v4753, %v4769
      %v4772 = vor.u32 %v4770, %v4771
      %v4773 = vsub.s32 4294967266, %v4768
      %v4774 = vadd.s32 %v4773, 127
      %v4775 = vshll.u32 %v4774, 23
      %v4776 = vor.u32 4788187, %v4775
      %v4777 = vand.u32 2147483647, %v4776
      %v4779 = vcvt.s32.f32 %v4772
      %v4780 = vmul.f32 %v4779, %v4777
      %v4781 = vxor.u32 %v4780, 2147483648
      %v4782 = vsel %vm4661, %v4781, %v4780
      %v4783 = vsub.s32 4, %v4759
      %v4784 = vsel %vm4661, %v4783, %v4759
      %v4785 = vsel %vm4660, %v4487, %v4782
      %v4786 = vsel %vm4660, 0, %v4784
      %v4787 = vmul.f32 %v4785, %v4785
      %v4788 = vmul.f32 %v4787, -0.001358992
      %v4789 = vadd.f32 %v4788, 0.041655596
      %v4790 = vmul.f32 %v4787, %v4789
      %v4791 = vadd.f32 %v4790, -0.4999988
      %v4792 = vmul.f32 %v4787, %v4791
      %v4793 = vadd.f32 1.0, %v4792
      %v4794 = vmul.f32 %v4785, %v4785
      %v4795 = vmul.f32 %v4794, -0.00019511016
      %v4796 = vadd.f32 %v4795, 0.008332121
      %v4797 = vmul.f32 %v4794, %v4796
      %v4798 = vadd.f32 %v4797, -0.16666654
      %v4799 = vmul.f32 %v4794, %v4798
      %v4800 = vadd.f32 %v4799, 1.0
      %v4801 = vmul.f32 %v4800, %v4785
      %vm4802 = vweird.f32 %v4487
      %v4803 = vadd.s32 %v4786, 3
      %v4804 = vand.u32 %v4803, 3
      %vm4805 = vcmp.lt.s32.totalorder %v4804, 2
      %vm4806 = vcmp.eq.s32.totalorder %v4804, 0
      %v4807 = vxor.u32 %v4801, 2147483648
      %v4808 = vsel %vm4806, %v4793, %v4807
      %vm4809 = vcmp.eq.s32.totalorder %v4804, 2
      %v4810 = vxor.u32 %v4793, 2147483648
      %v4811 = vsel %vm4809, %v4810, %v4801
      %v4812 = vsel %vm4805, %v4808, %v4811
      %v4813 = vsel %vm4802, nan, %v4812
      %v4814 = vand.u32 2147483647, %v4490
      %vm4815 = vcmp.le.f32.partialorder %v4814, 0.7853982
      %vm4816 = vcmp.lt.s32.totalorder %v4490, 0
      %v4817 = vand.u32 %v4490, 2139095040
      %v4818 = vshrl.u32 %v4817, 23
      %v4819 = vsub.s32 %v4818, 127
      %v4820 = vand.u32 2147483647, %v4490
      %v4821 = vand.u32 %v4820, 8388607
      %v4822 = vor.u32 %v4821, 8388608
      %v4823 = vsub.s32 0, %v4822
      %v4824 = vadd.s32 %v4819, 1
      %vm4825 = vcmp.gt.s32.totalorder %v4824, 0
      %v4826 = vsel %vm4825, %v4824, 0
      %v4827 = vshrl.u32 %v4826, 5
      %v4828 = vand.u32 %v4826, 31
      %v4829 = vsub.s32 32, %v4828
      %v4830 = vshrl.u32 683565275, %v4829
      %v4831 = vshll.u32 683565275, %v4828
      %v4832 = vshrl.u32 2475754826, %v4829
      %v4833 = vor.u32 %v4831, %v4832
      %v4834 = vshll.u32 2475754826, %v4828
      %v4835 = vshrl.u32 2131351028, %v4829
      %v4836 = vor.u32 %v4834, %v4835
      %v4837 = vshll.u32 2131351028, %v4828
      %v4838 = vshrl.u32 2102212464, %v4829
      %v4839 = vor.u32 %v4837, %v4838
      %v4840 = vshll.u32 2102212464, %v4828
      %v4841 = vshrl.u32 920167782, %v4829
      %v4842 = vor.u32 %v4840, %v4841
      %v4843 = vshll.u32 920167782, %v4828
      %v4844 = vshrl.u32 1326507024, %v4829
      %v4845 = vor.u32 %v4843, %v4844
      %vm4846 = vcmp.lt.s32.totalorder %v4827, 1
      %vm4847 = vcmp.lt.s32.totalorder %v4827, 2
      %vm4848 = vcmp.lt.s32.totalorder %v4827, 3
      %vm4849 = vcmp.lt.s32.totalorder %v4827, 4
      %v4850 = vsel %vm4846, %v4830, %v4833
      %v4851 = vsel %vm4849, %v4839, 2102212464
      %v4852 = vsel %vm4848, %v4836, %v4851
      %v4853 = vsel %vm4847, %v4850, %v4852
      %v4854 = vsel %vm4846, %v4833, %v4836
      %v4855 = vsel %vm4849, %v4842, 920167782
      %v4856 = vsel %vm4848, %v4839, %v4855
      %v4857 = vsel %vm4847, %v4854, %v4856
      %v4858 = vsel %vm4846, %v4836, %v4839
      %v4859 = vsel %vm4849, %v4845, 1326507024
      %v4860 = vsel %vm4848, %v4842, %v4859
      %v4861 = vsel %vm4847, %v4858, %v4860
      %v4862 = vshll.u32 %v4822, 8
      %v4863 = vand.u32 %v4862, 65535
      %v4864 = vshrl.u32 %v4862, 16
      %v4865 = vand.u32 %v4861, 65535
      %v4866 = vshrl.u32 %v4861, 16
      %v4867 = vmul.u32 %v4863, %v4865
      %v4868 = vmul.u32 %v4863, %v4866
      %v4869 = vmul.u32 %v4864, %v4865
      %v4870 = vmul.u32 %v4864, %v4866
      %v4871 = vshll.u32 %v4868, 16
      %v4872 = vshrl.u32 %v4868, 16
      %v4873 = vshll.u32 %v4869, 16
      %v4874 = vshrl.u32 %v4869, 16
      %vm4875 = vc.u32 %v4867, %v4871
      %v4876 = vsel %vm4875, 1, 0
      %v4877 = vadd.s32 %v4867, %v4871
      %v4878 = vadd.s32 %v4870, %v4876
      %vm4879 = vc.u32 %v4877, %v4873
      %v4880 = vsel %vm4879, 1, 0
      %v4881 = vadd.s32 %v4877, %v4873
      %v4882 = vadd.s32 %v4878, %v4880
      %v4883 = vadd.s32 %v4882, %v4872
      %v4884 = vadd.s32 %v4883, %v4874
      %v4885 = vand.u32 %v4862, 65535
      %v4886 = vshrl.u32 %v4862, 16
      %v4887 = vand.u32 %v4857, 65535
      %v4888 = vshrl.u32 %v4857, 16
      %v4889 = vmul.u32 %v4885, %v4887
      %v4890 = vmul.u32 %v4885, %v4888
      %v4891 = vmul.u32 %v4886, %v4887
      %v4892 = vmul.u32 %v4886, %v4888
      %v4893 = vshll.u32 %v4890, 16
      %v4894 = vshrl.u32 %v4890, 16
      %v4895 = vshll.u32 %v4891, 16
      %v4896 = vshrl.u32 %v4891, 16
      %vm4897 = vc.u32 %v4889, %v4893
      %v4898 = vsel %vm4897, 1, 0
      %v4899 = vadd.s32 %v4889, %v4893
      %v4900 = vadd.s32 %v4892, %v4898
      %vm4901 = vc.u32 %v4899, %v4895
      %v4902 = vsel %vm4901, 1, 0
      %v4903 = vadd.s32 %v4899, %v4895
      %v4904 = vadd.s32 %v4900, %v4902
      %v4905 = vadd.s32 %v4904, %v4894
      %v4906 = vadd.s32 %v4905, %v4896
      %v4907 = vmul.u32 %v4862, %v4853
      %v4908 = vadd.s32 %v4884, %v4903
      %vm4909 = vc.u32 %v4884, %v4903
      %v4910 = vadd.s32 %v4906, 1
      %v4911 = vsel %vm4909, %v4910, %v4906
      %v4912 = vadd.s32 %v4907, %v4911
      %v4913 = vadd.s32 %v4912, 536870912
      %v4914 = vshrl.u32 %v4913, 30
      %v4915 = vshll.u32 %v4914, 30
      %v4916 = vsub.s32 %v4912, %v4915
      %vm4917 = vcmp.lt.s32.totalorder %v4916, 0
      %v4918 = vsub.s32 0, %v4916
      %v4919 = vsel %vm4917, %v4918, %v4916
      %v4920 = vclz %v4919
      %v4921 = vsub.s32 %v4920, 2
      %vm4922 = vcmp.gt.s32.totalorder 0, %v4921
      %v4923 = vsel %vm4922, 0, %v4921
      %v4924 = vsub.s32 32, %v4923
      %v4925 = vshll.u32 %v4916, %v4923
      %v4926 = vshrl.u32 %v4908, %v4924
      %v4927 = vor.u32 %v4925, %v4926
      %v4928 = vsub.s32 4294967266, %v4923
      %v4929 = vadd.s32 %v4928, 127
      %v4930 = vshll.u32 %v4929, 23
      %v4931 = vor.u32 4788187, %v4930
      %v4932 = vand.u32 2147483647, %v4931
      %v4934 = vcvt.s32.f32 %v4927
      %v4935 = vmul.f32 %v4934, %v4932
      %v4936 = vxor.u32 %v4935, 2147483648
      %v4937 = vsel %vm4816, %v4936, %v4935
      %v4938 = vsub.s32 4, %v4914
      %v4939 = vsel %vm4816, %v4938, %v4914
      %v4940 = vsel %vm4815, %v4490, %v4937
      %v4941 = vsel %vm4815, 0, %v4939
      %v4942 = vmul.f32 %v4940, %v4940
      %v4943 = vmul.f32 %v4942, -0.001358992
      %v4944 = vadd.f32 %v4943, 0.041655596
      %v4945 = vmul.f32 %v4942, %v4944
      %v4946 = vadd.f32 %v4945, -0.4999988
      %v4947 = vmul.f32 %v4942, %v4946
      %v4948 = vadd.f32 1.0, %v4947
      %v4949 = vmul.f32 %v4940, %v4940
      %v4950 = vmul.f32 %v4949, -0.00019511016
      %v4951 = vadd.f32 %v4950, 0.008332121
      %v4952 = vmul.f32 %v4949, %v4951
      %v4953 = vadd.f32 %v4952, -0.16666654
      %v4954 = vmul.f32 %v4949, %v4953
      %v4955 = vadd.f32 %v4954, 1.0
      %v4956 = vmul.f32 %v4955, %v4940
      %vm4957 = vweird.f32 %v4490
      %v4958 = vadd.s32 %v4941, 3
      %v4959 = vand.u32 %v4958, 3
      %vm4960 = vcmp.lt.s32.totalorder %v4959, 2
      %vm4961 = vcmp.eq.s32.totalorder %v4959, 0
      %v4962 = vxor.u32 %v4956, 2147483648
      %v4963 = vsel %vm4961, %v4948, %v4962
      %vm4964 = vcmp.eq.s32.totalorder %v4959, 2
      %v4965 = vxor.u32 %v4948, 2147483648
      %v4966 = vsel %vm4964, %v4965, %v4956
      %v4967 = vsel %vm4960, %v4963, %v4966
      %v4968 = vsel %vm4957, nan, %v4967
      %v4969 = vand.u32 2147483647, %v4492
      %vm4970 = vcmp.le.f32.partialorder %v4969, 0.7853982
      %vm4971 = vcmp.lt.s32.totalorder %v4492, 0
      %v4972 = vand.u32 %v4492, 2139095040
      %v4973 = vshrl.u32 %v4972, 23
      %v4974 = vsub.s32 %v4973, 127
      %v4975 = vand.u32 2147483647, %v4492
      %v4976 = vand.u32 %v4975, 8388607
      %v4977 = vor.u32 %v4976, 8388608
      %v4978 = vsub.s32 0, %v4977
      %v4979 = vadd.s32 %v4974, 1
      %vm4980 = vcmp.gt.s32.totalorder %v4979, 0
      %v4981 = vsel %vm4980, %v4979, 0
      %v4982 = vshrl.u32 %v4981, 5
      %v4983 = vand.u32 %v4981, 31
      %v4984 = vsub.s32 32, %v4983
      %v4985 = vshrl.u32 683565275, %v4984
      %v4986 = vshll.u32 683565275, %v4983
      %v4987 = vshrl.u32 2475754826, %v4984
      %v4988 = vor.u32 %v4986, %v4987
      %v4989 = vshll.u32 2475754826, %v4983
      %v4990 = vshrl.u32 2131351028, %v4984
      %v4991 = vor.u32 %v4989, %v4990
      %v4992 = vshll.u32 2131351028, %v4983
      %v4993 = vshrl.u32 2102212464, %v4984
      %v4994 = vor.u32 %v4992, %v4993
      %v4995 = vshll.u32 2102212464, %v4983
      %v4996 = vshrl.u32 920167782, %v4984
      %v4997 = vor.u32 %v4995, %v4996
      %v4998 = vshll.u32 920167782, %v4983
      %v4999 = vshrl.u32 1326507024, %v4984
      %v5000 = vor.u32 %v4998, %v4999
      %vm5001 = vcmp.lt.s32.totalorder %v4982, 1
      %vm5002 = vcmp.lt.s32.totalorder %v4982, 2
      %vm5003 = vcmp.lt.s32.totalorder %v4982, 3
      %vm5004 = vcmp.lt.s32.totalorder %v4982, 4
      %v5005 = vsel %vm5001, %v4985, %v4988
      %v5006 = vsel %vm5004, %v4994, 2102212464
      %v5007 = vsel %vm5003, %v4991, %v5006
      %v5008 = vsel %vm5002, %v5005, %v5007
      %v5009 = vsel %vm5001, %v4988, %v4991
      %v5010 = vsel %vm5004, %v4997, 920167782
      %v5011 = vsel %vm5003, %v4994, %v5010
      %v5012 = vsel %vm5002, %v5009, %v5011
      %v5013 = vsel %vm5001, %v4991, %v4994
      %v5014 = vsel %vm5004, %v5000, 1326507024
      %v5015 = vsel %vm5003, %v4997, %v5014
      %v5016 = vsel %vm5002, %v5013, %v5015
      %v5017 = vshll.u32 %v4977, 8
      %v5018 = vand.u32 %v5017, 65535
      %v5019 = vshrl.u32 %v5017, 16
      %v5020 = vand.u32 %v5016, 65535
      %v5021 = vshrl.u32 %v5016, 16
      %v5022 = vmul.u32 %v5018, %v5020
      %v5023 = vmul.u32 %v5018, %v5021
      %v5024 = vmul.u32 %v5019, %v5020
      %v5025 = vmul.u32 %v5019, %v5021
      %v5026 = vshll.u32 %v5023, 16
      %v5027 = vshrl.u32 %v5023, 16
      %v5028 = vshll.u32 %v5024, 16
      %v5029 = vshrl.u32 %v5024, 16
      %vm5030 = vc.u32 %v5022, %v5026
      %v5031 = vsel %vm5030, 1, 0
      %v5032 = vadd.s32 %v5022, %v5026
      %v5033 = vadd.s32 %v5025, %v5031
      %vm5034 = vc.u32 %v5032, %v5028
      %v5035 = vsel %vm5034, 1, 0
      %v5036 = vadd.s32 %v5032, %v5028
      %v5037 = vadd.s32 %v5033, %v5035
      %v5038 = vadd.s32 %v5037, %v5027
      %v5039 = vadd.s32 %v5038, %v5029
      %v5040 = vand.u32 %v5017, 65535
      %v5041 = vshrl.u32 %v5017, 16
      %v5042 = vand.u32 %v5012, 65535
      %v5043 = vshrl.u32 %v5012, 16
      %v5044 = vmul.u32 %v5040, %v5042
      %v5045 = vmul.u32 %v5040, %v5043
      %v5046 = vmul.u32 %v5041, %v5042
      %v5047 = vmul.u32 %v5041, %v5043
      %v5048 = vshll.u32 %v5045, 16
      %v5049 = vshrl.u32 %v5045, 16
      %v5050 = vshll.u32 %v5046, 16
      %v5051 = vshrl.u32 %v5046, 16
      %vm5052 = vc.u32 %v5044, %v5048
      %v5053 = vsel %vm5052, 1, 0
      %v5054 = vadd.s32 %v5044, %v5048
      %v5055 = vadd.s32 %v5047, %v5053
      %vm5056 = vc.u32 %v5054, %v5050
      %v5057 = vsel %vm5056, 1, 0
      %v5058 = vadd.s32 %v5054, %v5050
      %v5059 = vadd.s32 %v5055, %v5057
      %v5060 = vadd.s32 %v5059, %v5049
      %v5061 = vadd.s32 %v5060, %v5051
      %v5062 = vmul.u32 %v5017, %v5008
      %v5063 = vadd.s32 %v5039, %v5058
      %vm5064 = vc.u32 %v5039, %v5058
      %v5065 = vadd.s32 %v5061, 1
      %v5066 = vsel %vm5064, %v5065, %v5061
      %v5067 = vadd.s32 %v5062, %v5066
      %v5068 = vadd.s32 %v5067, 536870912
      %v5069 = vshrl.u32 %v5068, 30
      %v5070 = vshll.u32 %v5069, 30
      %v5071 = vsub.s32 %v5067, %v5070
      %vm5072 = vcmp.lt.s32.totalorder %v5071, 0
      %v5073 = vsub.s32 0, %v5071
      %v5074 = vsel %vm5072, %v5073, %v5071
      %v5075 = vclz %v5074
      %v5076 = vsub.s32 %v5075, 2
      %vm5077 = vcmp.gt.s32.totalorder 0, %v5076
      %v5078 = vsel %vm5077, 0, %v5076
      %v5079 = vsub.s32 32, %v5078
      %v5080 = vshll.u32 %v5071, %v5078
      %v5081 = vshrl.u32 %v5063, %v5079
      %v5082 = vor.u32 %v5080, %v5081
      %v5083 = vsub.s32 4294967266, %v5078
      %v5084 = vadd.s32 %v5083, 127
      %v5085 = vshll.u32 %v5084, 23
      %v5086 = vor.u32 4788187, %v5085
      %v5087 = vand.u32 2147483647, %v5086
      %v5089 = vcvt.s32.f32 %v5082
      %v5090 = vmul.f32 %v5089, %v5087
      %v5091 = vxor.u32 %v5090, 2147483648
      %v5092 = vsel %vm4971, %v5091, %v5090
      %v5093 = vsub.s32 4, %v5069
      %v5094 = vsel %vm4971, %v5093, %v5069
      %v5095 = vsel %vm4970, %v4492, %v5092
      %v5096 = vsel %vm4970, 0, %v5094
      %v5097 = vmul.f32 %v5095, %v5095
      %v5098 = vmul.f32 %v5097, -0.001358992
      %v5099 = vadd.f32 %v5098, 0.041655596
      %v5100 = vmul.f32 %v5097, %v5099
      %v5101 = vadd.f32 %v5100, -0.4999988
      %v5102 = vmul.f32 %v5097, %v5101
      %v5103 = vadd.f32 1.0, %v5102
      %v5104 = vmul.f32 %v5095, %v5095
      %v5105 = vmul.f32 %v5104, -0.00019511016
      %v5106 = vadd.f32 %v5105, 0.008332121
      %v5107 = vmul.f32 %v5104, %v5106
      %v5108 = vadd.f32 %v5107, -0.16666654
      %v5109 = vmul.f32 %v5104, %v5108
      %v5110 = vadd.f32 %v5109, 1.0
      %v5111 = vmul.f32 %v5110, %v5095
      %vm5112 = vweird.f32 %v4492
      %v5113 = vadd.s32 %v5096, 3
      %v5114 = vand.u32 %v5113, 3
      %vm5115 = vcmp.lt.s32.totalorder %v5114, 2
      %vm5116 = vcmp.eq.s32.totalorder %v5114, 0
      %v5117 = vxor.u32 %v5111, 2147483648
      %v5118 = vsel %vm5116, %v5103, %v5117
      %vm5119 = vcmp.eq.s32.totalorder %v5114, 2
      %v5120 = vxor.u32 %v5103, 2147483648
      %v5121 = vsel %vm5119, %v5120, %v5111
      %v5122 = vsel %vm5115, %v5118, %v5121
      %v5123 = vsel %vm5112, nan, %v5122
      %v5124 = vand.u32 2147483647, %v4495
      %vm5125 = vcmp.le.f32.partialorder %v5124, 0.7853982
      %vm5126 = vcmp.lt.s32.totalorder %v4495, 0
      %v5127 = vand.u32 %v4495, 2139095040
      %v5128 = vshrl.u32 %v5127, 23
      %v5129 = vsub.s32 %v5128, 127
      %v5130 = vand.u32 2147483647, %v4495
      %v5131 = vand.u32 %v5130, 8388607
      %v5132 = vor.u32 %v5131, 8388608
      %v5133 = vsub.s32 0, %v5132
      %v5134 = vadd.s32 %v5129, 1
      %vm5135 = vcmp.gt.s32.totalorder %v5134, 0
      %v5136 = vsel %vm5135, %v5134, 0
      %v5137 = vshrl.u32 %v5136, 5
      %v5138 = vand.u32 %v5136, 31
      %v5139 = vsub.s32 32, %v5138
      %v5140 = vshrl.u32 683565275, %v5139
      %v5141 = vshll.u32 683565275, %v5138
      %v5142 = vshrl.u32 2475754826, %v5139
      %v5143 = vor.u32 %v5141, %v5142
      %v5144 = vshll.u32 2475754826, %v5138
      %v5145 = vshrl.u32 2131351028, %v5139
      %v5146 = vor.u32 %v5144, %v5145
      %v5147 = vshll.u32 2131351028, %v5138
      %v5148 = vshrl.u32 2102212464, %v5139
      %v5149 = vor.u32 %v5147, %v5148
      %v5150 = vshll.u32 2102212464, %v5138
      %v5151 = vshrl.u32 920167782, %v5139
      %v5152 = vor.u32 %v5150, %v5151
      %v5153 = vshll.u32 920167782, %v5138
      %v5154 = vshrl.u32 1326507024, %v5139
      %v5155 = vor.u32 %v5153, %v5154
      %vm5156 = vcmp.lt.s32.totalorder %v5137, 1
      %vm5157 = vcmp.lt.s32.totalorder %v5137, 2
      %vm5158 = vcmp.lt.s32.totalorder %v5137, 3
      %vm5159 = vcmp.lt.s32.totalorder %v5137, 4
      %v5160 = vsel %vm5156, %v5140, %v5143
      %v5161 = vsel %vm5159, %v5149, 2102212464
      %v5162 = vsel %vm5158, %v5146, %v5161
      %v5163 = vsel %vm5157, %v5160, %v5162
      %v5164 = vsel %vm5156, %v5143, %v5146
      %v5165 = vsel %vm5159, %v5152, 920167782
      %v5166 = vsel %vm5158, %v5149, %v5165
      %v5167 = vsel %vm5157, %v5164, %v5166
      %v5168 = vsel %vm5156, %v5146, %v5149
      %v5169 = vsel %vm5159, %v5155, 1326507024
      %v5170 = vsel %vm5158, %v5152, %v5169
      %v5171 = vsel %vm5157, %v5168, %v5170
      %v5172 = vshll.u32 %v5132, 8
      %v5173 = vand.u32 %v5172, 65535
      %v5174 = vshrl.u32 %v5172, 16
      %v5175 = vand.u32 %v5171, 65535
      %v5176 = vshrl.u32 %v5171, 16
      %v5177 = vmul.u32 %v5173, %v5175
      %v5178 = vmul.u32 %v5173, %v5176
      %v5179 = vmul.u32 %v5174, %v5175
      %v5180 = vmul.u32 %v5174, %v5176
      %v5181 = vshll.u32 %v5178, 16
      %v5182 = vshrl.u32 %v5178, 16
      %v5183 = vshll.u32 %v5179, 16
      %v5184 = vshrl.u32 %v5179, 16
      %vm5185 = vc.u32 %v5177, %v5181
      %v5186 = vsel %vm5185, 1, 0
      %v5187 = vadd.s32 %v5177, %v5181
      %v5188 = vadd.s32 %v5180, %v5186
      %vm5189 = vc.u32 %v5187, %v5183
      %v5190 = vsel %vm5189, 1, 0
      %v5191 = vadd.s32 %v5187, %v5183
      %v5192 = vadd.s32 %v5188, %v5190
      %v5193 = vadd.s32 %v5192, %v5182
      %v5194 = vadd.s32 %v5193, %v5184
      %v5195 = vand.u32 %v5172, 65535
      %v5196 = vshrl.u32 %v5172, 16
      %v5197 = vand.u32 %v5167, 65535
      %v5198 = vshrl.u32 %v5167, 16
      %v5199 = vmul.u32 %v5195, %v5197
      %v5200 = vmul.u32 %v5195, %v5198
      %v5201 = vmul.u32 %v5196, %v5197
      %v5202 = vmul.u32 %v5196, %v5198
      %v5203 = vshll.u32 %v5200, 16
      %v5204 = vshrl.u32 %v5200, 16
      %v5205 = vshll.u32 %v5201, 16
      %v5206 = vshrl.u32 %v5201, 16
      %vm5207 = vc.u32 %v5199, %v5203
      %v5208 = vsel %vm5207, 1, 0
      %v5209 = vadd.s32 %v5199, %v5203
      %v5210 = vadd.s32 %v5202, %v5208
      %vm5211 = vc.u32 %v5209, %v5205
      %v5212 = vsel %vm5211, 1, 0
      %v5213 = vadd.s32 %v5209, %v5205
      %v5214 = vadd.s32 %v5210, %v5212
      %v5215 = vadd.s32 %v5214, %v5204
      %v5216 = vadd.s32 %v5215, %v5206
      %v5217 = vmul.u32 %v5172, %v5163
      %v5218 = vadd.s32 %v5194, %v5213
      %vm5219 = vc.u32 %v5194, %v5213
      %v5220 = vadd.s32 %v5216, 1
      %v5221 = vsel %vm5219, %v5220, %v5216
      %v5222 = vadd.s32 %v5217, %v5221
      %v5223 = vadd.s32 %v5222, 536870912
      %v5224 = vshrl.u32 %v5223, 30
      %v5225 = vshll.u32 %v5224, 30
      %v5226 = vsub.s32 %v5222, %v5225
      %vm5227 = vcmp.lt.s32.totalorder %v5226, 0
      %v5228 = vsub.s32 0, %v5226
      %v5229 = vsel %vm5227, %v5228, %v5226
      %v5230 = vclz %v5229
      %v5231 = vsub.s32 %v5230, 2
      %vm5232 = vcmp.gt.s32.totalorder 0, %v5231
      %v5233 = vsel %vm5232, 0, %v5231
      %v5234 = vsub.s32 32, %v5233
      %v5235 = vshll.u32 %v5226, %v5233
      %v5236 = vshrl.u32 %v5218, %v5234
      %v5237 = vor.u32 %v5235, %v5236
      %v5238 = vsub.s32 4294967266, %v5233
      %v5239 = vadd.s32 %v5238, 127
      %v5240 = vshll.u32 %v5239, 23
      %v5241 = vor.u32 4788187, %v5240
      %v5242 = vand.u32 2147483647, %v5241
      %v5244 = vcvt.s32.f32 %v5237
      %v5245 = vmul.f32 %v5244, %v5242
      %v5246 = vxor.u32 %v5245, 2147483648
      %v5247 = vsel %vm5126, %v5246, %v5245
      %v5248 = vsub.s32 4, %v5224
      %v5249 = vsel %vm5126, %v5248, %v5224
      %v5250 = vsel %vm5125, %v4495, %v5247
      %v5251 = vsel %vm5125, 0, %v5249
      %v5252 = vmul.f32 %v5250, %v5250
      %v5253 = vmul.f32 %v5252, -0.001358992
      %v5254 = vadd.f32 %v5253, 0.041655596
      %v5255 = vmul.f32 %v5252, %v5254
      %v5256 = vadd.f32 %v5255, -0.4999988
      %v5257 = vmul.f32 %v5252, %v5256
      %v5258 = vadd.f32 1.0, %v5257
      %v5259 = vmul.f32 %v5250, %v5250
      %v5260 = vmul.f32 %v5259, -0.00019511016
      %v5261 = vadd.f32 %v5260, 0.008332121
      %v5262 = vmul.f32 %v5259, %v5261
      %v5263 = vadd.f32 %v5262, -0.16666654
      %v5264 = vmul.f32 %v5259, %v5263
      %v5265 = vadd.f32 %v5264, 1.0
      %v5266 = vmul.f32 %v5265, %v5250
      %vm5267 = vweird.f32 %v4495
      %v5268 = vadd.s32 %v5251, 3
      %v5269 = vand.u32 %v5268, 3
      %vm5270 = vcmp.lt.s32.totalorder %v5269, 2
      %vm5271 = vcmp.eq.s32.totalorder %v5269, 0
      %v5272 = vxor.u32 %v5266, 2147483648
      %v5273 = vsel %vm5271, %v5258, %v5272
      %vm5274 = vcmp.eq.s32.totalorder %v5269, 2
      %v5275 = vxor.u32 %v5258, 2147483648
      %v5276 = vsel %vm5274, %v5275, %v5266
      %v5277 = vsel %vm5270, %v5273, %v5276
      %v5278 = vsel %vm5267, nan, %v5277
      %v5279 = vand.u32 2147483647, %v4497
      %vm5280 = vcmp.le.f32.partialorder %v5279, 0.7853982
      %vm5281 = vcmp.lt.s32.totalorder %v4497, 0
      %v5282 = vand.u32 %v4497, 2139095040
      %v5283 = vshrl.u32 %v5282, 23
      %v5284 = vsub.s32 %v5283, 127
      %v5285 = vand.u32 2147483647, %v4497
      %v5286 = vand.u32 %v5285, 8388607
      %v5287 = vor.u32 %v5286, 8388608
      %v5288 = vsub.s32 0, %v5287
      %v5289 = vadd.s32 %v5284, 1
      %vm5290 = vcmp.gt.s32.totalorder %v5289, 0
      %v5291 = vsel %vm5290, %v5289, 0
      %v5292 = vshrl.u32 %v5291, 5
      %v5293 = vand.u32 %v5291, 31
      %v5294 = vsub.s32 32, %v5293
      %v5295 = vshrl.u32 683565275, %v5294
      %v5296 = vshll.u32 683565275, %v5293
      %v5297 = vshrl.u32 2475754826, %v5294
      %v5298 = vor.u32 %v5296, %v5297
      %v5299 = vshll.u32 2475754826, %v5293
      %v5300 = vshrl.u32 2131351028, %v5294
      %v5301 = vor.u32 %v5299, %v5300
      %v5302 = vshll.u32 2131351028, %v5293
      %v5303 = vshrl.u32 2102212464, %v5294
      %v5304 = vor.u32 %v5302, %v5303
      %v5305 = vshll.u32 2102212464, %v5293
      %v5306 = vshrl.u32 920167782, %v5294
      %v5307 = vor.u32 %v5305, %v5306
      %v5308 = vshll.u32 920167782, %v5293
      %v5309 = vshrl.u32 1326507024, %v5294
      %v5310 = vor.u32 %v5308, %v5309
      %vm5311 = vcmp.lt.s32.totalorder %v5292, 1
      %vm5312 = vcmp.lt.s32.totalorder %v5292, 2
      %vm5313 = vcmp.lt.s32.totalorder %v5292, 3
      %vm5314 = vcmp.lt.s32.totalorder %v5292, 4
      %v5315 = vsel %vm5311, %v5295, %v5298
      %v5316 = vsel %vm5314, %v5304, 2102212464
      %v5317 = vsel %vm5313, %v5301, %v5316
      %v5318 = vsel %vm5312, %v5315, %v5317
      %v5319 = vsel %vm5311, %v5298, %v5301
      %v5320 = vsel %vm5314, %v5307, 920167782
      %v5321 = vsel %vm5313, %v5304, %v5320
      %v5322 = vsel %vm5312, %v5319, %v5321
      %v5323 = vsel %vm5311, %v5301, %v5304
      %v5324 = vsel %vm5314, %v5310, 1326507024
      %v5325 = vsel %vm5313, %v5307, %v5324
      %v5326 = vsel %vm5312, %v5323, %v5325
      %v5327 = vshll.u32 %v5287, 8
      %v5328 = vand.u32 %v5327, 65535
      %v5329 = vshrl.u32 %v5327, 16
      %v5330 = vand.u32 %v5326, 65535
      %v5331 = vshrl.u32 %v5326, 16
      %v5332 = vmul.u32 %v5328, %v5330
      %v5333 = vmul.u32 %v5328, %v5331
      %v5334 = vmul.u32 %v5329, %v5330
      %v5335 = vmul.u32 %v5329, %v5331
      %v5336 = vshll.u32 %v5333, 16
      %v5337 = vshrl.u32 %v5333, 16
      %v5338 = vshll.u32 %v5334, 16
      %v5339 = vshrl.u32 %v5334, 16
      %vm5340 = vc.u32 %v5332, %v5336
      %v5341 = vsel %vm5340, 1, 0
      %v5342 = vadd.s32 %v5332, %v5336
      %v5343 = vadd.s32 %v5335, %v5341
      %vm5344 = vc.u32 %v5342, %v5338
      %v5345 = vsel %vm5344, 1, 0
      %v5346 = vadd.s32 %v5342, %v5338
      %v5347 = vadd.s32 %v5343, %v5345
      %v5348 = vadd.s32 %v5347, %v5337
      %v5349 = vadd.s32 %v5348, %v5339
      %v5350 = vand.u32 %v5327, 65535
      %v5351 = vshrl.u32 %v5327, 16
      %v5352 = vand.u32 %v5322, 65535
      %v5353 = vshrl.u32 %v5322, 16
      %v5354 = vmul.u32 %v5350, %v5352
      %v5355 = vmul.u32 %v5350, %v5353
      %v5356 = vmul.u32 %v5351, %v5352
      %v5357 = vmul.u32 %v5351, %v5353
      %v5358 = vshll.u32 %v5355, 16
      %v5359 = vshrl.u32 %v5355, 16
      %v5360 = vshll.u32 %v5356, 16
      %v5361 = vshrl.u32 %v5356, 16
      %vm5362 = vc.u32 %v5354, %v5358
      %v5363 = vsel %vm5362, 1, 0
      %v5364 = vadd.s32 %v5354, %v5358
      %v5365 = vadd.s32 %v5357, %v5363
      %vm5366 = vc.u32 %v5364, %v5360
      %v5367 = vsel %vm5366, 1, 0
      %v5368 = vadd.s32 %v5364, %v5360
      %v5369 = vadd.s32 %v5365, %v5367
      %v5370 = vadd.s32 %v5369, %v5359
      %v5371 = vadd.s32 %v5370, %v5361
      %v5372 = vmul.u32 %v5327, %v5318
      %v5373 = vadd.s32 %v5349, %v5368
      %vm5374 = vc.u32 %v5349, %v5368
      %v5375 = vadd.s32 %v5371, 1
      %v5376 = vsel %vm5374, %v5375, %v5371
      %v5377 = vadd.s32 %v5372, %v5376
      %v5378 = vadd.s32 %v5377, 536870912
      %v5379 = vshrl.u32 %v5378, 30
      %v5380 = vshll.u32 %v5379, 30
      %v5381 = vsub.s32 %v5377, %v5380
      %vm5382 = vcmp.lt.s32.totalorder %v5381, 0
      %v5383 = vsub.s32 0, %v5381
      %v5384 = vsel %vm5382, %v5383, %v5381
      %v5385 = vclz %v5384
      %v5386 = vsub.s32 %v5385, 2
      %vm5387 = vcmp.gt.s32.totalorder 0, %v5386
      %v5388 = vsel %vm5387, 0, %v5386
      %v5389 = vsub.s32 32, %v5388
      %v5390 = vshll.u32 %v5381, %v5388
      %v5391 = vshrl.u32 %v5373, %v5389
      %v5392 = vor.u32 %v5390, %v5391
      %v5393 = vsub.s32 4294967266, %v5388
      %v5394 = vadd.s32 %v5393, 127
      %v5395 = vshll.u32 %v5394, 23
      %v5396 = vor.u32 4788187, %v5395
      %v5397 = vand.u32 2147483647, %v5396
      %v5399 = vcvt.s32.f32 %v5392
      %v5400 = vmul.f32 %v5399, %v5397
      %v5401 = vxor.u32 %v5400, 2147483648
      %v5402 = vsel %vm5281, %v5401, %v5400
      %v5403 = vsub.s32 4, %v5379
      %v5404 = vsel %vm5281, %v5403, %v5379
      %v5405 = vsel %vm5280, %v4497, %v5402
      %v5406 = vsel %vm5280, 0, %v5404
      %v5407 = vmul.f32 %v5405, %v5405
      %v5408 = vmul.f32 %v5407, -0.001358992
      %v5409 = vadd.f32 %v5408, 0.041655596
      %v5410 = vmul.f32 %v5407, %v5409
      %v5411 = vadd.f32 %v5410, -0.4999988
      %v5412 = vmul.f32 %v5407, %v5411
      %v5413 = vadd.f32 1.0, %v5412
      %v5414 = vmul.f32 %v5405, %v5405
      %v5415 = vmul.f32 %v5414, -0.00019511016
      %v5416 = vadd.f32 %v5415, 0.008332121
      %v5417 = vmul.f32 %v5414, %v5416
      %v5418 = vadd.f32 %v5417, -0.16666654
      %v5419 = vmul.f32 %v5414, %v5418
      %v5420 = vadd.f32 %v5419, 1.0
      %v5421 = vmul.f32 %v5420, %v5405
      %vm5422 = vweird.f32 %v4497
      %v5423 = vadd.s32 %v5406, 3
      %v5424 = vand.u32 %v5423, 3
      %vm5425 = vcmp.lt.s32.totalorder %v5424, 2
      %vm5426 = vcmp.eq.s32.totalorder %v5424, 0
      %v5427 = vxor.u32 %v5421, 2147483648
      %v5428 = vsel %vm5426, %v5413, %v5427
      %vm5429 = vcmp.eq.s32.totalorder %v5424, 2
      %v5430 = vxor.u32 %v5413, 2147483648
      %v5431 = vsel %vm5429, %v5430, %v5421
      %v5432 = vsel %vm5425, %v5428, %v5431
      %v5433 = vsel %vm5422, nan, %v5432
      %v5434 = vand.u32 2147483647, %v4500
      %vm5435 = vcmp.le.f32.partialorder %v5434, 0.7853982
      %vm5436 = vcmp.lt.s32.totalorder %v4500, 0
      %v5437 = vand.u32 %v4500, 2139095040
      %v5438 = vshrl.u32 %v5437, 23
      %v5439 = vsub.s32 %v5438, 127
      %v5440 = vand.u32 2147483647, %v4500
      %v5441 = vand.u32 %v5440, 8388607
      %v5442 = vor.u32 %v5441, 8388608
      %v5443 = vsub.s32 0, %v5442
      %v5444 = vadd.s32 %v5439, 1
      %vm5445 = vcmp.gt.s32.totalorder %v5444, 0
      %v5446 = vsel %vm5445, %v5444, 0
      %v5447 = vshrl.u32 %v5446, 5
      %v5448 = vand.u32 %v5446, 31
      %v5449 = vsub.s32 32, %v5448
      %v5450 = vshrl.u32 683565275, %v5449
      %v5451 = vshll.u32 683565275, %v5448
      %v5452 = vshrl.u32 2475754826, %v5449
      %v5453 = vor.u32 %v5451, %v5452
      %v5454 = vshll.u32 2475754826, %v5448
      %v5455 = vshrl.u32 2131351028, %v5449
      %v5456 = vor.u32 %v5454, %v5455
      %v5457 = vshll.u32 2131351028, %v5448
      %v5458 = vshrl.u32 2102212464, %v5449
      %v5459 = vor.u32 %v5457, %v5458
      %v5460 = vshll.u32 2102212464, %v5448
      %v5461 = vshrl.u32 920167782, %v5449
      %v5462 = vor.u32 %v5460, %v5461
      %v5463 = vshll.u32 920167782, %v5448
      %v5464 = vshrl.u32 1326507024, %v5449
      %v5465 = vor.u32 %v5463, %v5464
      %vm5466 = vcmp.lt.s32.totalorder %v5447, 1
      %vm5467 = vcmp.lt.s32.totalorder %v5447, 2
      %vm5468 = vcmp.lt.s32.totalorder %v5447, 3
      %vm5469 = vcmp.lt.s32.totalorder %v5447, 4
      %v5470 = vsel %vm5466, %v5450, %v5453
      %v5471 = vsel %vm5469, %v5459, 2102212464
      %v5472 = vsel %vm5468, %v5456, %v5471
      %v5473 = vsel %vm5467, %v5470, %v5472
      %v5474 = vsel %vm5466, %v5453, %v5456
      %v5475 = vsel %vm5469, %v5462, 920167782
      %v5476 = vsel %vm5468, %v5459, %v5475
      %v5477 = vsel %vm5467, %v5474, %v5476
      %v5478 = vsel %vm5466, %v5456, %v5459
      %v5479 = vsel %vm5469, %v5465, 1326507024
      %v5480 = vsel %vm5468, %v5462, %v5479
      %v5481 = vsel %vm5467, %v5478, %v5480
      %v5482 = vshll.u32 %v5442, 8
      %v5483 = vand.u32 %v5482, 65535
      %v5484 = vshrl.u32 %v5482, 16
      %v5485 = vand.u32 %v5481, 65535
      %v5486 = vshrl.u32 %v5481, 16
      %v5487 = vmul.u32 %v5483, %v5485
      %v5488 = vmul.u32 %v5483, %v5486
      %v5489 = vmul.u32 %v5484, %v5485
      %v5490 = vmul.u32 %v5484, %v5486
      %v5491 = vshll.u32 %v5488, 16
      %v5492 = vshrl.u32 %v5488, 16
      %v5493 = vshll.u32 %v5489, 16
      %v5494 = vshrl.u32 %v5489, 16
      %vm5495 = vc.u32 %v5487, %v5491
      %v5496 = vsel %vm5495, 1, 0
      %v5497 = vadd.s32 %v5487, %v5491
      %v5498 = vadd.s32 %v5490, %v5496
      %vm5499 = vc.u32 %v5497, %v5493
      %v5500 = vsel %vm5499, 1, 0
      %v5501 = vadd.s32 %v5497, %v5493
      %v5502 = vadd.s32 %v5498, %v5500
      %v5503 = vadd.s32 %v5502, %v5492
      %v5504 = vadd.s32 %v5503, %v5494
      %v5505 = vand.u32 %v5482, 65535
      %v5506 = vshrl.u32 %v5482, 16
      %v5507 = vand.u32 %v5477, 65535
      %v5508 = vshrl.u32 %v5477, 16
      %v5509 = vmul.u32 %v5505, %v5507
      %v5510 = vmul.u32 %v5505, %v5508
      %v5511 = vmul.u32 %v5506, %v5507
      %v5512 = vmul.u32 %v5506, %v5508
      %v5513 = vshll.u32 %v5510, 16
      %v5514 = vshrl.u32 %v5510, 16
      %v5515 = vshll.u32 %v5511, 16
      %v5516 = vshrl.u32 %v5511, 16
      %vm5517 = vc.u32 %v5509, %v5513
      %v5518 = vsel %vm5517, 1, 0
      %v5519 = vadd.s32 %v5509, %v5513
      %v5520 = vadd.s32 %v5512, %v5518
      %vm5521 = vc.u32 %v5519, %v5515
      %v5522 = vsel %vm5521, 1, 0
      %v5523 = vadd.s32 %v5519, %v5515
      %v5524 = vadd.s32 %v5520, %v5522
      %v5525 = vadd.s32 %v5524, %v5514
      %v5526 = vadd.s32 %v5525, %v5516
      %v5527 = vmul.u32 %v5482, %v5473
      %v5528 = vadd.s32 %v5504, %v5523
      %vm5529 = vc.u32 %v5504, %v5523
      %v5530 = vadd.s32 %v5526, 1
      %v5531 = vsel %vm5529, %v5530, %v5526
      %v5532 = vadd.s32 %v5527, %v5531
      %v5533 = vadd.s32 %v5532, 536870912
      %v5534 = vshrl.u32 %v5533, 30
      %v5535 = vshll.u32 %v5534, 30
      %v5536 = vsub.s32 %v5532, %v5535
      %vm5537 = vcmp.lt.s32.totalorder %v5536, 0
      %v5538 = vsub.s32 0, %v5536
      %v5539 = vsel %vm5537, %v5538, %v5536
      %v5540 = vclz %v5539
      %v5541 = vsub.s32 %v5540, 2
      %vm5542 = vcmp.gt.s32.totalorder 0, %v5541
      %v5543 = vsel %vm5542, 0, %v5541
      %v5544 = vsub.s32 32, %v5543
      %v5545 = vshll.u32 %v5536, %v5543
      %v5546 = vshrl.u32 %v5528, %v5544
      %v5547 = vor.u32 %v5545, %v5546
      %v5548 = vsub.s32 4294967266, %v5543
      %v5549 = vadd.s32 %v5548, 127
      %v5550 = vshll.u32 %v5549, 23
      %v5551 = vor.u32 4788187, %v5550
      %v5552 = vand.u32 2147483647, %v5551
      %v5554 = vcvt.s32.f32 %v5547
      %v5555 = vmul.f32 %v5554, %v5552
      %v5556 = vxor.u32 %v5555, 2147483648
      %v5557 = vsel %vm5436, %v5556, %v5555
      %v5558 = vsub.s32 4, %v5534
      %v5559 = vsel %vm5436, %v5558, %v5534
      %v5560 = vsel %vm5435, %v4500, %v5557
      %v5561 = vsel %vm5435, 0, %v5559
      %v5562 = vmul.f32 %v5560, %v5560
      %v5563 = vmul.f32 %v5562, -0.001358992
      %v5564 = vadd.f32 %v5563, 0.041655596
      %v5565 = vmul.f32 %v5562, %v5564
      %v5566 = vadd.f32 %v5565, -0.4999988
      %v5567 = vmul.f32 %v5562, %v5566
      %v5568 = vadd.f32 1.0, %v5567
      %v5569 = vmul.f32 %v5560, %v5560
      %v5570 = vmul.f32 %v5569, -0.00019511016
      %v5571 = vadd.f32 %v5570, 0.008332121
      %v5572 = vmul.f32 %v5569, %v5571
      %v5573 = vadd.f32 %v5572, -0.16666654
      %v5574 = vmul.f32 %v5569, %v5573
      %v5575 = vadd.f32 %v5574, 1.0
      %v5576 = vmul.f32 %v5575, %v5560
      %vm5577 = vweird.f32 %v4500
      %v5578 = vadd.s32 %v5561, 3
      %v5579 = vand.u32 %v5578, 3
      %vm5580 = vcmp.lt.s32.totalorder %v5579, 2
      %vm5581 = vcmp.eq.s32.totalorder %v5579, 0
      %v5582 = vxor.u32 %v5576, 2147483648
      %v5583 = vsel %vm5581, %v5568, %v5582
      %vm5584 = vcmp.eq.s32.totalorder %v5579, 2
      %v5585 = vxor.u32 %v5568, 2147483648
      %v5586 = vsel %vm5584, %v5585, %v5576
      %v5587 = vsel %vm5580, %v5583, %v5586
      %v5588 = vsel %vm5577, nan, %v5587
      %v5589 = vand.u32 2147483647, %v4502
      %vm5590 = vcmp.le.f32.partialorder %v5589, 0.7853982
      %vm5591 = vcmp.lt.s32.totalorder %v4502, 0
      %v5592 = vand.u32 %v4502, 2139095040
      %v5593 = vshrl.u32 %v5592, 23
      %v5594 = vsub.s32 %v5593, 127
      %v5595 = vand.u32 2147483647, %v4502
      %v5596 = vand.u32 %v5595, 8388607
      %v5597 = vor.u32 %v5596, 8388608
      %v5598 = vsub.s32 0, %v5597
      %v5599 = vadd.s32 %v5594, 1
      %vm5600 = vcmp.gt.s32.totalorder %v5599, 0
      %v5601 = vsel %vm5600, %v5599, 0
      %v5602 = vshrl.u32 %v5601, 5
      %v5603 = vand.u32 %v5601, 31
      %v5604 = vsub.s32 32, %v5603
      %v5605 = vshrl.u32 683565275, %v5604
      %v5606 = vshll.u32 683565275, %v5603
      %v5607 = vshrl.u32 2475754826, %v5604
      %v5608 = vor.u32 %v5606, %v5607
      %v5609 = vshll.u32 2475754826, %v5603
      %v5610 = vshrl.u32 2131351028, %v5604
      %v5611 = vor.u32 %v5609, %v5610
      %v5612 = vshll.u32 2131351028, %v5603
      %v5613 = vshrl.u32 2102212464, %v5604
      %v5614 = vor.u32 %v5612, %v5613
      %v5615 = vshll.u32 2102212464, %v5603
      %v5616 = vshrl.u32 920167782, %v5604
      %v5617 = vor.u32 %v5615, %v5616
      %v5618 = vshll.u32 920167782, %v5603
      %v5619 = vshrl.u32 1326507024, %v5604
      %v5620 = vor.u32 %v5618, %v5619
      %vm5621 = vcmp.lt.s32.totalorder %v5602, 1
      %vm5622 = vcmp.lt.s32.totalorder %v5602, 2
      %vm5623 = vcmp.lt.s32.totalorder %v5602, 3
      %vm5624 = vcmp.lt.s32.totalorder %v5602, 4
      %v5625 = vsel %vm5621, %v5605, %v5608
      %v5626 = vsel %vm5624, %v5614, 2102212464
      %v5627 = vsel %vm5623, %v5611, %v5626
      %v5628 = vsel %vm5622, %v5625, %v5627
      %v5629 = vsel %vm5621, %v5608, %v5611
      %v5630 = vsel %vm5624, %v5617, 920167782
      %v5631 = vsel %vm5623, %v5614, %v5630
      %v5632 = vsel %vm5622, %v5629, %v5631
      %v5633 = vsel %vm5621, %v5611, %v5614
      %v5634 = vsel %vm5624, %v5620, 1326507024
      %v5635 = vsel %vm5623, %v5617, %v5634
      %v5636 = vsel %vm5622, %v5633, %v5635
      %v5637 = vshll.u32 %v5597, 8
      %v5638 = vand.u32 %v5637, 65535
      %v5639 = vshrl.u32 %v5637, 16
      %v5640 = vand.u32 %v5636, 65535
      %v5641 = vshrl.u32 %v5636, 16
      %v5642 = vmul.u32 %v5638, %v5640
      %v5643 = vmul.u32 %v5638, %v5641
      %v5644 = vmul.u32 %v5639, %v5640
      %v5645 = vmul.u32 %v5639, %v5641
      %v5646 = vshll.u32 %v5643, 16
      %v5647 = vshrl.u32 %v5643, 16
      %v5648 = vshll.u32 %v5644, 16
      %v5649 = vshrl.u32 %v5644, 16
      %vm5650 = vc.u32 %v5642, %v5646
      %v5651 = vsel %vm5650, 1, 0
      %v5652 = vadd.s32 %v5642, %v5646
      %v5653 = vadd.s32 %v5645, %v5651
      %vm5654 = vc.u32 %v5652, %v5648
      %v5655 = vsel %vm5654, 1, 0
      %v5656 = vadd.s32 %v5652, %v5648
      %v5657 = vadd.s32 %v5653, %v5655
      %v5658 = vadd.s32 %v5657, %v5647
      %v5659 = vadd.s32 %v5658, %v5649
      %v5660 = vand.u32 %v5637, 65535
      %v5661 = vshrl.u32 %v5637, 16
      %v5662 = vand.u32 %v5632, 65535
      %v5663 = vshrl.u32 %v5632, 16
      %v5664 = vmul.u32 %v5660, %v5662
      %v5665 = vmul.u32 %v5660, %v5663
      %v5666 = vmul.u32 %v5661, %v5662
      %v5667 = vmul.u32 %v5661, %v5663
      %v5668 = vshll.u32 %v5665, 16
      %v5669 = vshrl.u32 %v5665, 16
      %v5670 = vshll.u32 %v5666, 16
      %v5671 = vshrl.u32 %v5666, 16
      %vm5672 = vc.u32 %v5664, %v5668
      %v5673 = vsel %vm5672, 1, 0
      %v5674 = vadd.s32 %v5664, %v5668
      %v5675 = vadd.s32 %v5667, %v5673
      %vm5676 = vc.u32 %v5674, %v5670
      %v5677 = vsel %vm5676, 1, 0
      %v5678 = vadd.s32 %v5674, %v5670
      %v5679 = vadd.s32 %v5675, %v5677
      %v5680 = vadd.s32 %v5679, %v5669
      %v5681 = vadd.s32 %v5680, %v5671
      %v5682 = vmul.u32 %v5637, %v5628
      %v5683 = vadd.s32 %v5659, %v5678
      %vm5684 = vc.u32 %v5659, %v5678
      %v5685 = vadd.s32 %v5681, 1
      %v5686 = vsel %vm5684, %v5685, %v5681
      %v5687 = vadd.s32 %v5682, %v5686
      %v5688 = vadd.s32 %v5687, 536870912
      %v5689 = vshrl.u32 %v5688, 30
      %v5690 = vshll.u32 %v5689, 30
      %v5691 = vsub.s32 %v5687, %v5690
      %vm5692 = vcmp.lt.s32.totalorder %v5691, 0
      %v5693 = vsub.s32 0, %v5691
      %v5694 = vsel %vm5692, %v5693, %v5691
      %v5695 = vclz %v5694
      %v5696 = vsub.s32 %v5695, 2
      %vm5697 = vcmp.gt.s32.totalorder 0, %v5696
      %v5698 = vsel %vm5697, 0, %v5696
      %v5699 = vsub.s32 32, %v5698
      %v5700 = vshll.u32 %v5691, %v5698
      %v5701 = vshrl.u32 %v5683, %v5699
      %v5702 = vor.u32 %v5700, %v5701
      %v5703 = vsub.s32 4294967266, %v5698
      %v5704 = vadd.s32 %v5703, 127
      %v5705 = vshll.u32 %v5704, 23
      %v5706 = vor.u32 4788187, %v5705
      %v5707 = vand.u32 2147483647, %v5706
      %v5709 = vcvt.s32.f32 %v5702
      %v5710 = vmul.f32 %v5709, %v5707
      %v5711 = vxor.u32 %v5710, 2147483648
      %v5712 = vsel %vm5591, %v5711, %v5710
      %v5713 = vsub.s32 4, %v5689
      %v5714 = vsel %vm5591, %v5713, %v5689
      %v5715 = vsel %vm5590, %v4502, %v5712
      %v5716 = vsel %vm5590, 0, %v5714
      %v5717 = vmul.f32 %v5715, %v5715
      %v5718 = vmul.f32 %v5717, -0.001358992
      %v5719 = vadd.f32 %v5718, 0.041655596
      %v5720 = vmul.f32 %v5717, %v5719
      %v5721 = vadd.f32 %v5720, -0.4999988
      %v5722 = vmul.f32 %v5717, %v5721
      %v5723 = vadd.f32 1.0, %v5722
      %v5724 = vmul.f32 %v5715, %v5715
      %v5725 = vmul.f32 %v5724, -0.00019511016
      %v5726 = vadd.f32 %v5725, 0.008332121
      %v5727 = vmul.f32 %v5724, %v5726
      %v5728 = vadd.f32 %v5727, -0.16666654
      %v5729 = vmul.f32 %v5724, %v5728
      %v5730 = vadd.f32 %v5729, 1.0
      %v5731 = vmul.f32 %v5730, %v5715
      %vm5732 = vweird.f32 %v4502
      %v5733 = vadd.s32 %v5716, 3
      %v5734 = vand.u32 %v5733, 3
      %vm5735 = vcmp.lt.s32.totalorder %v5734, 2
      %vm5736 = vcmp.eq.s32.totalorder %v5734, 0
      %v5737 = vxor.u32 %v5731, 2147483648
      %v5738 = vsel %vm5736, %v5723, %v5737
      %vm5739 = vcmp.eq.s32.totalorder %v5734, 2
      %v5740 = vxor.u32 %v5723, 2147483648
      %v5741 = vsel %vm5739, %v5740, %v5731
      %v5742 = vsel %vm5735, %v5738, %v5741
      %v5743 = vsel %vm5732, nan, %v5742
      %v5744 = vpack.c.bf16 %v4813, %v4658
      %v5745 = vpack.c.bf16 %v5123, %v4968
      %v5746 = vpack.c.bf16 %v5433, %v5278
      %v5747 = vpack.c.bf16 %v5743, %v5588
      %v5748 = vld [vmem:[%s9] sm:$0xf]
      %v5749 = vld [vmem:[%s9 + $0x4] sm:$0xf]
      %v5750 = vld [vmem:[%s9 + $0x8] sm:$0xf]
      %v5751 = vld [vmem:[%s9 + $0xc] sm:$0xf]
      %v5752 = vld [vmem:[%s9 + $0x10] sm:$0xf]
      %v5753 = vld [vmem:[%s9 + $0x14] sm:$0xf]
      %v5754 = vld [vmem:[%s9 + $0x18] sm:$0xf]
      %v5755 = vld [vmem:[%s9 + $0x1c] sm:$0xf]
      %v5756 = vld [vmem:[%s9 + $0x20] sm:$0xf]
      %v5757 = vld [vmem:[%s9 + $0x24] sm:$0xf]
      %v5758 = vld [vmem:[%s9 + $0x28] sm:$0xf]
      %v5759 = vld [vmem:[%s9 + $0x2c] sm:$0xf]
      %v5760 = vld [vmem:[%s9 + $0x30] sm:$0xf]
      %v5761 = vld [vmem:[%s9 + $0x34] sm:$0xf]
      %v5762 = vld [vmem:[%s9 + $0x38] sm:$0xf]
      %v5763 = vld [vmem:[%s9 + $0x3c] sm:$0xf]
      %v5764 = vld [vmem:[%s10] sm:$0x1]
      %v5766 = vperm.slane %v5764, 0
      %v5784 = vunpack.c.l.b16 %v5748
      %v5785 = vunpack.c.l.b16 %v5749
      %v5786 = vunpack.c.l.b16 %v5750
      %v5787 = vunpack.c.l.b16 %v5751
      %v5788 = vunpack.c.l.b16 %v5752
      %v5789 = vunpack.c.l.b16 %v5753
      %v5790 = vunpack.c.l.b16 %v5754
      %v5791 = vunpack.c.l.b16 %v5755
      %v5792 = vunpack.c.l.b16 %v5756
      %v5793 = vunpack.c.l.b16 %v5757
      %v5794 = vunpack.c.l.b16 %v5758
      %v5795 = vunpack.c.l.b16 %v5759
      %v5796 = vunpack.c.l.b16 %v5760
      %v5797 = vunpack.c.l.b16 %v5761
      %v5798 = vunpack.c.l.b16 %v5762
      %v5799 = vunpack.c.l.b16 %v5763
      %v5800 = vpack.c.b16 %v5785, %v5784
      %v5801 = vpack.c.b16 %v5787, %v5786
      %v5802 = vpack.c.b16 %v5789, %v5788
      %v5803 = vpack.c.b16 %v5791, %v5790
      %v5804 = vpack.c.b16 %v5793, %v5792
      %v5805 = vpack.c.b16 %v5795, %v5794
      %v5806 = vpack.c.b16 %v5797, %v5796
      %v5807 = vpack.c.b16 %v5799, %v5798
      %5816 = vmatpush.bf16.msra.mxu0 %v5807
      %5817 = vmatpush.bf16.msra.mxu0 %v5806
      %5818 = vmatpush.bf16.msra.mxu0 %v5805
      %5819 = vmatpush.bf16.msra.mxu0 %v5804
      %5820 = vmatpush.bf16.msra.mxu0 %v5803
      %5821 = vmatpush.bf16.msra.mxu0 %v5802
      %5822 = vmatpush.bf16.msra.mxu0 %v5801
      %5823 = vmatpush.bf16.msra.mxu0 %v5800
      %5824 = vmatmul.bf16.gmra.mxu0 %v5744
      %v5825 = vpop.f32.mrf.mxu0
      %v5826 = vadd.f32 %v5766, %v5825
      %v5827 = vpop.f32.mrf.mxu0
      %v5828 = vadd.f32 %v5766, %v5827
      %5829 = vmatmul.bf16.gmra.mxu0 %v5745
      %v5830 = vpop.f32.mrf.mxu0
      %v5831 = vadd.f32 %v5766, %v5830
      %v5832 = vpop.f32.mrf.mxu0
      %v5833 = vadd.f32 %v5766, %v5832
      %5834 = vmatmul.bf16.gmra.mxu0 %v5746
      %v5835 = vpop.f32.mrf.mxu0
      %v5836 = vadd.f32 %v5766, %v5835
      %v5837 = vpop.f32.mrf.mxu0
      %v5838 = vadd.f32 %v5766, %v5837
      %5839 = vmatmul.bf16.gmra.mxu0 %v5747
      %v5840 = vpop.f32.mrf.mxu0
      %v5841 = vadd.f32 %v5766, %v5840
      %v5842 = vpop.f32.mrf.mxu0
      %v5843 = vadd.f32 %v5766, %v5842
      %5844 = vdwg.mxu0
      %5845 = vst [vmem:[%s388] sm:$0xff] %v5826
      %5846 = vst [vmem:[%s388 + $0x8] sm:$0xff] %v5828
      %5847 = vst [vmem:[%s388 + $0x10] sm:$0xff] %v5831
      %5848 = vst [vmem:[%s388 + $0x18] sm:$0xff] %v5833
      %5849 = vst [vmem:[%s388 + $0x20] sm:$0xff] %v5836
      %5850 = vst [vmem:[%s388 + $0x28] sm:$0xff] %v5838
      %5851 = vst [vmem:[%s388 + $0x30] sm:$0xff] %v5841
      %5852 = vst [vmem:[%s388 + $0x38] sm:$0xff] %v5843
      %s5853 = smul.u32 8, %s22
      %p5854 = scmp.lt.s32.totalorder %s5853, 15
      %s5855 = scalar_select %p5854, %s5853, 15
      %s5856 = smul.addr %s5855, 8
      %s5857 = scalar_lea.vmem %s11, %s5856
      // Predicated region
      $region65: #{ann_forward.1} parent=63 // pred_check
        %p5858 = pneg %p276
      $region66: #{ann_forward.1} parent=63 // pred_check_branch
        %5860 = sbr.rel (%p5858) target = $region68
      $region67: #{ann_forward.1} parent=63 // pred_region
        %s5861 = smul.u32 8, %s22
      $region68: #{ann_forward.1} parent=63 // pred_fallthru
        _
    $region64: #{ann_forward.1} parent=5 // pred_fallthru
      _
    %p5862 = scmp.le.s32.totalorder 2, %s17
    // Predicated region
    $region69: #{ann_forward.1} parent=5 // pred_check
      %p5863 = pneg %p5862
    $region70: #{ann_forward.1} parent=5 // pred_check_branch
      %5865 = sbr.rel (%p5863) target = $region72
    $region71: #{ann_forward.1} parent=5 // pred_region
      %s5866 = ssub.s32 %s17, 2
      // Predicated region
      $region73: #{ann_forward.1} parent=71 // pred_check
        %p5867 = pneg %p282
      $region74: #{ann_forward.1} parent=71 // pred_check_branch
        %5869 = sbr.rel (%p5867) target = $region76
      $region75: #{ann_forward.1} parent=71 // pred_region
        %s5870 = smul.u32 8, %s23
        %p5871 = scmp.lt.s32.totalorder %s5870, 15
        %s5872 = scalar_select %p5871, %s5870, 15
        %s5873 = smul.addr %s5872, 8
        %s5874 = scalar_lea.vmem %s11, %s5873
      $region76: #{ann_forward.1} parent=71 // pred_fallthru
        _
    $region72: #{ann_forward.1} parent=5 // pred_fallthru
      _
  $region6: #{ann_forward.1} parent=0 // loop_footer
    %s21 = sadd.s32 1, %s17
  $region7: #{ann_forward.1} parent=0 // loop_footer_branch
    %16 = sbr.rel target = $region3
  $region8: #{ann_forward.1} parent=0 // loop_exit
    _

</llo_original>
